<compile_context>
chip_gen: v5e
topology: v5e:2x2
jax: 0.10.0
libtpu: 0.0.40
codegen_flags: <defaults>
</compile_context>

<pallas_src>
import jax
import jax.numpy as jnp
import numpy as np
from jax.experimental import pallas as pl
from jax.experimental.pallas import tpu as pltpu


# ----------------------- kernel A: conv1+pool1+conv2+pool2 --------------------------
def _conv_kernel(x1_ref, w1_ref, b1_ref, w2_ref, b2_ref, o_ref, s1_ref):
    # conv1 (3x3, pad=1, Cin=1) as a single im2col matmul: (784, 9) @ (9, 32)
    a1 = jnp.dot(x1_ref[0], w1_ref[...], preferred_element_type=jnp.float32)
    a1 = jnp.maximum(a1 + b1_ref[...], 0.0)                       # (784, 32) f32

    # maxpool1: rows were pre-ordered by the wrapper into the four 2x2-window
    # positions (dh, dw), each a 196-row block with row = ph*14 + pw.
    p1 = jnp.maximum(jnp.maximum(a1[0:196], a1[196:392]),
                     jnp.maximum(a1[392:588], a1[588:784]))       # (196, 32)

    # Scatter pooled activation into a zero-padded 16x16 (row-flattened) VMEM image
    # so each of conv2's 9 taps is a contiguous 224-row VMEM slice.
    s1_ref[...] = jnp.zeros_like(s1_ref)
    for ph in range(14):
        s1_ref[pl.ds((ph + 1) * 16 + 1, 14), :] = p1[14 * ph:14 * ph + 14, :]

    # conv2 (3x3, pad=1) as one K=288 im2col matmul over 224 extended-width rows
    # (rows with w in {14,15} are garbage and are never selected below).
    im2 = jnp.concatenate(
        [s1_ref[pl.ds(kh * 16 + kw, 224), :] for kh in range(3) for kw in range(3)],
        axis=1).astype(jnp.bfloat16)                              # (224, 288)
    a2 = jnp.dot(im2, w2_ref[...], preferred_element_type=jnp.float32)
    a2 = jnp.maximum(a2 + b2_ref[...], 0.0)                       # (224, 64), row = h*16 + w

    # maxpool2 epilogue: pool h with one shifted max, then pick the 49 valid w-pairs.
    d = jnp.maximum(a2[0:208], a2[16:224])                        # valid at rows 32*ph + w
    pooled = jnp.concatenate(
        [jnp.maximum(d[32 * ph + 2 * pw:32 * ph + 2 * pw + 1, :],
                     d[32 * ph + 2 * pw + 1:32 * ph + 2 * pw + 2, :])
         for ph in range(7) for pw in range(7)], axis=0)          # (49, 64), row = h*7 + w
    o_ref[0] = pooled.astype(o_ref.dtype)


def conv_stage(x1, pp):
    n = x1.shape[0]
    flops = n * (2 * 784 * 9 * 32 + 2 * 224 * 288 * 64)
    bytes_accessed = (x1.size * 2 + n * 49 * 64 * 2
                      + (9 * 32 + 288 * 64) * 2 + (32 + 64) * 4)
    return pl.pallas_call(
        _conv_kernel,
        out_shape=jax.ShapeDtypeStruct((n, 49, 64), jnp.bfloat16),
        grid=(n,),
        in_specs=[pl.BlockSpec((1, 784, 9), lambda i: (i, 0, 0)),
                  pl.BlockSpec((9, 32), lambda i: (0, 0)),
                  pl.BlockSpec((1, 32), lambda i: (0, 0)),
                  pl.BlockSpec((288, 64), lambda i: (0, 0)),
                  pl.BlockSpec((1, 64), lambda i: (0, 0))],
        out_specs=pl.BlockSpec((1, 49, 64), lambda i: (i, 0, 0)),
        scratch_shapes=[pltpu.VMEM((264, 32), jnp.float32)],
        compiler_params=pltpu.CompilerParams(
            dimension_semantics=("parallel",),
            vmem_limit_bytes=32 * 1024 * 1024),
        cost_estimate=pl.CostEstimate(flops=flops, transcendentals=0,
                                      bytes_accessed=bytes_accessed),
    )(x1, pp["w1"], pp["b1"], pp["w2"], pp["b2"])


# ------------------------------- kernel B: FC head ----------------------------------
def _fc_kernel(x_ref, w3_ref, b3_ref, w4_ref, b4_ref, o_ref):
    h = jnp.dot(x_ref[...], w3_ref[...], preferred_element_type=jnp.float32) + b3_ref[...]
    h = jnp.maximum(h, 0.0)
    o_ref[...] = (jnp.dot(h.astype(w4_ref.dtype), w4_ref[...],
                          preferred_element_type=jnp.float32) + b4_ref[...])


def fc_stage(x_fc, pp):
    n, d = x_fc.shape
    flops = n * (2 * d * 128 + 2 * 128 * 128)
    bytes_accessed = x_fc.size * 2 + (d * 128 + 128 * 128) * 2 + n * 128 * 4 + 2 * 128 * 4
    return pl.pallas_call(
        _fc_kernel,
        out_shape=jax.ShapeDtypeStruct((n, 128), jnp.float32),
        grid=(1,),
        in_specs=[pl.BlockSpec((n, d), lambda i: (0, 0)),
                  pl.BlockSpec((d, 128), lambda i: (0, 0)),
                  pl.BlockSpec((1, 128), lambda i: (0, 0)),
                  pl.BlockSpec((128, 128), lambda i: (0, 0)),
                  pl.BlockSpec((1, 128), lambda i: (0, 0))],
        out_specs=pl.BlockSpec((n, 128), lambda i: (0, 0)),
        compiler_params=pltpu.CompilerParams(vmem_limit_bytes=32 * 1024 * 1024),
        cost_estimate=pl.CostEstimate(flops=flops, transcendentals=0,
                                      bytes_accessed=bytes_accessed),
    )(x_fc, pp["w3"], pp["b3"], pp["w4"], pp["b4"])


# ----------------------------------- wrappers ---------------------------------------
def _build_conv1_im2col(x_nchw):
    """(N,1,28,28) -> (N,784,9) bf16 im2col with rows grouped into the 4 pool windows.

    Row layout: block b = dh*2+dw (196 rows each), row within block = ph*14 + pw,
    i.e. the conv1 output pixel (2*ph+dh, 2*pw+dw).  Column t = kh*3+kw.
    The source image is ~3 KB/image, so this 9x staging array is negligible HBM traffic
    and lets conv1 run as a single K-packed MXU matmul with a slice-only pooling epilogue.
    """
    n = x_nchw.shape[0]
    xp = jnp.pad(x_nchw[:, 0], ((0, 0), (1, 1), (1, 1)))                    # (N,30,30)
    taps = jnp.stack([xp[:, kh:kh + 28, kw:kw + 28]
                      for kh in range(3) for kw in range(3)], axis=-1)      # (N,28,28,9)
    blocks = [taps[:, dh::2, dw::2, :].reshape(n, 196, 9)
              for dh in range(2) for dw in range(2)]
    return jnp.concatenate(blocks, axis=1).astype(jnp.bfloat16)             # (N,784,9)


def prepare_params(p):
    """One-time weight repack (outside the hot path): im2col layouts, bf16 operands,
    fc1 permuted to NHWC-flatten order, fc2 padded to 128 lanes."""
    w1 = p["conv1_w"].reshape(9, 32).astype(jnp.bfloat16)                   # HWIO -> (9,32)
    b1 = p["conv1_b"].reshape(1, 32).astype(jnp.float32)
    w2 = p["conv2_w"].reshape(288, 64).astype(jnp.bfloat16)                 # (kh,kw,ci) x co
    b2 = p["conv2_b"].reshape(1, 64).astype(jnp.float32)
    # fc1_w rows are in PyTorch NCHW-flatten order (c*49 + h*7 + w); permute once to
    # NHWC-flatten order ((h*7+w)*64 + c) so the kernel-A output flattens for free.
    w3 = (p["fc1_w"].reshape(64, 7, 7, 128).transpose(1, 2, 0, 3)
          .reshape(3136, 128)).astype(jnp.bfloat16)
    b3 = p["fc1_b"].reshape(1, 128).astype(jnp.float32)
    w4 = jnp.zeros((128, 128), jnp.float32).at[:, :10].set(p["fc2_w"]).astype(jnp.bfloat16)
    b4 = jnp.zeros((1, 128), jnp.float32).at[:, :10].set(p["fc2_b"].reshape(1, 10))
    return dict(w1=w1, b1=b1, w2=w2, b2=b2, w3=w3, b3=b3, w4=w4, b4=b4)


def mnist_forward(x_nchw, pp):
    n = x_nchw.shape[0]
    x1 = _build_conv1_im2col(x_nchw)              # (N, 784, 9)  bf16
    pooled = conv_stage(x1, pp)                   # (N, 49, 64)  bf16  (h*7+w, c)
    x_fc = pooled.reshape(n, 49 * 64)             # free row-major flatten (matches permuted fc1_w)
    logits = fc_stage(x_fc, pp)                   # (N, 128) f32, lane-dense store
    return logits[:, :10]


def init_params(key):
    ks = jax.random.split(key, 8)
    nrm = lambda k, s, sc: sc * jax.random.normal(k, s, jnp.float32)
    return {
        "conv1_w": nrm(ks[0], (3, 3, 1, 32), 0.10),    # HWIO
        "conv1_b": nrm(ks[1], (32,), 0.10),
        "conv2_w": nrm(ks[2], (3, 3, 32, 64), 0.05),   # HWIO
        "conv2_b": nrm(ks[3], (64,), 0.05),
        "fc1_w":   nrm(ks[4], (64 * 7 * 7, 128), 0.02),
        "fc1_b":   nrm(ks[5], (128,), 0.02),
        "fc2_w":   nrm(ks[6], (128, 10), 0.05),
        "fc2_b":   nrm(ks[7], (10,), 0.05),
    }


# ------------------------------ pure-JAX reference ----------------------------------
def reference_forward(x_nchw, p):
    def conv(x, w_hwio, b):
        w_oihw = jnp.transpose(w_hwio, (3, 2, 0, 1))
        y = jax.lax.conv_general_dilated(
            x, w_oihw, (1, 1), ((1, 1), (1, 1)),
            dimension_numbers=("NCHW", "OIHW", "NCHW"),
            precision=jax.lax.Precision.HIGHEST)
        return jax.nn.relu(y + b[None, :, None, None])

    def pool(x):
        return jax.lax.reduce_window(x, -jnp.inf, jax.lax.max,
                                     (1, 1, 2, 2), (1, 1, 2, 2), "VALID")

    x = pool(conv(x_nchw, p["conv1_w"], p["conv1_b"]))
    x = pool(conv(x, p["conv2_w"], p["conv2_b"]))
    x = x.reshape(x.shape[0], -1)
    h = jax.nn.relu(x @ p["fc1_w"] + p["fc1_b"])
    return h @ p["fc2_w"] + p["fc2_b"]


if __name__ == "__main__":
    key = jax.random.PRNGKey(0)
    kp, kx = jax.random.split(key)
    params = init_params(kp)
    # 28x28 is required by the module itself (Flatten -> Linear(64*7*7, 128)).
    x = jax.random.normal(kx, (2, 1, 28, 28), jnp.float32)

    prep = prepare_params(params)                 # one-time weight repack / bf16 cast
    fwd = jax.jit(mnist_forward)
    out = jax.block_until_ready(fwd(x, prep))
    assert out.shape == (2, 10)

    ref = reference_forward(x, params)
    np.testing.assert_allclose(np.asarray(out), np.asarray(ref), rtol=2e-2, atol=2e-2)
    print("KERNEL_OK")
</pallas_src>

<mosaic_0001>
module attributes {stable_mosaic.version = 11 : i64} {
  func.func @_conv_kernel(%arg0: i32, %arg1: memref<1x784x9xbf16, #tpu.memory_space<vmem>>, %arg2: memref<9x32xbf16, #tpu.memory_space<vmem>>, %arg3: memref<1x32xf32, #tpu.memory_space<vmem>>, %arg4: memref<288x64xbf16, #tpu.memory_space<vmem>>, %arg5: memref<1x64xf32, #tpu.memory_space<vmem>>, %arg6: memref<1x49x64xbf16, #tpu.memory_space<vmem>>, %arg7: memref<264x32xf32, #tpu.memory_space<vmem>>) attributes {dimension_semantics = [#tpu.dimension_semantics<parallel>], iteration_bounds = array<i64: 2>, scalar_prefetch = 0 : i64, scratch_operands = 1 : i64, tpu.core_type = #tpu.core_type<tc>, window_params = [{transform_indices = @transform_0, window_bounds = array<i64: 1, 784, 9>}, {pipeline_mode = #tpu.pipeline_mode<synchronous>, transform_indices = @transform_1, window_bounds = array<i64: 9, 32>}, {pipeline_mode = #tpu.pipeline_mode<synchronous>, transform_indices = @transform_2, window_bounds = array<i64: 1, 32>}, {pipeline_mode = #tpu.pipeline_mode<synchronous>, transform_indices = @transform_3, window_bounds = array<i64: 288, 64>}, {pipeline_mode = #tpu.pipeline_mode<synchronous>, transform_indices = @transform_4, window_bounds = array<i64: 1, 64>}, {transform_indices = @transform_5, window_bounds = array<i64: 1, 49, 64>}]} {
    %c0 = arith.constant 0 : index
    %c0_0 = arith.constant 0 : index
    %c0_1 = arith.constant 0 : index
    %0 = vector.load %arg1[%c0, %c0_0, %c0_1] : memref<1x784x9xbf16, #tpu.memory_space<vmem>>, vector<1x784x9xbf16>
    %1 = vector.shape_cast %0 : vector<1x784x9xbf16> to vector<784x9xbf16>
    %c0_2 = arith.constant 0 : index
    %c0_3 = arith.constant 0 : index
    %2 = vector.load %arg2[%c0_2, %c0_3] : memref<9x32xbf16, #tpu.memory_space<vmem>>, vector<9x32xbf16>
    %cst = arith.constant dense<0.000000e+00> : vector<784x32xf32>
    %3 = tpu.matmul %1, %2, %cst {dimension_numbers = #tpu.dot_dimension_numbers<[1], [0], [0], [1], [0, 0, 1, 1], [], []>} : vector<784x9xbf16>, vector<9x32xbf16>, vector<784x32xf32> -> vector<784x32xf32>
    %c0_4 = arith.constant 0 : index
    %c0_5 = arith.constant 0 : index
    %4 = vector.load %arg3[%c0_4, %c0_5] : memref<1x32xf32, #tpu.memory_space<vmem>>, vector<1x32xf32>
    %5 = vector.broadcast %4 : vector<1x32xf32> to vector<784x32xf32>
    %6 = arith.addf %3, %5 : vector<784x32xf32>
    %cst_6 = arith.constant 0.000000e+00 : f32
    %7 = vector.broadcast %cst_6 : f32 to vector<784x32xf32>
    %8 = arith.maximumf %6, %7 : vector<784x32xf32>
    %9 = vector.extract_strided_slice %8 {offsets = [0, 0], sizes = [196, 32], strides = [1, 1]} : vector<784x32xf32> to vector<196x32xf32>
    %10 = vector.extract_strided_slice %8 {offsets = [196, 0], sizes = [196, 32], strides = [1, 1]} : vector<784x32xf32> to vector<196x32xf32>
    %11 = arith.maximumf %9, %10 : vector<196x32xf32>
    %12 = vector.extract_strided_slice %8 {offsets = [392, 0], sizes = [196, 32], strides = [1, 1]} : vector<784x32xf32> to vector<196x32xf32>
    %13 = vector.extract_strided_slice %8 {offsets = [588, 0], sizes = [196, 32], strides = [1, 1]} : vector<784x32xf32> to vector<196x32xf32>
    %14 = arith.maximumf %12, %13 : vector<196x32xf32>
    %15 = arith.maximumf %11, %14 : vector<196x32xf32>
    %cst_7 = arith.constant 0.000000e+00 : f32
    %16 = vector.broadcast %cst_7 : f32 to vector<264x32xf32>
    %c0_8 = arith.constant 0 : index
    %c0_9 = arith.constant 0 : index
    %17 = vector.load %arg7[%c0_8, %c0_9] : memref<264x32xf32, #tpu.memory_space<vmem>>, vector<264x32xf32>
    tpu.vector_store %arg7[%c0_8, %c0_9], %16 {strides = array<i32>} : memref<264x32xf32, #tpu.memory_space<vmem>>, vector<264x32xf32>,
    %18 = vector.extract_strided_slice %15 {offsets = [0, 0], sizes = [14, 32], strides = [1, 1]} : vector<196x32xf32> to vector<14x32xf32>
    %c17 = arith.constant 17 : index
    %c0_10 = arith.constant 0 : index
    %19 = vector.load %arg7[%c17, %c0_10] : memref<264x32xf32, #tpu.memory_space<vmem>>, vector<14x32xf32>
    tpu.vector_store %arg7[%c17, %c0_10], %18 {strides = array<i32>} : memref<264x32xf32, #tpu.memory_space<vmem>>, vector<14x32xf32>,
    %20 = vector.extract_strided_slice %15 {offsets = [14, 0], sizes = [14, 32], strides = [1, 1]} : vector<196x32xf32> to vector<14x32xf32>
    %c33 = arith.constant 33 : index
    %c0_11 = arith.constant 0 : index
    %21 = vector.load %arg7[%c33, %c0_11] : memref<264x32xf32, #tpu.memory_space<vmem>>, vector<14x32xf32>
    tpu.vector_store %arg7[%c33, %c0_11], %20 {strides = array<i32>} : memref<264x32xf32, #tpu.memory_space<vmem>>, vector<14x32xf32>,
    %22 = vector.extract_strided_slice %15 {offsets = [28, 0], sizes = [14, 32], strides = [1, 1]} : vector<196x32xf32> to vector<14x32xf32>
    %c49 = arith.constant 49 : index
    %c0_12 = arith.constant 0 : index
    %23 = vector.load %arg7[%c49, %c0_12] : memref<264x32xf32, #tpu.memory_space<vmem>>, vector<14x32xf32>
    tpu.vector_store %arg7[%c49, %c0_12], %22 {strides = array<i32>} : memref<264x32xf32, #tpu.memory_space<vmem>>, vector<14x32xf32>,
    %24 = vector.extract_strided_slice %15 {offsets = [42, 0], sizes = [14, 32], strides = [1, 1]} : vector<196x32xf32> to vector<14x32xf32>
    %c65 = arith.constant 65 : index
    %c0_13 = arith.constant 0 : index
    %25 = vector.load %arg7[%c65, %c0_13] : memref<264x32xf32, #tpu.memory_space<vmem>>, vector<14x32xf32>
    tpu.vector_store %arg7[%c65, %c0_13], %24 {strides = array<i32>} : memref<264x32xf32, #tpu.memory_space<vmem>>, vector<14x32xf32>,
    %26 = vector.extract_strided_slice %15 {offsets = [56, 0], sizes = [14, 32], strides = [1, 1]} : vector<196x32xf32> to vector<14x32xf32>
    %c81 = arith.constant 81 : index
    %c0_14 = arith.constant 0 : index
    %27 = vector.load %arg7[%c81, %c0_14] : memref<264x32xf32, #tpu.memory_space<vmem>>, vector<14x32xf32>
    tpu.vector_store %arg7[%c81, %c0_14], %26 {strides = array<i32>} : memref<264x32xf32, #tpu.memory_space<vmem>>, vector<14x32xf32>,
    %28 = vector.extract_strided_slice %15 {offsets = [70, 0], sizes = [14, 32], strides = [1, 1]} : vector<196x32xf32> to vector<14x32xf32>
    %c97 = arith.constant 97 : index
    %c0_15 = arith.constant 0 : index
    %29 = vector.load %arg7[%c97, %c0_15] : memref<264x32xf32, #tpu.memory_space<vmem>>, vector<14x32xf32>
    tpu.vector_store %arg7[%c97, %c0_15], %28 {strides = array<i32>} : memref<264x32xf32, #tpu.memory_space<vmem>>, vector<14x32xf32>,
    %30 = vector.extract_strided_slice %15 {offsets = [84, 0], sizes = [14, 32], strides = [1, 1]} : vector<196x32xf32> to vector<14x32xf32>
    %c113 = arith.constant 113 : index
    %c0_16 = arith.constant 0 : index
    %31 = vector.load %arg7[%c113, %c0_16] : memref<264x32xf32, #tpu.memory_space<vmem>>, vector<14x32xf32>
    tpu.vector_store %arg7[%c113, %c0_16], %30 {strides = array<i32>} : memref<264x32xf32, #tpu.memory_space<vmem>>, vector<14x32xf32>,
    %32 = vector.extract_strided_slice %15 {offsets = [98, 0], sizes = [14, 32], strides = [1, 1]} : vector<196x32xf32> to vector<14x32xf32>
    %c129 = arith.constant 129 : index
    %c0_17 = arith.constant 0 : index
    %33 = vector.load %arg7[%c129, %c0_17] : memref<264x32xf32, #tpu.memory_space<vmem>>, vector<14x32xf32>
    tpu.vector_store %arg7[%c129, %c0_17], %32 {strides = array<i32>} : memref<264x32xf32, #tpu.memory_space<vmem>>, vector<14x32xf32>,
    %34 = vector.extract_strided_slice %15 {offsets = [112, 0], sizes = [14, 32], strides = [1, 1]} : vector<196x32xf32> to vector<14x32xf32>
    %c145 = arith.constant 145 : index
    %c0_18 = arith.constant 0 : index
    %35 = vector.load %arg7[%c145, %c0_18] : memref<264x32xf32, #tpu.memory_space<vmem>>, vector<14x32xf32>
    tpu.vector_store %arg7[%c145, %c0_18], %34 {strides = array<i32>} : memref<264x32xf32, #tpu.memory_space<vmem>>, vector<14x32xf32>,
    %36 = vector.extract_strided_slice %15 {offsets = [126, 0], sizes = [14, 32], strides = [1, 1]} : vector<196x32xf32> to vector<14x32xf32>
    %c161 = arith.constant 161 : index
    %c0_19 = arith.constant 0 : index
    %37 = vector.load %arg7[%c161, %c0_19] : memref<264x32xf32, #tpu.memory_space<vmem>>, vector<14x32xf32>
    tpu.vector_store %arg7[%c161, %c0_19], %36 {strides = array<i32>} : memref<264x32xf32, #tpu.memory_space<vmem>>, vector<14x32xf32>,
    %38 = vector.extract_strided_slice %15 {offsets = [140, 0], sizes = [14, 32], strides = [1, 1]} : vector<196x32xf32> to vector<14x32xf32>
    %c177 = arith.constant 177 : index
    %c0_20 = arith.constant 0 : index
    %39 = vector.load %arg7[%c177, %c0_20] : memref<264x32xf32, #tpu.memory_space<vmem>>, vector<14x32xf32>
    tpu.vector_store %arg7[%c177, %c0_20], %38 {strides = array<i32>} : memref<264x32xf32, #tpu.memory_space<vmem>>, vector<14x32xf32>,
    %40 = vector.extract_strided_slice %15 {offsets = [154, 0], sizes = [14, 32], strides = [1, 1]} : vector<196x32xf32> to vector<14x32xf32>
    %c193 = arith.constant 193 : index
    %c0_21 = arith.constant 0 : index
    %41 = vector.load %arg7[%c193, %c0_21] : memref<264x32xf32, #tpu.memory_space<vmem>>, vector<14x32xf32>
    tpu.vector_store %arg7[%c193, %c0_21], %40 {strides = array<i32>} : memref<264x32xf32, #tpu.memory_space<vmem>>, vector<14x32xf32>,
    %42 = vector.extract_strided_slice %15 {offsets = [168, 0], sizes = [14, 32], strides = [1, 1]} : vector<196x32xf32> to vector<14x32xf32>
    %c209 = arith.constant 209 : index
    %c0_22 = arith.constant 0 : index
    %43 = vector.load %arg7[%c209, %c0_22] : memref<264x32xf32, #tpu.memory_space<vmem>>, vector<14x32xf32>
    tpu.vector_store %arg7[%c209, %c0_22], %42 {strides = array<i32>} : memref<264x32xf32, #tpu.memory_space<vmem>>, vector<14x32xf32>,
    %44 = vector.extract_strided_slice %15 {offsets = [182, 0], sizes = [14, 32], strides = [1, 1]} : vector<196x32xf32> to vector<14x32xf32>
    %c225 = arith.constant 225 : index
    %c0_23 = arith.constant 0 : index
    %45 = vector.load %arg7[%c225, %c0_23] : memref<264x32xf32, #tpu.memory_space<vmem>>, vector<14x32xf32>
    tpu.vector_store %arg7[%c225, %c0_23], %44 {strides = array<i32>} : memref<264x32xf32, #tpu.memory_space<vmem>>, vector<14x32xf32>,
    %c0_24 = arith.constant 0 : index
    %c0_25 = arith.constant 0 : index
    %46 = vector.load %arg7[%c0_24, %c0_25] : memref<264x32xf32, #tpu.memory_space<vmem>>, vector<224x32xf32>
    %c1 = arith.constant 1 : index
    %c0_26 = arith.constant 0 : index
    %47 = vector.load %arg7[%c1, %c0_26] : memref<264x32xf32, #tpu.memory_space<vmem>>, vector<224x32xf32>
    %c2 = arith.constant 2 : index
    %c0_27 = arith.constant 0 : index
    %48 = vector.load %arg7[%c2, %c0_27] : memref<264x32xf32, #tpu.memory_space<vmem>>, vector<224x32xf32>
    %c16 = arith.constant 16 : index
    %c0_28 = arith.constant 0 : index
    %49 = vector.load %arg7[%c16, %c0_28] : memref<264x32xf32, #tpu.memory_space<vmem>>, vector<224x32xf32>
    %c17_29 = arith.constant 17 : index
    %c0_30 = arith.constant 0 : index
    %50 = vector.load %arg7[%c17_29, %c0_30] : memref<264x32xf32, #tpu.memory_space<vmem>>, vector<224x32xf32>
    %c18 = arith.constant 18 : index
    %c0_31 = arith.constant 0 : index
    %51 = vector.load %arg7[%c18, %c0_31] : memref<264x32xf32, #tpu.memory_space<vmem>>, vector<224x32xf32>
    %c32 = arith.constant 32 : index
    %c0_32 = arith.constant 0 : index
    %52 = vector.load %arg7[%c32, %c0_32] : memref<264x32xf32, #tpu.memory_space<vmem>>, vector<224x32xf32>
    %c33_33 = arith.constant 33 : index
    %c0_34 = arith.constant 0 : index
    %53 = vector.load %arg7[%c33_33, %c0_34] : memref<264x32xf32, #tpu.memory_space<vmem>>, vector<224x32xf32>
    %c34 = arith.constant 34 : index
    %c0_35 = arith.constant 0 : index
    %54 = vector.load %arg7[%c34, %c0_35] : memref<264x32xf32, #tpu.memory_space<vmem>>, vector<224x32xf32>
    %55 = tpu.concatenate %46, %47, %48, %49, %50, %51, %52, %53, %54 in 1 : vector<224x32xf32>, vector<224x32xf32>, vector<224x32xf32>, vector<224x32xf32>, vector<224x32xf32>, vector<224x32xf32>, vector<224x32xf32>, vector<224x32xf32>, vector<224x32xf32> -> vector<224x288xf32>
    %56 = arith.truncf %55 : vector<224x288xf32> to vector<224x288xbf16>
    %c0_36 = arith.constant 0 : index
    %c0_37 = arith.constant 0 : index
    %57 = vector.load %arg4[%c0_36, %c0_37] : memref<288x64xbf16, #tpu.memory_space<vmem>>, vector<288x64xbf16>
    %cst_38 = arith.constant dense<0.000000e+00> : vector<224x64xf32>
    %58 = tpu.matmul %56, %57, %cst_38 {dimension_numbers = #tpu.dot_dimension_numbers<[1], [0], [0], [1], [0, 0, 1, 1], [], []>} : vector<224x288xbf16>, vector<288x64xbf16>, vector<224x64xf32> -> vector<224x64xf32>
    %c0_39 = arith.constant 0 : index
    %c0_40 = arith.constant 0 : index
    %59 = vector.load %arg5[%c0_39, %c0_40] : memref<1x64xf32, #tpu.memory_space<vmem>>, vector<1x64xf32>
    %60 = vector.broadcast %59 : vector<1x64xf32> to vector<224x64xf32>
    %61 = arith.addf %58, %60 : vector<224x64xf32>
    %cst_41 = arith.constant 0.000000e+00 : f32
    %62 = vector.broadcast %cst_41 : f32 to vector<224x64xf32>
    %63 = arith.maximumf %61, %62 : vector<224x64xf32>
    %64 = vector.extract_strided_slice %63 {offsets = [0, 0], sizes = [208, 64], strides = [1, 1]} : vector<224x64xf32> to vector<208x64xf32>
    %65 = vector.extract_strided_slice %63 {offsets = [16, 0], sizes = [208, 64], strides = [1, 1]} : vector<224x64xf32> to vector<208x64xf32>
    %66 = arith.maximumf %64, %65 : vector<208x64xf32>
    %67 = vector.extract_strided_slice %66 {offsets = [0, 0], sizes = [1, 64], strides = [1, 1]} : vector<208x64xf32> to vector<1x64xf32>
    %68 = vector.extract_strided_slice %66 {offsets = [1, 0], sizes = [1, 64], strides = [1, 1]} : vector<208x64xf32> to vector<1x64xf32>
    %69 = arith.maximumf %67, %68 : vector<1x64xf32>
    %70 = vector.extract_strided_slice %66 {offsets = [2, 0], sizes = [1, 64], strides = [1, 1]} : vector<208x64xf32> to vector<1x64xf32>
    %71 = vector.extract_strided_slice %66 {offsets = [3, 0], sizes = [1, 64], strides = [1, 1]} : vector<208x64xf32> to vector<1x64xf32>
    %72 = arith.maximumf %70, %71 : vector<1x64xf32>
    %73 = vector.extract_strided_slice %66 {offsets = [4, 0], sizes = [1, 64], strides = [1, 1]} : vector<208x64xf32> to vector<1x64xf32>
    %74 = vector.extract_strided_slice %66 {offsets = [5, 0], sizes = [1, 64], strides = [1, 1]} : vector<208x64xf32> to vector<1x64xf32>
    %75 = arith.maximumf %73, %74 : vector<1x64xf32>
    %76 = vector.extract_strided_slice %66 {offsets = [6, 0], sizes = [1, 64], strides = [1, 1]} : vector<208x64xf32> to vector<1x64xf32>
    %77 = vector.extract_strided_slice %66 {offsets = [7, 0], sizes = [1, 64], strides = [1, 1]} : vector<208x64xf32> to vector<1x64xf32>
    %78 = arith.maximumf %76, %77 : vector<1x64xf32>
    %79 = vector.extract_strided_slice %66 {offsets = [8, 0], sizes = [1, 64], strides = [1, 1]} : vector<208x64xf32> to vector<1x64xf32>
    %80 = vector.extract_strided_slice %66 {offsets = [9, 0], sizes = [1, 64], strides = [1, 1]} : vector<208x64xf32> to vector<1x64xf32>
    %81 = arith.maximumf %79, %80 : vector<1x64xf32>
    %82 = vector.extract_strided_slice %66 {offsets = [10, 0], sizes = [1, 64], strides = [1, 1]} : vector<208x64xf32> to vector<1x64xf32>
    %83 = vector.extract_strided_slice %66 {offsets = [11, 0], sizes = [1, 64], strides = [1, 1]} : vector<208x64xf32> to vector<1x64xf32>
    %84 = arith.maximumf %82, %83 : vector<1x64xf32>
    %85 = vector.extract_strided_slice %66 {offsets = [12, 0], sizes = [1, 64], strides = [1, 1]} : vector<208x64xf32> to vector<1x64xf32>
    %86 = vector.extract_strided_slice %66 {offsets = [13, 0], sizes = [1, 64], strides = [1, 1]} : vector<208x64xf32> to vector<1x64xf32>
    %87 = arith.maximumf %85, %86 : vector<1x64xf32>
    %88 = vector.extract_strided_slice %66 {offsets = [32, 0], sizes = [1, 64], strides = [1, 1]} : vector<208x64xf32> to vector<1x64xf32>
    %89 = vector.extract_strided_slice %66 {offsets = [33, 0], sizes = [1, 64], strides = [1, 1]} : vector<208x64xf32> to vector<1x64xf32>
    %90 = arith.maximumf %88, %89 : vector<1x64xf32>
    %91 = vector.extract_strided_slice %66 {offsets = [34, 0], sizes = [1, 64], strides = [1, 1]} : vector<208x64xf32> to vector<1x64xf32>
    %92 = vector.extract_strided_slice %66 {offsets = [35, 0], sizes = [1, 64], strides = [1, 1]} : vector<208x64xf32> to vector<1x64xf32>
    %93 = arith.maximumf %91, %92 : vector<1x64xf32>
    %94 = vector.extract_strided_slice %66 {offsets = [36, 0], sizes = [1, 64], strides = [1, 1]} : vector<208x64xf32> to vector<1x64xf32>
    %95 = vector.extract_strided_slice %66 {offsets = [37, 0], sizes = [1, 64], strides = [1, 1]} : vector<208x64xf32> to vector<1x64xf32>
    %96 = arith.maximumf %94, %95 : vector<1x64xf32>
    %97 = vector.extract_strided_slice %66 {offsets = [38, 0], sizes = [1, 64], strides = [1, 1]} : vector<208x64xf32> to vector<1x64xf32>
    %98 = vector.extract_strided_slice %66 {offsets = [39, 0], sizes = [1, 64], strides = [1, 1]} : vector<208x64xf32> to vector<1x64xf32>
    %99 = arith.maximumf %97, %98 : vector<1x64xf32>
    %100 = vector.extract_strided_slice %66 {offsets = [40, 0], sizes = [1, 64], strides = [1, 1]} : vector<208x64xf32> to vector<1x64xf32>
    %101 = vector.extract_strided_slice %66 {offsets = [41, 0], sizes = [1, 64], strides = [1, 1]} : vector<208x64xf32> to vector<1x64xf32>
    %102 = arith.maximumf %100, %101 : vector<1x64xf32>
    %103 = vector.extract_strided_slice %66 {offsets = [42, 0], sizes = [1, 64], strides = [1, 1]} : vector<208x64xf32> to vector<1x64xf32>
    %104 = vector.extract_strided_slice %66 {offsets = [43, 0], sizes = [1, 64], strides = [1, 1]} : vector<208x64xf32> to vector<1x64xf32>
    %105 = arith.maximumf %103, %104 : vector<1x64xf32>
    %106 = vector.extract_strided_slice %66 {offsets = [44, 0], sizes = [1, 64], strides = [1, 1]} : vector<208x64xf32> to vector<1x64xf32>
    %107 = vector.extract_strided_slice %66 {offsets = [45, 0], sizes = [1, 64], strides = [1, 1]} : vector<208x64xf32> to vector<1x64xf32>
    %108 = arith.maximumf %106, %107 : vector<1x64xf32>
    %109 = vector.extract_strided_slice %66 {offsets = [64, 0], sizes = [1, 64], strides = [1, 1]} : vector<208x64xf32> to vector<1x64xf32>
    %110 = vector.extract_strided_slice %66 {offsets = [65, 0], sizes = [1, 64], strides = [1, 1]} : vector<208x64xf32> to vector<1x64xf32>
    %111 = arith.maximumf %109, %110 : vector<1x64xf32>
    %112 = vector.extract_strided_slice %66 {offsets = [66, 0], sizes = [1, 64], strides = [1, 1]} : vector<208x64xf32> to vector<1x64xf32>
    %113 = vector.extract_strided_slice %66 {offsets = [67, 0], sizes = [1, 64], strides = [1, 1]} : vector<208x64xf32> to vector<1x64xf32>
    %114 = arith.maximumf %112, %113 : vector<1x64xf32>
    %115 = vector.extract_strided_slice %66 {offsets = [68, 0], sizes = [1, 64], strides = [1, 1]} : vector<208x64xf32> to vector<1x64xf32>
    %116 = vector.extract_strided_slice %66 {offsets = [69, 0], sizes = [1, 64], strides = [1, 1]} : vector<208x64xf32> to vector<1x64xf32>
    %117 = arith.maximumf %115, %116 : vector<1x64xf32>
    %118 = vector.extract_strided_slice %66 {offsets = [70, 0], sizes = [1, 64], strides = [1, 1]} : vector<208x64xf32> to vector<1x64xf32>
    %119 = vector.extract_strided_slice %66 {offsets = [71, 0], sizes = [1, 64], strides = [1, 1]} : vector<208x64xf32> to vector<1x64xf32>
    %120 = arith.maximumf %118, %119 : vector<1x64xf32>
    %121 = vector.extract_strided_slice %66 {offsets = [72, 0], sizes = [1, 64], strides = [1, 1]} : vector<208x64xf32> to vector<1x64xf32>
    %122 = vector.extract_strided_slice %66 {offsets = [73, 0], sizes = [1, 64], strides = [1, 1]} : vector<208x64xf32> to vector<1x64xf32>
    %123 = arith.maximumf %121, %122 : vector<1x64xf32>
    %124 = vector.extract_strided_slice %66 {offsets = [74, 0], sizes = [1, 64], strides = [1, 1]} : vector<208x64xf32> to vector<1x64xf32>
    %125 = vector.extract_strided_slice %66 {offsets = [75, 0], sizes = [1, 64], strides = [1, 1]} : vector<208x64xf32> to vector<1x64xf32>
    %126 = arith.maximumf %124, %125 : vector<1x64xf32>
    %127 = vector.extract_strided_slice %66 {offsets = [76, 0], sizes = [1, 64], strides = [1, 1]} : vector<208x64xf32> to vector<1x64xf32>
    %128 = vector.extract_strided_slice %66 {offsets = [77, 0], sizes = [1, 64], strides = [1, 1]} : vector<208x64xf32> to vector<1x64xf32>
    %129 = arith.maximumf %127, %128 : vector<1x64xf32>
    %130 = vector.extract_strided_slice %66 {offsets = [96, 0], sizes = [1, 64], strides = [1, 1]} : vector<208x64xf32> to vector<1x64xf32>
    %131 = vector.extract_strided_slice %66 {offsets = [97, 0], sizes = [1, 64], strides = [1, 1]} : vector<208x64xf32> to vector<1x64xf32>
    %132 = arith.maximumf %130, %131 : vector<1x64xf32>
    %133 = vector.extract_strided_slice %66 {offsets = [98, 0], sizes = [1, 64], strides = [1, 1]} : vector<208x64xf32> to vector<1x64xf32>
    %134 = vector.extract_strided_slice %66 {offsets = [99, 0], sizes = [1, 64], strides = [1, 1]} : vector<208x64xf32> to vector<1x64xf32>
    %135 = arith.maximumf %133, %134 : vector<1x64xf32>
    %136 = vector.extract_strided_slice %66 {offsets = [100, 0], sizes = [1, 64], strides = [1, 1]} : vector<208x64xf32> to vector<1x64xf32>
    %137 = vector.extract_strided_slice %66 {offsets = [101, 0], sizes = [1, 64], strides = [1, 1]} : vector<208x64xf32> to vector<1x64xf32>
    %138 = arith.maximumf %136, %137 : vector<1x64xf32>
    %139 = vector.extract_strided_slice %66 {offsets = [102, 0], sizes = [1, 64], strides = [1, 1]} : vector<208x64xf32> to vector<1x64xf32>
    %140 = vector.extract_strided_slice %66 {offsets = [103, 0], sizes = [1, 64], strides = [1, 1]} : vector<208x64xf32> to vector<1x64xf32>
    %141 = arith.maximumf %139, %140 : vector<1x64xf32>
    %142 = vector.extract_strided_slice %66 {offsets = [104, 0], sizes = [1, 64], strides = [1, 1]} : vector<208x64xf32> to vector<1x64xf32>
    %143 = vector.extract_strided_slice %66 {offsets = [105, 0], sizes = [1, 64], strides = [1, 1]} : vector<208x64xf32> to vector<1x64xf32>
    %144 = arith.maximumf %142, %143 : vector<1x64xf32>
    %145 = vector.extract_strided_slice %66 {offsets = [106, 0], sizes = [1, 64], strides = [1, 1]} : vector<208x64xf32> to vector<1x64xf32>
    %146 = vector.extract_strided_slice %66 {offsets = [107, 0], sizes = [1, 64], strides = [1, 1]} : vector<208x64xf32> to vector<1x64xf32>
    %147 = arith.maximumf %145, %146 : vector<1x64xf32>
    %148 = vector.extract_strided_slice %66 {offsets = [108, 0], sizes = [1, 64], strides = [1, 1]} : vector<208x64xf32> to vector<1x64xf32>
    %149 = vector.extract_strided_slice %66 {offsets = [109, 0], sizes = [1, 64], strides = [1, 1]} : vector<208x64xf32> to vector<1x64xf32>
    %150 = arith.maximumf %148, %149 : vector<1x64xf32>
    %151 = vector.extract_strided_slice %66 {offsets = [128, 0], sizes = [1, 64], strides = [1, 1]} : vector<208x64xf32> to vector<1x64xf32>
    %152 = vector.extract_strided_slice %66 {offsets = [129, 0], sizes = [1, 64], strides = [1, 1]} : vector<208x64xf32> to vector<1x64xf32>
    %153 = arith.maximumf %151, %152 : vector<1x64xf32>
    %154 = vector.extract_strided_slice %66 {offsets = [130, 0], sizes = [1, 64], strides = [1, 1]} : vector<208x64xf32> to vector<1x64xf32>
    %155 = vector.extract_strided_slice %66 {offsets = [131, 0], sizes = [1, 64], strides = [1, 1]} : vector<208x64xf32> to vector<1x64xf32>
    %156 = arith.maximumf %154, %155 : vector<1x64xf32>
    %157 = vector.extract_strided_slice %66 {offsets = [132, 0], sizes = [1, 64], strides = [1, 1]} : vector<208x64xf32> to vector<1x64xf32>
    %158 = vector.extract_strided_slice %66 {offsets = [133, 0], sizes = [1, 64], strides = [1, 1]} : vector<208x64xf32> to vector<1x64xf32>
    %159 = arith.maximumf %157, %158 : vector<1x64xf32>
    %160 = vector.extract_strided_slice %66 {offsets = [134, 0], sizes = [1, 64], strides = [1, 1]} : vector<208x64xf32> to vector<1x64xf32>
    %161 = vector.extract_strided_slice %66 {offsets = [135, 0], sizes = [1, 64], strides = [1, 1]} : vector<208x64xf32> to vector<1x64xf32>
    %162 = arith.maximumf %160, %161 : vector<1x64xf32>
    %163 = vector.extract_strided_slice %66 {offsets = [136, 0], sizes = [1, 64], strides = [1, 1]} : vector<208x64xf32> to vector<1x64xf32>
    %164 = vector.extract_strided_slice %66 {offsets = [137, 0], sizes = [1, 64], strides = [1, 1]} : vector<208x64xf32> to vector<1x64xf32>
    %165 = arith.maximumf %163, %164 : vector<1x64xf32>
    %166 = vector.extract_strided_slice %66 {offsets = [138, 0], sizes = [1, 64], strides = [1, 1]} : vector<208x64xf32> to vector<1x64xf32>
    %167 = vector.extract_strided_slice %66 {offsets = [139, 0], sizes = [1, 64], strides = [1, 1]} : vector<208x64xf32> to vector<1x64xf32>
    %168 = arith.maximumf %166, %167 : vector<1x64xf32>
    %169 = vector.extract_strided_slice %66 {offsets = [140, 0], sizes = [1, 64], strides = [1, 1]} : vector<208x64xf32> to vector<1x64xf32>
    %170 = vector.extract_strided_slice %66 {offsets = [141, 0], sizes = [1, 64], strides = [1, 1]} : vector<208x64xf32> to vector<1x64xf32>
    %171 = arith.maximumf %169, %170 : vector<1x64xf32>
    %172 = vector.extract_strided_slice %66 {offsets = [160, 0], sizes = [1, 64], strides = [1, 1]} : vector<208x64xf32> to vector<1x64xf32>
    %173 = vector.extract_strided_slice %66 {offsets = [161, 0], sizes = [1, 64], strides = [1, 1]} : vector<208x64xf32> to vector<1x64xf32>
    %174 = arith.maximumf %172, %173 : vector<1x64xf32>
    %175 = vector.extract_strided_slice %66 {offsets = [162, 0], sizes = [1, 64], strides = [1, 1]} : vector<208x64xf32> to vector<1x64xf32>
    %176 = vector.extract_strided_slice %66 {offsets = [163, 0], sizes = [1, 64], strides = [1, 1]} : vector<208x64xf32> to vector<1x64xf32>
    %177 = arith.maximumf %175, %176 : vector<1x64xf32>
    %178 = vector.extract_strided_slice %66 {offsets = [164, 0], sizes = [1, 64], strides = [1, 1]} : vector<208x64xf32> to vector<1x64xf32>
    %179 = vector.extract_strided_slice %66 {offsets = [165, 0], sizes = [1, 64], strides = [1, 1]} : vector<208x64xf32> to vector<1x64xf32>
    %180 = arith.maximumf %178, %179 : vector<1x64xf32>
    %181 = vector.extract_strided_slice %66 {offsets = [166, 0], sizes = [1, 64], strides = [1, 1]} : vector<208x64xf32> to vector<1x64xf32>
    %182 = vector.extract_strided_slice %66 {offsets = [167, 0], sizes = [1, 64], strides = [1, 1]} : vector<208x64xf32> to vector<1x64xf32>
    %183 = arith.maximumf %181, %182 : vector<1x64xf32>
    %184 = vector.extract_strided_slice %66 {offsets = [168, 0], sizes = [1, 64], strides = [1, 1]} : vector<208x64xf32> to vector<1x64xf32>
    %185 = vector.extract_strided_slice %66 {offsets = [169, 0], sizes = [1, 64], strides = [1, 1]} : vector<208x64xf32> to vector<1x64xf32>
    %186 = arith.maximumf %184, %185 : vector<1x64xf32>
    %187 = vector.extract_strided_slice %66 {offsets = [170, 0], sizes = [1, 64], strides = [1, 1]} : vector<208x64xf32> to vector<1x64xf32>
    %188 = vector.extract_strided_slice %66 {offsets = [171, 0], sizes = [1, 64], strides = [1, 1]} : vector<208x64xf32> to vector<1x64xf32>
    %189 = arith.maximumf %187, %188 : vector<1x64xf32>
    %190 = vector.extract_strided_slice %66 {offsets = [172, 0], sizes = [1, 64], strides = [1, 1]} : vector<208x64xf32> to vector<1x64xf32>
    %191 = vector.extract_strided_slice %66 {offsets = [173, 0], sizes = [1, 64], strides = [1, 1]} : vector<208x64xf32> to vector<1x64xf32>
    %192 = arith.maximumf %190, %191 : vector<1x64xf32>
    %193 = vector.extract_strided_slice %66 {offsets = [192, 0], sizes = [1, 64], strides = [1, 1]} : vector<208x64xf32> to vector<1x64xf32>
    %194 = vector.extract_strided_slice %66 {offsets = [193, 0], sizes = [1, 64], strides = [1, 1]} : vector<208x64xf32> to vector<1x64xf32>
    %195 = arith.maximumf %193, %194 : vector<1x64xf32>
    %196 = vector.extract_strided_slice %66 {offsets = [194, 0], sizes = [1, 64], strides = [1, 1]} : vector<208x64xf32> to vector<1x64xf32>
    %197 = vector.extract_strided_slice %66 {offsets = [195, 0], sizes = [1, 64], strides = [1, 1]} : vector<208x64xf32> to vector<1x64xf32>
    %198 = arith.maximumf %196, %197 : vector<1x64xf32>
    %199 = vector.extract_strided_slice %66 {offsets = [196, 0], sizes = [1, 64], strides = [1, 1]} : vector<208x64xf32> to vector<1x64xf32>
    %200 = vector.extract_strided_slice %66 {offsets = [197, 0], sizes = [1, 64], strides = [1, 1]} : vector<208x64xf32> to vector<1x64xf32>
    %201 = arith.maximumf %199, %200 : vector<1x64xf32>
    %202 = vector.extract_strided_slice %66 {offsets = [198, 0], sizes = [1, 64], strides = [1, 1]} : vector<208x64xf32> to vector<1x64xf32>
    %203 = vector.extract_strided_slice %66 {offsets = [199, 0], sizes = [1, 64], strides = [1, 1]} : vector<208x64xf32> to vector<1x64xf32>
    %204 = arith.maximumf %202, %203 : vector<1x64xf32>
    %205 = vector.extract_strided_slice %66 {offsets = [200, 0], sizes = [1, 64], strides = [1, 1]} : vector<208x64xf32> to vector<1x64xf32>
    %206 = vector.extract_strided_slice %66 {offsets = [201, 0], sizes = [1, 64], strides = [1, 1]} : vector<208x64xf32> to vector<1x64xf32>
    %207 = arith.maximumf %205, %206 : vector<1x64xf32>
    %208 = vector.extract_strided_slice %66 {offsets = [202, 0], sizes = [1, 64], strides = [1, 1]} : vector<208x64xf32> to vector<1x64xf32>
    %209 = vector.extract_strided_slice %66 {offsets = [203, 0], sizes = [1, 64], strides = [1, 1]} : vector<208x64xf32> to vector<1x64xf32>
    %210 = arith.maximumf %208, %209 : vector<1x64xf32>
    %211 = vector.extract_strided_slice %66 {offsets = [204, 0], sizes = [1, 64], strides = [1, 1]} : vector<208x64xf32> to vector<1x64xf32>
    %212 = vector.extract_strided_slice %66 {offsets = [205, 0], sizes = [1, 64], strides = [1, 1]} : vector<208x64xf32> to vector<1x64xf32>
    %213 = arith.maximumf %211, %212 : vector<1x64xf32>
    %214 = tpu.concatenate %69, %72, %75, %78, %81, %84, %87, %90, %93, %96, %99, %102, %105, %108, %111, %114 in 0 : vector<1x64xf32>, vector<1x64xf32>, vector<1x64xf32>, vector<1x64xf32>, vector<1x64xf32>, vector<1x64xf32>, vector<1x64xf32>, vector<1x64xf32>, vector<1x64xf32>, vector<1x64xf32>, vector<1x64xf32>, vector<1x64xf32>, vector<1x64xf32>, vector<1x64xf32>, vector<1x64xf32>, vector<1x64xf32> -> vector<16x64xf32>
    %215 = tpu.concatenate %117, %120, %123, %126, %129, %132, %135, %138, %141, %144, %147, %150, %153, %156, %159, %162 in 0 : vector<1x64xf32>, vector<1x64xf32>, vector<1x64xf32>, vector<1x64xf32>, vector<1x64xf32>, vector<1x64xf32>, vector<1x64xf32>, vector<1x64xf32>, vector<1x64xf32>, vector<1x64xf32>, vector<1x64xf32>, vector<1x64xf32>, vector<1x64xf32>, vector<1x64xf32>, vector<1x64xf32>, vector<1x64xf32> -> vector<16x64xf32>
    %216 = tpu.concatenate %165, %168, %171, %174, %177, %180, %183, %186, %189, %192, %195, %198, %201, %204, %207, %210 in 0 : vector<1x64xf32>, vector<1x64xf32>, vector<1x64xf32>, vector<1x64xf32>, vector<1x64xf32>, vector<1x64xf32>, vector<1x64xf32>, vector<1x64xf32>, vector<1x64xf32>, vector<1x64xf32>, vector<1x64xf32>, vector<1x64xf32>, vector<1x64xf32>, vector<1x64xf32>, vector<1x64xf32>, vector<1x64xf32> -> vector<16x64xf32>
    %217 = tpu.concatenate %214, %215, %216, %213 in 0 : vector<16x64xf32>, vector<16x64xf32>, vector<16x64xf32>, vector<1x64xf32> -> vector<49x64xf32>
    %218 = arith.truncf %217 : vector<49x64xf32> to vector<49x64xbf16>
    %c0_42 = arith.constant 0 : index
    %c0_43 = arith.constant 0 : index
    %c0_44 = arith.constant 0 : index
    %219 = vector.load %arg6[%c0_42, %c0_43, %c0_44] : memref<1x49x64xbf16, #tpu.memory_space<vmem>>, vector<1x49x64xbf16>
    %220 = vector.shape_cast %219 : vector<1x49x64xbf16> to vector<49x64xbf16>
    %221 = vector.shape_cast %218 : vector<49x64xbf16> to vector<1x49x64xbf16>
    tpu.vector_store %arg6[%c0_42, %c0_43, %c0_44], %221 {strides = array<i32>} : memref<1x49x64xbf16, #tpu.memory_space<vmem>>, vector<1x49x64xbf16>,
    return
  }
  func.func @transform_0(%arg0: i32) -> (i32, i32, i32) {
    %c0_i32 = arith.constant 0 : i32
    %c0_i32_0 = arith.constant 0 : i32
    %c0_i32_1 = arith.constant 0 : i32
    return %arg0, %c0_i32, %c0_i32_0 : i32, i32, i32
  }
  func.func @transform_1(%arg0: i32) -> (i32, i32) {
    %c0_i32 = arith.constant 0 : i32
    %c0_i32_0 = arith.constant 0 : i32
    %c0_i32_1 = arith.constant 0 : i32
    return %c0_i32, %c0_i32_0 : i32, i32
  }
  func.func @transform_2(%arg0: i32) -> (i32, i32) {
    %c0_i32 = arith.constant 0 : i32
    %c0_i32_0 = arith.constant 0 : i32
    %c0_i32_1 = arith.constant 0 : i32
    return %c0_i32, %c0_i32_0 : i32, i32
  }
  func.func @transform_3(%arg0: i32) -> (i32, i32) {
    %c0_i32 = arith.constant 0 : i32
    %c0_i32_0 = arith.constant 0 : i32
    %c0_i32_1 = arith.constant 0 : i32
    return %c0_i32, %c0_i32_0 : i32, i32
  }
  func.func @transform_4(%arg0: i32) -> (i32, i32) {
    %c0_i32 = arith.constant 0 : i32
    %c0_i32_0 = arith.constant 0 : i32
    %c0_i32_1 = arith.constant 0 : i32
    return %c0_i32, %c0_i32_0 : i32, i32
  }
  func.func @transform_5(%arg0: i32) -> (i32, i32, i32) {
    %c0_i32 = arith.constant 0 : i32
    %c0_i32_0 = arith.constant 0 : i32
    %c0_i32_1 = arith.constant 0 : i32
    return %arg0, %c0_i32, %c0_i32_0 : i32, i32, i32
  }
}

module attributes {stable_mosaic.version = 11 : i64} {
  func.func @_fc_kernel(%arg0: i32, %arg1: memref<2x3136xbf16, #tpu.memory_space<vmem>>, %arg2: memref<3136x128xbf16, #tpu.memory_space<vmem>>, %arg3: memref<1x128xf32, #tpu.memory_space<vmem>>, %arg4: memref<128x128xbf16, #tpu.memory_space<vmem>>, %arg5: memref<1x128xf32, #tpu.memory_space<vmem>>, %arg6: memref<2x128xf32, #tpu.memory_space<vmem>>) attributes {dimension_semantics = [#tpu.dimension_semantics<arbitrary>], iteration_bounds = array<i64: 1>, scalar_prefetch = 0 : i64, scratch_operands = 0 : i64, tpu.core_type = #tpu.core_type<tc>, window_params = [{pipeline_mode = #tpu.pipeline_mode<synchronous>, transform_indices = @transform_0, window_bounds = array<i64: 2, 3136>}, {pipeline_mode = #tpu.pipeline_mode<synchronous>, transform_indices = @transform_1, window_bounds = array<i64: 3136, 128>}, {pipeline_mode = #tpu.pipeline_mode<synchronous>, transform_indices = @transform_2, window_bounds = array<i64: 1, 128>}, {pipeline_mode = #tpu.pipeline_mode<synchronous>, transform_indices = @transform_3, window_bounds = array<i64: 128, 128>}, {pipeline_mode = #tpu.pipeline_mode<synchronous>, transform_indices = @transform_4, window_bounds = array<i64: 1, 128>}, {pipeline_mode = #tpu.pipeline_mode<synchronous>, transform_indices = @transform_5, window_bounds = array<i64: 2, 128>}]} {
    %c0 = arith.constant 0 : index
    %c0_0 = arith.constant 0 : index
    %0 = vector.load %arg1[%c0, %c0_0] : memref<2x3136xbf16, #tpu.memory_space<vmem>>, vector<2x3136xbf16>
    %c0_1 = arith.constant 0 : index
    %c0_2 = arith.constant 0 : index
    %1 = vector.load %arg2[%c0_1, %c0_2] : memref<3136x128xbf16, #tpu.memory_space<vmem>>, vector<3136x128xbf16>
    %cst = arith.constant dense<0.000000e+00> : vector<2x128xf32>
    %2 = tpu.matmul %0, %1, %cst {dimension_numbers = #tpu.dot_dimension_numbers<[1], [0], [0], [1], [0, 0, 1, 1], [], []>} : vector<2x3136xbf16>, vector<3136x128xbf16>, vector<2x128xf32> -> vector<2x128xf32>
    %c0_3 = arith.constant 0 : index
    %c0_4 = arith.constant 0 : index
    %3 = vector.load %arg3[%c0_3, %c0_4] : memref<1x128xf32, #tpu.memory_space<vmem>>, vector<1x128xf32>
    %4 = vector.broadcast %3 : vector<1x128xf32> to vector<2x128xf32>
    %5 = arith.addf %2, %4 : vector<2x128xf32>
    %cst_5 = arith.constant 0.000000e+00 : f32
    %6 = vector.broadcast %cst_5 : f32 to vector<2x128xf32>
    %7 = arith.maximumf %5, %6 : vector<2x128xf32>
    %8 = arith.truncf %7 : vector<2x128xf32> to vector<2x128xbf16>
    %c0_6 = arith.constant 0 : index
    %c0_7 = arith.constant 0 : index
    %9 = vector.load %arg4[%c0_6, %c0_7] : memref<128x128xbf16, #tpu.memory_space<vmem>>, vector<128x128xbf16>
    %cst_8 = arith.constant dense<0.000000e+00> : vector<2x128xf32>
    %10 = tpu.matmul %8, %9, %cst_8 {dimension_numbers = #tpu.dot_dimension_numbers<[1], [0], [0], [1], [0, 0, 1, 1], [], []>} : vector<2x128xbf16>, vector<128x128xbf16>, vector<2x128xf32> -> vector<2x128xf32>
    %c0_9 = arith.constant 0 : index
    %c0_10 = arith.constant 0 : index
    %11 = vector.load %arg5[%c0_9, %c0_10] : memref<1x128xf32, #tpu.memory_space<vmem>>, vector<1x128xf32>
    %12 = vector.broadcast %11 : vector<1x128xf32> to vector<2x128xf32>
    %13 = arith.addf %10, %12 : vector<2x128xf32>
    %c0_11 = arith.constant 0 : index
    %c0_12 = arith.constant 0 : index
    %14 = vector.load %arg6[%c0_11, %c0_12] : memref<2x128xf32, #tpu.memory_space<vmem>>, vector<2x128xf32>
    tpu.vector_store %arg6[%c0_11, %c0_12], %13 {strides = array<i32>} : memref<2x128xf32, #tpu.memory_space<vmem>>, vector<2x128xf32>,
    return
  }
  func.func @transform_0(%arg0: i32) -> (i32, i32) {
    %c0_i32 = arith.constant 0 : i32
    %c0_i32_0 = arith.constant 0 : i32
    %c0_i32_1 = arith.constant 0 : i32
    return %c0_i32, %c0_i32_0 : i32, i32
  }
  func.func @transform_1(%arg0: i32) -> (i32, i32) {
    %c0_i32 = arith.constant 0 : i32
    %c0_i32_0 = arith.constant 0 : i32
    %c0_i32_1 = arith.constant 0 : i32
    return %c0_i32, %c0_i32_0 : i32, i32
  }
  func.func @transform_2(%arg0: i32) -> (i32, i32) {
    %c0_i32 = arith.constant 0 : i32
    %c0_i32_0 = arith.constant 0 : i32
    %c0_i32_1 = arith.constant 0 : i32
    return %c0_i32, %c0_i32_0 : i32, i32
  }
  func.func @transform_3(%arg0: i32) -> (i32, i32) {
    %c0_i32 = arith.constant 0 : i32
    %c0_i32_0 = arith.constant 0 : i32
    %c0_i32_1 = arith.constant 0 : i32
    return %c0_i32, %c0_i32_0 : i32, i32
  }
  func.func @transform_4(%arg0: i32) -> (i32, i32) {
    %c0_i32 = arith.constant 0 : i32
    %c0_i32_0 = arith.constant 0 : i32
    %c0_i32_1 = arith.constant 0 : i32
    return %c0_i32, %c0_i32_0 : i32, i32
  }
  func.func @transform_5(%arg0: i32) -> (i32, i32) {
    %c0_i32 = arith.constant 0 : i32
    %c0_i32_0 = arith.constant 0 : i32
    %c0_i32_1 = arith.constant 0 : i32
    return %c0_i32, %c0_i32_0 : i32, i32
  }
}

</mosaic_0001>

<llo_original>
// kernel: mnist_forward.3
$region0: #{mnist_forward.3}
  #allocation0 [shape = 'u32[]', space=smem, size = 0x4, offset = 0x4, fixed_abs, tag = 'smem constant byte address 0x4 - core index']
  #allocation1 [shape = 'u32[72,128]{1,0:T(1,128)}', space=vmem, size = 0x9000, scoped, tag = 'internal scratch']
  %s0 = inlined_call_operand.vmem [shape: bf16[2,3136], index: 0, kind: input, shape index: {}]
  %s1 = inlined_call_operand.vmem [shape: bf16[3136,128], index: 1, kind: input, shape index: {}]
  %s2 = inlined_call_operand.vmem [shape: f32[1,128], index: 2, kind: input, shape index: {}]
  %s3 = inlined_call_operand.vmem [shape: bf16[128,128], index: 3, kind: input, shape index: {}]
  %s4 = inlined_call_operand.vmem [shape: f32[1,128], index: 4, kind: input, shape index: {}]
  %s5 = inlined_call_operand.hbm [shape: f32[2,128], index: 5, kind: output, shape index: {}]
  %s6 = sld [smem:[#allocation0]]
  $region30: #{mnist_forward.3} parent=0
    _
  %s8 = ssub.s32 1, %s6
  %s9 = scalar_select 0, %s8, %s6
  $region1: #{mnist_forward.3} parent=0
    #allocation2 [shape = 'u8[1024]{0}', space=vmem, size = 0x400, scoped, tag = 'output window, operand 0, single buffered']
    #allocation3 [shape = 's32[1]{0}', space=sflag, size = 0x4, scoped, tag = 'scoped memory for mnist_forward.3']
    %10 = vsyncpa [#allocation3], 0
    // Predicated region
    $region2: #{mnist_forward.3} parent=1 // pred_check
      _
    $region3: #{mnist_forward.3} parent=1 // pred_check_branch
      %12 = sbr.rel (0) target = $region5
    $region4: #{mnist_forward.3} parent=1 // pred_region
      _
    $region5: #{mnist_forward.3} parent=1 // pred_fallthru
      _
    // Predicated region
    $region6: #{mnist_forward.3} parent=1 // pred_check
      _
    $region7: #{mnist_forward.3} parent=1 // pred_check_branch
      %14 = sbr.rel (0) target = $region9
    $region8: #{mnist_forward.3} parent=1 // pred_region
      _
    $region9: #{mnist_forward.3} parent=1 // pred_fallthru
      _
    // Predicated region
    $region10: #{mnist_forward.3} parent=1 // pred_check
      _
    $region11: #{mnist_forward.3} parent=1 // pred_check_branch
      %16 = sbr.rel (0) target = $region13
    $region12: #{mnist_forward.3} parent=1 // pred_region
      _
    $region13: #{mnist_forward.3} parent=1 // pred_fallthru
      _
    // Predicated region
    $region14: #{mnist_forward.3} parent=1 // pred_check
      _
    $region15: #{mnist_forward.3} parent=1 // pred_check_branch
      %18 = sbr.rel (0) target = $region17
    $region16: #{mnist_forward.3} parent=1 // pred_region
      _
    $region17: #{mnist_forward.3} parent=1 // pred_fallthru
      _
    // Predicated region
    $region18: #{mnist_forward.3} parent=1 // pred_check
      _
    $region19: #{mnist_forward.3} parent=1 // pred_check_branch
      %20 = sbr.rel (0) target = $region21
    $region20: #{mnist_forward.3} parent=1 // pred_region
      _
    $region21: #{mnist_forward.3} parent=1 // pred_fallthru
      _
    %v22 = vld [vmem:[%s0] sm:$0xff]
    %v23 = vld [vmem:[%s0 + $0x8] sm:$0xff]
    %v24 = vld [vmem:[%s0 + $0x10] sm:$0xff]
    %v25 = vld [vmem:[%s0 + $0x18] sm:$0x1]
    %v26 = vld [vmem:[%s1] sm:$0xf]
    %v27 = vld [vmem:[%s1 + $0x4] sm:$0xf]
    %v28 = vld [vmem:[%s1 + $0x8] sm:$0xf]
    %v29 = vld [vmem:[%s1 + $0xc] sm:$0xf]
    %v30 = vld [vmem:[%s1 + $0x10] sm:$0xf]
    %v31 = vld [vmem:[%s1 + $0x14] sm:$0xf]
    %v32 = vld [vmem:[%s1 + $0x18] sm:$0xf]
    %v33 = vld [vmem:[%s1 + $0x1c] sm:$0xf]
    %v34 = vld [vmem:[%s1 + $0x20] sm:$0xf]
    %v35 = vld [vmem:[%s1 + $0x24] sm:$0xf]
    %v36 = vld [vmem:[%s1 + $0x28] sm:$0xf]
    %v37 = vld [vmem:[%s1 + $0x2c] sm:$0xf]
    %v38 = vld [vmem:[%s1 + $0x30] sm:$0xf]
    %v39 = vld [vmem:[%s1 + $0x34] sm:$0xf]
    %v40 = vld [vmem:[%s1 + $0x38] sm:$0xf]
    %v41 = vld [vmem:[%s1 + $0x3c] sm:$0xf]
    %v42 = vld [vmem:[%s1 + $0x40] sm:$0xf]
    %v43 = vld [vmem:[%s1 + $0x44] sm:$0xf]
    %v44 = vld [vmem:[%s1 + $0x48] sm:$0xf]
    %v45 = vld [vmem:[%s1 + $0x4c] sm:$0xf]
    %v46 = vld [vmem:[%s1 + $0x50] sm:$0xf]
    %v47 = vld [vmem:[%s1 + $0x54] sm:$0xf]
    %v48 = vld [vmem:[%s1 + $0x58] sm:$0xf]
    %v49 = vld [vmem:[%s1 + $0x5c] sm:$0xf]
    %v50 = vld [vmem:[%s1 + $0x60] sm:$0xf]
    %v51 = vld [vmem:[%s1 + $0x64] sm:$0xf]
    %v52 = vld [vmem:[%s1 + $0x68] sm:$0xf]
    %v53 = vld [vmem:[%s1 + $0x6c] sm:$0xf]
    %v54 = vld [vmem:[%s1 + $0x70] sm:$0xf]
    %v55 = vld [vmem:[%s1 + $0x74] sm:$0xf]
    %v56 = vld [vmem:[%s1 + $0x78] sm:$0xf]
    %v57 = vld [vmem:[%s1 + $0x7c] sm:$0xf]
    %v58 = vld [vmem:[%s1 + $0x80] sm:$0xf]
    %v59 = vld [vmem:[%s1 + $0x84] sm:$0xf]
    %v60 = vld [vmem:[%s1 + $0x88] sm:$0xf]
    %v61 = vld [vmem:[%s1 + $0x8c] sm:$0xf]
    %v62 = vld [vmem:[%s1 + $0x90] sm:$0xf]
    %v63 = vld [vmem:[%s1 + $0x94] sm:$0xf]
    %v64 = vld [vmem:[%s1 + $0x98] sm:$0xf]
    %v65 = vld [vmem:[%s1 + $0x9c] sm:$0xf]
    %v66 = vld [vmem:[%s1 + $0xa0] sm:$0xf]
    %v67 = vld [vmem:[%s1 + $0xa4] sm:$0xf]
    %v68 = vld [vmem:[%s1 + $0xa8] sm:$0xf]
    %v69 = vld [vmem:[%s1 + $0xac] sm:$0xf]
    %v70 = vld [vmem:[%s1 + $0xb0] sm:$0xf]
    %v71 = vld [vmem:[%s1 + $0xb4] sm:$0xf]
    %v72 = vld [vmem:[%s1 + $0xb8] sm:$0xf]
    %v73 = vld [vmem:[%s1 + $0xbc] sm:$0xf]
    %v74 = vld [vmem:[%s1 + $0xc0] sm:$0xf]
    %v75 = vld [vmem:[%s1 + $0xc4] sm:$0xf]
    %v76 = vld [vmem:[%s1 + $0xc8] sm:$0xf]
    %v77 = vld [vmem:[%s1 + $0xcc] sm:$0xf]
    %v78 = vld [vmem:[%s1 + $0xd0] sm:$0xf]
    %v79 = vld [vmem:[%s1 + $0xd4] sm:$0xf]
    %v80 = vld [vmem:[%s1 + $0xd8] sm:$0xf]
    %v81 = vld [vmem:[%s1 + $0xdc] sm:$0xf]
    %v82 = vld [vmem:[%s1 + $0xe0] sm:$0xf]
    %v83 = vld [vmem:[%s1 + $0xe4] sm:$0xf]
    %v84 = vld [vmem:[%s1 + $0xe8] sm:$0xf]
    %v85 = vld [vmem:[%s1 + $0xec] sm:$0xf]
    %v86 = vld [vmem:[%s1 + $0xf0] sm:$0xf]
    %v87 = vld [vmem:[%s1 + $0xf4] sm:$0xf]
    %v88 = vld [vmem:[%s1 + $0xf8] sm:$0xf]
    %v89 = vld [vmem:[%s1 + $0xfc] sm:$0xf]
    %v90 = vld [vmem:[%s1 + $0x100] sm:$0xf]
    %v91 = vld [vmem:[%s1 + $0x104] sm:$0xf]
    %v92 = vld [vmem:[%s1 + $0x108] sm:$0xf]
    %v93 = vld [vmem:[%s1 + $0x10c] sm:$0xf]
    %v94 = vld [vmem:[%s1 + $0x110] sm:$0xf]
    %v95 = vld [vmem:[%s1 + $0x114] sm:$0xf]
    %v96 = vld [vmem:[%s1 + $0x118] sm:$0xf]
    %v97 = vld [vmem:[%s1 + $0x11c] sm:$0xf]
    %v98 = vld [vmem:[%s1 + $0x120] sm:$0xf]
    %v99 = vld [vmem:[%s1 + $0x124] sm:$0xf]
    %v100 = vld [vmem:[%s1 + $0x128] sm:$0xf]
    %v101 = vld [vmem:[%s1 + $0x12c] sm:$0xf]
    %v102 = vld [vmem:[%s1 + $0x130] sm:$0xf]
    %v103 = vld [vmem:[%s1 + $0x134] sm:$0xf]
    %v104 = vld [vmem:[%s1 + $0x138] sm:$0xf]
    %v105 = vld [vmem:[%s1 + $0x13c] sm:$0xf]
    %v106 = vld [vmem:[%s1 + $0x140] sm:$0xf]
    %v107 = vld [vmem:[%s1 + $0x144] sm:$0xf]
    %v108 = vld [vmem:[%s1 + $0x148] sm:$0xf]
    %v109 = vld [vmem:[%s1 + $0x14c] sm:$0xf]
    %v110 = vld [vmem:[%s1 + $0x150] sm:$0xf]
    %v111 = vld [vmem:[%s1 + $0x154] sm:$0xf]
    %v112 = vld [vmem:[%s1 + $0x158] sm:$0xf]
    %v113 = vld [vmem:[%s1 + $0x15c] sm:$0xf]
    %v114 = vld [vmem:[%s1 + $0x160] sm:$0xf]
    %v115 = vld [vmem:[%s1 + $0x164] sm:$0xf]
    %v116 = vld [vmem:[%s1 + $0x168] sm:$0xf]
    %v117 = vld [vmem:[%s1 + $0x16c] sm:$0xf]
    %v118 = vld [vmem:[%s1 + $0x170] sm:$0xf]
    %v119 = vld [vmem:[%s1 + $0x174] sm:$0xf]
    %v120 = vld [vmem:[%s1 + $0x178] sm:$0xf]
    %v121 = vld [vmem:[%s1 + $0x17c] sm:$0xf]
    %v122 = vld [vmem:[%s1 + $0x180] sm:$0xf]
    %v123 = vld [vmem:[%s1 + $0x184] sm:$0xf]
    %v124 = vld [vmem:[%s1 + $0x188] sm:$0xf]
    %v125 = vld [vmem:[%s1 + $0x18c] sm:$0xf]
    %v126 = vld [vmem:[%s1 + $0x190] sm:$0xf]
    %v127 = vld [vmem:[%s1 + $0x194] sm:$0xf]
    %v128 = vld [vmem:[%s1 + $0x198] sm:$0xf]
    %v129 = vld [vmem:[%s1 + $0x19c] sm:$0xf]
    %v130 = vld [vmem:[%s1 + $0x1a0] sm:$0xf]
    %v131 = vld [vmem:[%s1 + $0x1a4] sm:$0xf]
    %v132 = vld [vmem:[%s1 + $0x1a8] sm:$0xf]
    %v133 = vld [vmem:[%s1 + $0x1ac] sm:$0xf]
    %v134 = vld [vmem:[%s1 + $0x1b0] sm:$0xf]
    %v135 = vld [vmem:[%s1 + $0x1b4] sm:$0xf]
    %v136 = vld [vmem:[%s1 + $0x1b8] sm:$0xf]
    %v137 = vld [vmem:[%s1 + $0x1bc] sm:$0xf]
    %v138 = vld [vmem:[%s1 + $0x1c0] sm:$0xf]
    %v139 = vld [vmem:[%s1 + $0x1c4] sm:$0xf]
    %v140 = vld [vmem:[%s1 + $0x1c8] sm:$0xf]
    %v141 = vld [vmem:[%s1 + $0x1cc] sm:$0xf]
    %v142 = vld [vmem:[%s1 + $0x1d0] sm:$0xf]
    %v143 = vld [vmem:[%s1 + $0x1d4] sm:$0xf]
    %v144 = vld [vmem:[%s1 + $0x1d8] sm:$0xf]
    %v145 = vld [vmem:[%s1 + $0x1dc] sm:$0xf]
    %v146 = vld [vmem:[%s1 + $0x1e0] sm:$0xf]
    %v147 = vld [vmem:[%s1 + $0x1e4] sm:$0xf]
    %v148 = vld [vmem:[%s1 + $0x1e8] sm:$0xf]
    %v149 = vld [vmem:[%s1 + $0x1ec] sm:$0xf]
    %v150 = vld [vmem:[%s1 + $0x1f0] sm:$0xf]
    %v151 = vld [vmem:[%s1 + $0x1f4] sm:$0xf]
    %v152 = vld [vmem:[%s1 + $0x1f8] sm:$0xf]
    %v153 = vld [vmem:[%s1 + $0x1fc] sm:$0xf]
    %v154 = vld [vmem:[%s1 + $0x200] sm:$0xf]
    %v155 = vld [vmem:[%s1 + $0x204] sm:$0xf]
    %v156 = vld [vmem:[%s1 + $0x208] sm:$0xf]
    %v157 = vld [vmem:[%s1 + $0x20c] sm:$0xf]
    %v158 = vld [vmem:[%s1 + $0x210] sm:$0xf]
    %v159 = vld [vmem:[%s1 + $0x214] sm:$0xf]
    %v160 = vld [vmem:[%s1 + $0x218] sm:$0xf]
    %v161 = vld [vmem:[%s1 + $0x21c] sm:$0xf]
    %v162 = vld [vmem:[%s1 + $0x220] sm:$0xf]
    %v163 = vld [vmem:[%s1 + $0x224] sm:$0xf]
    %v164 = vld [vmem:[%s1 + $0x228] sm:$0xf]
    %v165 = vld [vmem:[%s1 + $0x22c] sm:$0xf]
    %v166 = vld [vmem:[%s1 + $0x230] sm:$0xf]
    %v167 = vld [vmem:[%s1 + $0x234] sm:$0xf]
    %v168 = vld [vmem:[%s1 + $0x238] sm:$0xf]
    %v169 = vld [vmem:[%s1 + $0x23c] sm:$0xf]
    %v170 = vld [vmem:[%s1 + $0x240] sm:$0xf]
    %v171 = vld [vmem:[%s1 + $0x244] sm:$0xf]
    %v172 = vld [vmem:[%s1 + $0x248] sm:$0xf]
    %v173 = vld [vmem:[%s1 + $0x24c] sm:$0xf]
    %v174 = vld [vmem:[%s1 + $0x250] sm:$0xf]
    %v175 = vld [vmem:[%s1 + $0x254] sm:$0xf]
    %v176 = vld [vmem:[%s1 + $0x258] sm:$0xf]
    %v177 = vld [vmem:[%s1 + $0x25c] sm:$0xf]
    %v178 = vld [vmem:[%s1 + $0x260] sm:$0xf]
    %v179 = vld [vmem:[%s1 + $0x264] sm:$0xf]
    %v180 = vld [vmem:[%s1 + $0x268] sm:$0xf]
    %v181 = vld [vmem:[%s1 + $0x26c] sm:$0xf]
    %v182 = vld [vmem:[%s1 + $0x270] sm:$0xf]
    %v183 = vld [vmem:[%s1 + $0x274] sm:$0xf]
    %v184 = vld [vmem:[%s1 + $0x278] sm:$0xf]
    %v185 = vld [vmem:[%s1 + $0x27c] sm:$0xf]
    %v186 = vld [vmem:[%s1 + $0x280] sm:$0xf]
    %v187 = vld [vmem:[%s1 + $0x284] sm:$0xf]
    %v188 = vld [vmem:[%s1 + $0x288] sm:$0xf]
    %v189 = vld [vmem:[%s1 + $0x28c] sm:$0xf]
    %v190 = vld [vmem:[%s1 + $0x290] sm:$0xf]
    %v191 = vld [vmem:[%s1 + $0x294] sm:$0xf]
    %v192 = vld [vmem:[%s1 + $0x298] sm:$0xf]
    %v193 = vld [vmem:[%s1 + $0x29c] sm:$0xf]
    %v194 = vld [vmem:[%s1 + $0x2a0] sm:$0xf]
    %v195 = vld [vmem:[%s1 + $0x2a4] sm:$0xf]
    %v196 = vld [vmem:[%s1 + $0x2a8] sm:$0xf]
    %v197 = vld [vmem:[%s1 + $0x2ac] sm:$0xf]
    %v198 = vld [vmem:[%s1 + $0x2b0] sm:$0xf]
    %v199 = vld [vmem:[%s1 + $0x2b4] sm:$0xf]
    %v200 = vld [vmem:[%s1 + $0x2b8] sm:$0xf]
    %v201 = vld [vmem:[%s1 + $0x2bc] sm:$0xf]
    %v202 = vld [vmem:[%s1 + $0x2c0] sm:$0xf]
    %v203 = vld [vmem:[%s1 + $0x2c4] sm:$0xf]
    %v204 = vld [vmem:[%s1 + $0x2c8] sm:$0xf]
    %v205 = vld [vmem:[%s1 + $0x2cc] sm:$0xf]
    %v206 = vld [vmem:[%s1 + $0x2d0] sm:$0xf]
    %v207 = vld [vmem:[%s1 + $0x2d4] sm:$0xf]
    %v208 = vld [vmem:[%s1 + $0x2d8] sm:$0xf]
    %v209 = vld [vmem:[%s1 + $0x2dc] sm:$0xf]
    %v210 = vld [vmem:[%s1 + $0x2e0] sm:$0xf]
    %v211 = vld [vmem:[%s1 + $0x2e4] sm:$0xf]
    %v212 = vld [vmem:[%s1 + $0x2e8] sm:$0xf]
    %v213 = vld [vmem:[%s1 + $0x2ec] sm:$0xf]
    %v214 = vld [vmem:[%s1 + $0x2f0] sm:$0xf]
    %v215 = vld [vmem:[%s1 + $0x2f4] sm:$0xf]
    %v216 = vld [vmem:[%s1 + $0x2f8] sm:$0xf]
    %v217 = vld [vmem:[%s1 + $0x2fc] sm:$0xf]
    %v218 = vld [vmem:[%s1 + $0x300] sm:$0xf]
    %v219 = vld [vmem:[%s1 + $0x304] sm:$0xf]
    %v220 = vld [vmem:[%s1 + $0x308] sm:$0xf]
    %v221 = vld [vmem:[%s1 + $0x30c] sm:$0xf]
    %v222 = vld [vmem:[%s1 + $0x310] sm:$0xf]
    %v223 = vld [vmem:[%s1 + $0x314] sm:$0xf]
    %v224 = vld [vmem:[%s1 + $0x318] sm:$0xf]
    %v225 = vld [vmem:[%s1 + $0x31c] sm:$0xf]
    %v226 = vld [vmem:[%s1 + $0x320] sm:$0xf]
    %v227 = vld [vmem:[%s1 + $0x324] sm:$0xf]
    %v228 = vld [vmem:[%s1 + $0x328] sm:$0xf]
    %v229 = vld [vmem:[%s1 + $0x32c] sm:$0xf]
    %v230 = vld [vmem:[%s1 + $0x330] sm:$0xf]
    %v231 = vld [vmem:[%s1 + $0x334] sm:$0xf]
    %v232 = vld [vmem:[%s1 + $0x338] sm:$0xf]
    %v233 = vld [vmem:[%s1 + $0x33c] sm:$0xf]
    %v234 = vld [vmem:[%s1 + $0x340] sm:$0xf]
    %v235 = vld [vmem:[%s1 + $0x344] sm:$0xf]
    %v236 = vld [vmem:[%s1 + $0x348] sm:$0xf]
    %v237 = vld [vmem:[%s1 + $0x34c] sm:$0xf]
    %v238 = vld [vmem:[%s1 + $0x350] sm:$0xf]
    %v239 = vld [vmem:[%s1 + $0x354] sm:$0xf]
    %v240 = vld [vmem:[%s1 + $0x358] sm:$0xf]
    %v241 = vld [vmem:[%s1 + $0x35c] sm:$0xf]
    %v242 = vld [vmem:[%s1 + $0x360] sm:$0xf]
    %v243 = vld [vmem:[%s1 + $0x364] sm:$0xf]
    %v244 = vld [vmem:[%s1 + $0x368] sm:$0xf]
    %v245 = vld [vmem:[%s1 + $0x36c] sm:$0xf]
    %v246 = vld [vmem:[%s1 + $0x370] sm:$0xf]
    %v247 = vld [vmem:[%s1 + $0x374] sm:$0xf]
    %v248 = vld [vmem:[%s1 + $0x378] sm:$0xf]
    %v249 = vld [vmem:[%s1 + $0x37c] sm:$0xf]
    %v250 = vld [vmem:[%s1 + $0x380] sm:$0xf]
    %v251 = vld [vmem:[%s1 + $0x384] sm:$0xf]
    %v252 = vld [vmem:[%s1 + $0x388] sm:$0xf]
    %v253 = vld [vmem:[%s1 + $0x38c] sm:$0xf]
    %v254 = vld [vmem:[%s1 + $0x390] sm:$0xf]
    %v255 = vld [vmem:[%s1 + $0x394] sm:$0xf]
    %v256 = vld [vmem:[%s1 + $0x398] sm:$0xf]
    %v257 = vld [vmem:[%s1 + $0x39c] sm:$0xf]
    %v258 = vld [vmem:[%s1 + $0x3a0] sm:$0xf]
    %v259 = vld [vmem:[%s1 + $0x3a4] sm:$0xf]
    %v260 = vld [vmem:[%s1 + $0x3a8] sm:$0xf]
    %v261 = vld [vmem:[%s1 + $0x3ac] sm:$0xf]
    %v262 = vld [vmem:[%s1 + $0x3b0] sm:$0xf]
    %v263 = vld [vmem:[%s1 + $0x3b4] sm:$0xf]
    %v264 = vld [vmem:[%s1 + $0x3b8] sm:$0xf]
    %v265 = vld [vmem:[%s1 + $0x3bc] sm:$0xf]
    %v266 = vld [vmem:[%s1 + $0x3c0] sm:$0xf]
    %v267 = vld [vmem:[%s1 + $0x3c4] sm:$0xf]
    %v268 = vld [vmem:[%s1 + $0x3c8] sm:$0xf]
    %v269 = vld [vmem:[%s1 + $0x3cc] sm:$0xf]
    %v270 = vld [vmem:[%s1 + $0x3d0] sm:$0xf]
    %v271 = vld [vmem:[%s1 + $0x3d4] sm:$0xf]
    %v272 = vld [vmem:[%s1 + $0x3d8] sm:$0xf]
    %v273 = vld [vmem:[%s1 + $0x3dc] sm:$0xf]
    %v274 = vld [vmem:[%s1 + $0x3e0] sm:$0xf]
    %v275 = vld [vmem:[%s1 + $0x3e4] sm:$0xf]
    %v276 = vld [vmem:[%s1 + $0x3e8] sm:$0xf]
    %v277 = vld [vmem:[%s1 + $0x3ec] sm:$0xf]
    %v278 = vld [vmem:[%s1 + $0x3f0] sm:$0xf]
    %v279 = vld [vmem:[%s1 + $0x3f4] sm:$0xf]
    %v280 = vld [vmem:[%s1 + $0x3f8] sm:$0xf]
    %v281 = vld [vmem:[%s1 + $0x3fc] sm:$0xf]
    %v282 = vld [vmem:[%s1 + $0x400] sm:$0xf]
    %v283 = vld [vmem:[%s1 + $0x404] sm:$0xf]
    %v284 = vld [vmem:[%s1 + $0x408] sm:$0xf]
    %v285 = vld [vmem:[%s1 + $0x40c] sm:$0xf]
    %v286 = vld [vmem:[%s1 + $0x410] sm:$0xf]
    %v287 = vld [vmem:[%s1 + $0x414] sm:$0xf]
    %v288 = vld [vmem:[%s1 + $0x418] sm:$0xf]
    %v289 = vld [vmem:[%s1 + $0x41c] sm:$0xf]
    %v290 = vld [vmem:[%s1 + $0x420] sm:$0xf]
    %v291 = vld [vmem:[%s1 + $0x424] sm:$0xf]
    %v292 = vld [vmem:[%s1 + $0x428] sm:$0xf]
    %v293 = vld [vmem:[%s1 + $0x42c] sm:$0xf]
    %v294 = vld [vmem:[%s1 + $0x430] sm:$0xf]
    %v295 = vld [vmem:[%s1 + $0x434] sm:$0xf]
    %v296 = vld [vmem:[%s1 + $0x438] sm:$0xf]
    %v297 = vld [vmem:[%s1 + $0x43c] sm:$0xf]
    %v298 = vld [vmem:[%s1 + $0x440] sm:$0xf]
    %v299 = vld [vmem:[%s1 + $0x444] sm:$0xf]
    %v300 = vld [vmem:[%s1 + $0x448] sm:$0xf]
    %v301 = vld [vmem:[%s1 + $0x44c] sm:$0xf]
    %v302 = vld [vmem:[%s1 + $0x450] sm:$0xf]
    %v303 = vld [vmem:[%s1 + $0x454] sm:$0xf]
    %v304 = vld [vmem:[%s1 + $0x458] sm:$0xf]
    %v305 = vld [vmem:[%s1 + $0x45c] sm:$0xf]
    %v306 = vld [vmem:[%s1 + $0x460] sm:$0xf]
    %v307 = vld [vmem:[%s1 + $0x464] sm:$0xf]
    %v308 = vld [vmem:[%s1 + $0x468] sm:$0xf]
    %v309 = vld [vmem:[%s1 + $0x46c] sm:$0xf]
    %v310 = vld [vmem:[%s1 + $0x470] sm:$0xf]
    %v311 = vld [vmem:[%s1 + $0x474] sm:$0xf]
    %v312 = vld [vmem:[%s1 + $0x478] sm:$0xf]
    %v313 = vld [vmem:[%s1 + $0x47c] sm:$0xf]
    %v314 = vld [vmem:[%s1 + $0x480] sm:$0xf]
    %v315 = vld [vmem:[%s1 + $0x484] sm:$0xf]
    %v316 = vld [vmem:[%s1 + $0x488] sm:$0xf]
    %v317 = vld [vmem:[%s1 + $0x48c] sm:$0xf]
    %v318 = vld [vmem:[%s1 + $0x490] sm:$0xf]
    %v319 = vld [vmem:[%s1 + $0x494] sm:$0xf]
    %v320 = vld [vmem:[%s1 + $0x498] sm:$0xf]
    %v321 = vld [vmem:[%s1 + $0x49c] sm:$0xf]
    %v322 = vld [vmem:[%s1 + $0x4a0] sm:$0xf]
    %v323 = vld [vmem:[%s1 + $0x4a4] sm:$0xf]
    %v324 = vld [vmem:[%s1 + $0x4a8] sm:$0xf]
    %v325 = vld [vmem:[%s1 + $0x4ac] sm:$0xf]
    %v326 = vld [vmem:[%s1 + $0x4b0] sm:$0xf]
    %v327 = vld [vmem:[%s1 + $0x4b4] sm:$0xf]
    %v328 = vld [vmem:[%s1 + $0x4b8] sm:$0xf]
    %v329 = vld [vmem:[%s1 + $0x4bc] sm:$0xf]
    %v330 = vld [vmem:[%s1 + $0x4c0] sm:$0xf]
    %v331 = vld [vmem:[%s1 + $0x4c4] sm:$0xf]
    %v332 = vld [vmem:[%s1 + $0x4c8] sm:$0xf]
    %v333 = vld [vmem:[%s1 + $0x4cc] sm:$0xf]
    %v334 = vld [vmem:[%s1 + $0x4d0] sm:$0xf]
    %v335 = vld [vmem:[%s1 + $0x4d4] sm:$0xf]
    %v336 = vld [vmem:[%s1 + $0x4d8] sm:$0xf]
    %v337 = vld [vmem:[%s1 + $0x4dc] sm:$0xf]
    %v338 = vld [vmem:[%s1 + $0x4e0] sm:$0xf]
    %v339 = vld [vmem:[%s1 + $0x4e4] sm:$0xf]
    %v340 = vld [vmem:[%s1 + $0x4e8] sm:$0xf]
    %v341 = vld [vmem:[%s1 + $0x4ec] sm:$0xf]
    %v342 = vld [vmem:[%s1 + $0x4f0] sm:$0xf]
    %v343 = vld [vmem:[%s1 + $0x4f4] sm:$0xf]
    %v344 = vld [vmem:[%s1 + $0x4f8] sm:$0xf]
    %v345 = vld [vmem:[%s1 + $0x4fc] sm:$0xf]
    %v346 = vld [vmem:[%s1 + $0x500] sm:$0xf]
    %v347 = vld [vmem:[%s1 + $0x504] sm:$0xf]
    %v348 = vld [vmem:[%s1 + $0x508] sm:$0xf]
    %v349 = vld [vmem:[%s1 + $0x50c] sm:$0xf]
    %v350 = vld [vmem:[%s1 + $0x510] sm:$0xf]
    %v351 = vld [vmem:[%s1 + $0x514] sm:$0xf]
    %v352 = vld [vmem:[%s1 + $0x518] sm:$0xf]
    %v353 = vld [vmem:[%s1 + $0x51c] sm:$0xf]
    %v354 = vld [vmem:[%s1 + $0x520] sm:$0xf]
    %v355 = vld [vmem:[%s1 + $0x524] sm:$0xf]
    %v356 = vld [vmem:[%s1 + $0x528] sm:$0xf]
    %v357 = vld [vmem:[%s1 + $0x52c] sm:$0xf]
    %v358 = vld [vmem:[%s1 + $0x530] sm:$0xf]
    %v359 = vld [vmem:[%s1 + $0x534] sm:$0xf]
    %v360 = vld [vmem:[%s1 + $0x538] sm:$0xf]
    %v361 = vld [vmem:[%s1 + $0x53c] sm:$0xf]
    %v362 = vld [vmem:[%s1 + $0x540] sm:$0xf]
    %v363 = vld [vmem:[%s1 + $0x544] sm:$0xf]
    %v364 = vld [vmem:[%s1 + $0x548] sm:$0xf]
    %v365 = vld [vmem:[%s1 + $0x54c] sm:$0xf]
    %v366 = vld [vmem:[%s1 + $0x550] sm:$0xf]
    %v367 = vld [vmem:[%s1 + $0x554] sm:$0xf]
    %v368 = vld [vmem:[%s1 + $0x558] sm:$0xf]
    %v369 = vld [vmem:[%s1 + $0x55c] sm:$0xf]
    %v370 = vld [vmem:[%s1 + $0x560] sm:$0xf]
    %v371 = vld [vmem:[%s1 + $0x564] sm:$0xf]
    %v372 = vld [vmem:[%s1 + $0x568] sm:$0xf]
    %v373 = vld [vmem:[%s1 + $0x56c] sm:$0xf]
    %v374 = vld [vmem:[%s1 + $0x570] sm:$0xf]
    %v375 = vld [vmem:[%s1 + $0x574] sm:$0xf]
    %v376 = vld [vmem:[%s1 + $0x578] sm:$0xf]
    %v377 = vld [vmem:[%s1 + $0x57c] sm:$0xf]
    %v378 = vld [vmem:[%s1 + $0x580] sm:$0xf]
    %v379 = vld [vmem:[%s1 + $0x584] sm:$0xf]
    %v380 = vld [vmem:[%s1 + $0x588] sm:$0xf]
    %v381 = vld [vmem:[%s1 + $0x58c] sm:$0xf]
    %v382 = vld [vmem:[%s1 + $0x590] sm:$0xf]
    %v383 = vld [vmem:[%s1 + $0x594] sm:$0xf]
    %v384 = vld [vmem:[%s1 + $0x598] sm:$0xf]
    %v385 = vld [vmem:[%s1 + $0x59c] sm:$0xf]
    %v386 = vld [vmem:[%s1 + $0x5a0] sm:$0xf]
    %v387 = vld [vmem:[%s1 + $0x5a4] sm:$0xf]
    %v388 = vld [vmem:[%s1 + $0x5a8] sm:$0xf]
    %v389 = vld [vmem:[%s1 + $0x5ac] sm:$0xf]
    %v390 = vld [vmem:[%s1 + $0x5b0] sm:$0xf]
    %v391 = vld [vmem:[%s1 + $0x5b4] sm:$0xf]
    %v392 = vld [vmem:[%s1 + $0x5b8] sm:$0xf]
    %v393 = vld [vmem:[%s1 + $0x5bc] sm:$0xf]
    %v394 = vld [vmem:[%s1 + $0x5c0] sm:$0xf]
    %v395 = vld [vmem:[%s1 + $0x5c4] sm:$0xf]
    %v396 = vld [vmem:[%s1 + $0x5c8] sm:$0xf]
    %v397 = vld [vmem:[%s1 + $0x5cc] sm:$0xf]
    %v398 = vld [vmem:[%s1 + $0x5d0] sm:$0xf]
    %v399 = vld [vmem:[%s1 + $0x5d4] sm:$0xf]
    %v400 = vld [vmem:[%s1 + $0x5d8] sm:$0xf]
    %v401 = vld [vmem:[%s1 + $0x5dc] sm:$0xf]
    %v402 = vld [vmem:[%s1 + $0x5e0] sm:$0xf]
    %v403 = vld [vmem:[%s1 + $0x5e4] sm:$0xf]
    %v404 = vld [vmem:[%s1 + $0x5e8] sm:$0xf]
    %v405 = vld [vmem:[%s1 + $0x5ec] sm:$0xf]
    %v406 = vld [vmem:[%s1 + $0x5f0] sm:$0xf]
    %v407 = vld [vmem:[%s1 + $0x5f4] sm:$0xf]
    %v408 = vld [vmem:[%s1 + $0x5f8] sm:$0xf]
    %v409 = vld [vmem:[%s1 + $0x5fc] sm:$0xf]
    %v410 = vld [vmem:[%s1 + $0x600] sm:$0xf]
    %v411 = vld [vmem:[%s1 + $0x604] sm:$0xf]
    %v412 = vld [vmem:[%s1 + $0x608] sm:$0xf]
    %v413 = vld [vmem:[%s1 + $0x60c] sm:$0xf]
    %v414 = vld [vmem:[%s1 + $0x610] sm:$0xf]
    %v415 = vld [vmem:[%s1 + $0x614] sm:$0xf]
    %v416 = vld [vmem:[%s1 + $0x618] sm:$0xf]
    %v417 = vld [vmem:[%s1 + $0x61c] sm:$0xf]
    %v418 = vld [vmem:[%s2] sm:$0x1]
    %v420 = vperm.slane %v418, 0
    %423 = vst [vmem:[#allocation1] ss:$9 sm:$0xff] %v22
    %v424 = vld [vmem:[#allocation1] sm:$0xff]
    %v425 = vld [vmem:[#allocation1 + $0x9] sm:$0xff]
    %v426 = vld [vmem:[#allocation1 + $0x12] sm:$0xff]
    %v427 = vld [vmem:[#allocation1 + $0x1b] sm:$0xff]
    %v428 = vld [vmem:[#allocation1 + $0x24] sm:$0xff]
    %v429 = vld [vmem:[#allocation1 + $0x2d] sm:$0xff]
    %v430 = vld [vmem:[#allocation1 + $0x36] sm:$0xff]
    %v431 = vld [vmem:[#allocation1 + $0x3f] sm:$0xff]
    %433 = vst [vmem:[#allocation1] ss:$9 sm:$0xff] %v23
    %v434 = vld [vmem:[#allocation1] sm:$0xff]
    %v435 = vld [vmem:[#allocation1 + $0x9] sm:$0xff]
    %v436 = vld [vmem:[#allocation1 + $0x12] sm:$0xff]
    %v437 = vld [vmem:[#allocation1 + $0x1b] sm:$0xff]
    %v438 = vld [vmem:[#allocation1 + $0x24] sm:$0xff]
    %v439 = vld [vmem:[#allocation1 + $0x2d] sm:$0xff]
    %v440 = vld [vmem:[#allocation1 + $0x36] sm:$0xff]
    %v441 = vld [vmem:[#allocation1 + $0x3f] sm:$0xff]
    %443 = vst [vmem:[#allocation1] ss:$9 sm:$0xff] %v24
    %v444 = vld [vmem:[#allocation1] sm:$0xff]
    %v445 = vld [vmem:[#allocation1 + $0x9] sm:$0xff]
    %v446 = vld [vmem:[#allocation1 + $0x12] sm:$0xff]
    %v447 = vld [vmem:[#allocation1 + $0x1b] sm:$0xff]
    %v448 = vld [vmem:[#allocation1 + $0x24] sm:$0xff]
    %v449 = vld [vmem:[#allocation1 + $0x2d] sm:$0xff]
    %v450 = vld [vmem:[#allocation1 + $0x36] sm:$0xff]
    %v451 = vld [vmem:[#allocation1 + $0x3f] sm:$0xff]
    %453 = vst [vmem:[#allocation1] ss:$9 sm:$0xff] %v25
    %v454 = vld [vmem:[#allocation1] sm:$0xff]
    %v871 = vunpack.c.l.b16 %v26
    %v872 = vunpack.c.l.b16 %v27
    %v873 = vunpack.c.l.b16 %v28
    %v874 = vunpack.c.l.b16 %v29
    %v875 = vunpack.c.l.b16 %v30
    %v876 = vunpack.c.l.b16 %v31
    %v877 = vunpack.c.l.b16 %v32
    %v878 = vunpack.c.l.b16 %v33
    %v879 = vunpack.c.l.b16 %v34
    %v880 = vunpack.c.l.b16 %v35
    %v881 = vunpack.c.l.b16 %v36
    %v882 = vunpack.c.l.b16 %v37
    %v883 = vunpack.c.l.b16 %v38
    %v884 = vunpack.c.l.b16 %v39
    %v885 = vunpack.c.l.b16 %v40
    %v886 = vunpack.c.l.b16 %v41
    %v887 = vunpack.c.l.b16 %v42
    %v888 = vunpack.c.l.b16 %v43
    %v889 = vunpack.c.l.b16 %v44
    %v890 = vunpack.c.l.b16 %v45
    %v891 = vunpack.c.l.b16 %v46
    %v892 = vunpack.c.l.b16 %v47
    %v893 = vunpack.c.l.b16 %v48
    %v894 = vunpack.c.l.b16 %v49
    %v895 = vunpack.c.l.b16 %v50
    %v896 = vunpack.c.l.b16 %v51
    %v897 = vunpack.c.l.b16 %v52
    %v898 = vunpack.c.l.b16 %v53
    %v899 = vunpack.c.l.b16 %v54
    %v900 = vunpack.c.l.b16 %v55
    %v901 = vunpack.c.l.b16 %v56
    %v902 = vunpack.c.l.b16 %v57
    %v903 = vunpack.c.l.b16 %v58
    %v904 = vunpack.c.l.b16 %v59
    %v905 = vunpack.c.l.b16 %v60
    %v906 = vunpack.c.l.b16 %v61
    %v907 = vunpack.c.l.b16 %v62
    %v908 = vunpack.c.l.b16 %v63
    %v909 = vunpack.c.l.b16 %v64
    %v910 = vunpack.c.l.b16 %v65
    %v911 = vunpack.c.l.b16 %v66
    %v912 = vunpack.c.l.b16 %v67
    %v913 = vunpack.c.l.b16 %v68
    %v914 = vunpack.c.l.b16 %v69
    %v915 = vunpack.c.l.b16 %v70
    %v916 = vunpack.c.l.b16 %v71
    %v917 = vunpack.c.l.b16 %v72
    %v918 = vunpack.c.l.b16 %v73
    %v919 = vunpack.c.l.b16 %v74
    %v920 = vunpack.c.l.b16 %v75
    %v921 = vunpack.c.l.b16 %v76
    %v922 = vunpack.c.l.b16 %v77
    %v923 = vunpack.c.l.b16 %v78
    %v924 = vunpack.c.l.b16 %v79
    %v925 = vunpack.c.l.b16 %v80
    %v926 = vunpack.c.l.b16 %v81
    %v927 = vunpack.c.l.b16 %v82
    %v928 = vunpack.c.l.b16 %v83
    %v929 = vunpack.c.l.b16 %v84
    %v930 = vunpack.c.l.b16 %v85
    %v931 = vunpack.c.l.b16 %v86
    %v932 = vunpack.c.l.b16 %v87
    %v933 = vunpack.c.l.b16 %v88
    %v934 = vunpack.c.l.b16 %v89
    %v935 = vunpack.c.l.b16 %v90
    %v936 = vunpack.c.l.b16 %v91
    %v937 = vunpack.c.l.b16 %v92
    %v938 = vunpack.c.l.b16 %v93
    %v939 = vunpack.c.l.b16 %v94
    %v940 = vunpack.c.l.b16 %v95
    %v941 = vunpack.c.l.b16 %v96
    %v942 = vunpack.c.l.b16 %v97
    %v943 = vunpack.c.l.b16 %v98
    %v944 = vunpack.c.l.b16 %v99
    %v945 = vunpack.c.l.b16 %v100
    %v946 = vunpack.c.l.b16 %v101
    %v947 = vunpack.c.l.b16 %v102
    %v948 = vunpack.c.l.b16 %v103
    %v949 = vunpack.c.l.b16 %v104
    %v950 = vunpack.c.l.b16 %v105
    %v951 = vunpack.c.l.b16 %v106
    %v952 = vunpack.c.l.b16 %v107
    %v953 = vunpack.c.l.b16 %v108
    %v954 = vunpack.c.l.b16 %v109
    %v955 = vunpack.c.l.b16 %v110
    %v956 = vunpack.c.l.b16 %v111
    %v957 = vunpack.c.l.b16 %v112
    %v958 = vunpack.c.l.b16 %v113
    %v959 = vunpack.c.l.b16 %v114
    %v960 = vunpack.c.l.b16 %v115
    %v961 = vunpack.c.l.b16 %v116
    %v962 = vunpack.c.l.b16 %v117
    %v963 = vunpack.c.l.b16 %v118
    %v964 = vunpack.c.l.b16 %v119
    %v965 = vunpack.c.l.b16 %v120
    %v966 = vunpack.c.l.b16 %v121
    %v967 = vunpack.c.l.b16 %v122
    %v968 = vunpack.c.l.b16 %v123
    %v969 = vunpack.c.l.b16 %v124
    %v970 = vunpack.c.l.b16 %v125
    %v971 = vunpack.c.l.b16 %v126
    %v972 = vunpack.c.l.b16 %v127
    %v973 = vunpack.c.l.b16 %v128
    %v974 = vunpack.c.l.b16 %v129
    %v975 = vunpack.c.l.b16 %v130
    %v976 = vunpack.c.l.b16 %v131
    %v977 = vunpack.c.l.b16 %v132
    %v978 = vunpack.c.l.b16 %v133
    %v979 = vunpack.c.l.b16 %v134
    %v980 = vunpack.c.l.b16 %v135
    %v981 = vunpack.c.l.b16 %v136
    %v982 = vunpack.c.l.b16 %v137
    %v983 = vunpack.c.l.b16 %v138
    %v984 = vunpack.c.l.b16 %v139
    %v985 = vunpack.c.l.b16 %v140
    %v986 = vunpack.c.l.b16 %v141
    %v987 = vunpack.c.l.b16 %v142
    %v988 = vunpack.c.l.b16 %v143
    %v989 = vunpack.c.l.b16 %v144
    %v990 = vunpack.c.l.b16 %v145
    %v991 = vunpack.c.l.b16 %v146
    %v992 = vunpack.c.l.b16 %v147
    %v993 = vunpack.c.l.b16 %v148
    %v994 = vunpack.c.l.b16 %v149
    %v995 = vunpack.c.l.b16 %v150
    %v996 = vunpack.c.l.b16 %v151
    %v997 = vunpack.c.l.b16 %v152
    %v998 = vunpack.c.l.b16 %v153
    %v999 = vunpack.c.l.b16 %v154
    %v1000 = vunpack.c.l.b16 %v155
    %v1001 = vunpack.c.l.b16 %v156
    %v1002 = vunpack.c.l.b16 %v157
    %v1003 = vunpack.c.l.b16 %v158
    %v1004 = vunpack.c.l.b16 %v159
    %v1005 = vunpack.c.l.b16 %v160
    %v1006 = vunpack.c.l.b16 %v161
    %v1007 = vunpack.c.l.b16 %v162
    %v1008 = vunpack.c.l.b16 %v163
    %v1009 = vunpack.c.l.b16 %v164
    %v1010 = vunpack.c.l.b16 %v165
    %v1011 = vunpack.c.l.b16 %v166
    %v1012 = vunpack.c.l.b16 %v167
    %v1013 = vunpack.c.l.b16 %v168
    %v1014 = vunpack.c.l.b16 %v169
    %v1015 = vunpack.c.l.b16 %v170
    %v1016 = vunpack.c.l.b16 %v171
    %v1017 = vunpack.c.l.b16 %v172
    %v1018 = vunpack.c.l.b16 %v173
    %v1019 = vunpack.c.l.b16 %v174
    %v1020 = vunpack.c.l.b16 %v175
    %v1021 = vunpack.c.l.b16 %v176
    %v1022 = vunpack.c.l.b16 %v177
    %v1023 = vunpack.c.l.b16 %v178
    %v1024 = vunpack.c.l.b16 %v179
    %v1025 = vunpack.c.l.b16 %v180
    %v1026 = vunpack.c.l.b16 %v181
    %v1027 = vunpack.c.l.b16 %v182
    %v1028 = vunpack.c.l.b16 %v183
    %v1029 = vunpack.c.l.b16 %v184
    %v1030 = vunpack.c.l.b16 %v185
    %v1031 = vunpack.c.l.b16 %v186
    %v1032 = vunpack.c.l.b16 %v187
    %v1033 = vunpack.c.l.b16 %v188
    %v1034 = vunpack.c.l.b16 %v189
    %v1035 = vunpack.c.l.b16 %v190
    %v1036 = vunpack.c.l.b16 %v191
    %v1037 = vunpack.c.l.b16 %v192
    %v1038 = vunpack.c.l.b16 %v193
    %v1039 = vunpack.c.l.b16 %v194
    %v1040 = vunpack.c.l.b16 %v195
    %v1041 = vunpack.c.l.b16 %v196
    %v1042 = vunpack.c.l.b16 %v197
    %v1043 = vunpack.c.l.b16 %v198
    %v1044 = vunpack.c.l.b16 %v199
    %v1045 = vunpack.c.l.b16 %v200
    %v1046 = vunpack.c.l.b16 %v201
    %v1047 = vunpack.c.l.b16 %v202
    %v1048 = vunpack.c.l.b16 %v203
    %v1049 = vunpack.c.l.b16 %v204
    %v1050 = vunpack.c.l.b16 %v205
    %v1051 = vunpack.c.l.b16 %v206
    %v1052 = vunpack.c.l.b16 %v207
    %v1053 = vunpack.c.l.b16 %v208
    %v1054 = vunpack.c.l.b16 %v209
    %v1055 = vunpack.c.l.b16 %v210
    %v1056 = vunpack.c.l.b16 %v211
    %v1057 = vunpack.c.l.b16 %v212
    %v1058 = vunpack.c.l.b16 %v213
    %v1059 = vunpack.c.l.b16 %v214
    %v1060 = vunpack.c.l.b16 %v215
    %v1061 = vunpack.c.l.b16 %v216
    %v1062 = vunpack.c.l.b16 %v217
    %v1063 = vunpack.c.l.b16 %v218
    %v1064 = vunpack.c.l.b16 %v219
    %v1065 = vunpack.c.l.b16 %v220
    %v1066 = vunpack.c.l.b16 %v221
    %v1067 = vunpack.c.l.b16 %v222
    %v1068 = vunpack.c.l.b16 %v223
    %v1069 = vunpack.c.l.b16 %v224
    %v1070 = vunpack.c.l.b16 %v225
    %v1071 = vunpack.c.l.b16 %v226
    %v1072 = vunpack.c.l.b16 %v227
    %v1073 = vunpack.c.l.b16 %v228
    %v1074 = vunpack.c.l.b16 %v229
    %v1075 = vunpack.c.l.b16 %v230
    %v1076 = vunpack.c.l.b16 %v231
    %v1077 = vunpack.c.l.b16 %v232
    %v1078 = vunpack.c.l.b16 %v233
    %v1079 = vunpack.c.l.b16 %v234
    %v1080 = vunpack.c.l.b16 %v235
    %v1081 = vunpack.c.l.b16 %v236
    %v1082 = vunpack.c.l.b16 %v237
    %v1083 = vunpack.c.l.b16 %v238
    %v1084 = vunpack.c.l.b16 %v239
    %v1085 = vunpack.c.l.b16 %v240
    %v1086 = vunpack.c.l.b16 %v241
    %v1087 = vunpack.c.l.b16 %v242
    %v1088 = vunpack.c.l.b16 %v243
    %v1089 = vunpack.c.l.b16 %v244
    %v1090 = vunpack.c.l.b16 %v245
    %v1091 = vunpack.c.l.b16 %v246
    %v1092 = vunpack.c.l.b16 %v247
    %v1093 = vunpack.c.l.b16 %v248
    %v1094 = vunpack.c.l.b16 %v249
    %v1095 = vunpack.c.l.b16 %v250
    %v1096 = vunpack.c.l.b16 %v251
    %v1097 = vunpack.c.l.b16 %v252
    %v1098 = vunpack.c.l.b16 %v253
    %v1099 = vunpack.c.l.b16 %v254
    %v1100 = vunpack.c.l.b16 %v255
    %v1101 = vunpack.c.l.b16 %v256
    %v1102 = vunpack.c.l.b16 %v257
    %v1103 = vunpack.c.l.b16 %v258
    %v1104 = vunpack.c.l.b16 %v259
    %v1105 = vunpack.c.l.b16 %v260
    %v1106 = vunpack.c.l.b16 %v261
    %v1107 = vunpack.c.l.b16 %v262
    %v1108 = vunpack.c.l.b16 %v263
    %v1109 = vunpack.c.l.b16 %v264
    %v1110 = vunpack.c.l.b16 %v265
    %v1111 = vunpack.c.l.b16 %v266
    %v1112 = vunpack.c.l.b16 %v267
    %v1113 = vunpack.c.l.b16 %v268
    %v1114 = vunpack.c.l.b16 %v269
    %v1115 = vunpack.c.l.b16 %v270
    %v1116 = vunpack.c.l.b16 %v271
    %v1117 = vunpack.c.l.b16 %v272
    %v1118 = vunpack.c.l.b16 %v273
    %v1119 = vunpack.c.l.b16 %v274
    %v1120 = vunpack.c.l.b16 %v275
    %v1121 = vunpack.c.l.b16 %v276
    %v1122 = vunpack.c.l.b16 %v277
    %v1123 = vunpack.c.l.b16 %v278
    %v1124 = vunpack.c.l.b16 %v279
    %v1125 = vunpack.c.l.b16 %v280
    %v1126 = vunpack.c.l.b16 %v281
    %v1127 = vunpack.c.l.b16 %v282
    %v1128 = vunpack.c.l.b16 %v283
    %v1129 = vunpack.c.l.b16 %v284
    %v1130 = vunpack.c.l.b16 %v285
    %v1131 = vunpack.c.l.b16 %v286
    %v1132 = vunpack.c.l.b16 %v287
    %v1133 = vunpack.c.l.b16 %v288
    %v1134 = vunpack.c.l.b16 %v289
    %v1135 = vunpack.c.l.b16 %v290
    %v1136 = vunpack.c.l.b16 %v291
    %v1137 = vunpack.c.l.b16 %v292
    %v1138 = vunpack.c.l.b16 %v293
    %v1139 = vunpack.c.l.b16 %v294
    %v1140 = vunpack.c.l.b16 %v295
    %v1141 = vunpack.c.l.b16 %v296
    %v1142 = vunpack.c.l.b16 %v297
    %v1143 = vunpack.c.l.b16 %v298
    %v1144 = vunpack.c.l.b16 %v299
    %v1145 = vunpack.c.l.b16 %v300
    %v1146 = vunpack.c.l.b16 %v301
    %v1147 = vunpack.c.l.b16 %v302
    %v1148 = vunpack.c.l.b16 %v303
    %v1149 = vunpack.c.l.b16 %v304
    %v1150 = vunpack.c.l.b16 %v305
    %v1151 = vunpack.c.l.b16 %v306
    %v1152 = vunpack.c.l.b16 %v307
    %v1153 = vunpack.c.l.b16 %v308
    %v1154 = vunpack.c.l.b16 %v309
    %v1155 = vunpack.c.l.b16 %v310
    %v1156 = vunpack.c.l.b16 %v311
    %v1157 = vunpack.c.l.b16 %v312
    %v1158 = vunpack.c.l.b16 %v313
    %v1159 = vunpack.c.l.b16 %v314
    %v1160 = vunpack.c.l.b16 %v315
    %v1161 = vunpack.c.l.b16 %v316
    %v1162 = vunpack.c.l.b16 %v317
    %v1163 = vunpack.c.l.b16 %v318
    %v1164 = vunpack.c.l.b16 %v319
    %v1165 = vunpack.c.l.b16 %v320
    %v1166 = vunpack.c.l.b16 %v321
    %v1167 = vunpack.c.l.b16 %v322
    %v1168 = vunpack.c.l.b16 %v323
    %v1169 = vunpack.c.l.b16 %v324
    %v1170 = vunpack.c.l.b16 %v325
    %v1171 = vunpack.c.l.b16 %v326
    %v1172 = vunpack.c.l.b16 %v327
    %v1173 = vunpack.c.l.b16 %v328
    %v1174 = vunpack.c.l.b16 %v329
    %v1175 = vunpack.c.l.b16 %v330
    %v1176 = vunpack.c.l.b16 %v331
    %v1177 = vunpack.c.l.b16 %v332
    %v1178 = vunpack.c.l.b16 %v333
    %v1179 = vunpack.c.l.b16 %v334
    %v1180 = vunpack.c.l.b16 %v335
    %v1181 = vunpack.c.l.b16 %v336
    %v1182 = vunpack.c.l.b16 %v337
    %v1183 = vunpack.c.l.b16 %v338
    %v1184 = vunpack.c.l.b16 %v339
    %v1185 = vunpack.c.l.b16 %v340
    %v1186 = vunpack.c.l.b16 %v341
    %v1187 = vunpack.c.l.b16 %v342
    %v1188 = vunpack.c.l.b16 %v343
    %v1189 = vunpack.c.l.b16 %v344
    %v1190 = vunpack.c.l.b16 %v345
    %v1191 = vunpack.c.l.b16 %v346
    %v1192 = vunpack.c.l.b16 %v347
    %v1193 = vunpack.c.l.b16 %v348
    %v1194 = vunpack.c.l.b16 %v349
    %v1195 = vunpack.c.l.b16 %v350
    %v1196 = vunpack.c.l.b16 %v351
    %v1197 = vunpack.c.l.b16 %v352
    %v1198 = vunpack.c.l.b16 %v353
    %v1199 = vunpack.c.l.b16 %v354
    %v1200 = vunpack.c.l.b16 %v355
    %v1201 = vunpack.c.l.b16 %v356
    %v1202 = vunpack.c.l.b16 %v357
    %v1203 = vunpack.c.l.b16 %v358
    %v1204 = vunpack.c.l.b16 %v359
    %v1205 = vunpack.c.l.b16 %v360
    %v1206 = vunpack.c.l.b16 %v361
    %v1207 = vunpack.c.l.b16 %v362
    %v1208 = vunpack.c.l.b16 %v363
    %v1209 = vunpack.c.l.b16 %v364
    %v1210 = vunpack.c.l.b16 %v365
    %v1211 = vunpack.c.l.b16 %v366
    %v1212 = vunpack.c.l.b16 %v367
    %v1213 = vunpack.c.l.b16 %v368
    %v1214 = vunpack.c.l.b16 %v369
    %v1215 = vunpack.c.l.b16 %v370
    %v1216 = vunpack.c.l.b16 %v371
    %v1217 = vunpack.c.l.b16 %v372
    %v1218 = vunpack.c.l.b16 %v373
    %v1219 = vunpack.c.l.b16 %v374
    %v1220 = vunpack.c.l.b16 %v375
    %v1221 = vunpack.c.l.b16 %v376
    %v1222 = vunpack.c.l.b16 %v377
    %v1223 = vunpack.c.l.b16 %v378
    %v1224 = vunpack.c.l.b16 %v379
    %v1225 = vunpack.c.l.b16 %v380
    %v1226 = vunpack.c.l.b16 %v381
    %v1227 = vunpack.c.l.b16 %v382
    %v1228 = vunpack.c.l.b16 %v383
    %v1229 = vunpack.c.l.b16 %v384
    %v1230 = vunpack.c.l.b16 %v385
    %v1231 = vunpack.c.l.b16 %v386
    %v1232 = vunpack.c.l.b16 %v387
    %v1233 = vunpack.c.l.b16 %v388
    %v1234 = vunpack.c.l.b16 %v389
    %v1235 = vunpack.c.l.b16 %v390
    %v1236 = vunpack.c.l.b16 %v391
    %v1237 = vunpack.c.l.b16 %v392
    %v1238 = vunpack.c.l.b16 %v393
    %v1239 = vunpack.c.l.b16 %v394
    %v1240 = vunpack.c.l.b16 %v395
    %v1241 = vunpack.c.l.b16 %v396
    %v1242 = vunpack.c.l.b16 %v397
    %v1243 = vunpack.c.l.b16 %v398
    %v1244 = vunpack.c.l.b16 %v399
    %v1245 = vunpack.c.l.b16 %v400
    %v1246 = vunpack.c.l.b16 %v401
    %v1247 = vunpack.c.l.b16 %v402
    %v1248 = vunpack.c.l.b16 %v403
    %v1249 = vunpack.c.l.b16 %v404
    %v1250 = vunpack.c.l.b16 %v405
    %v1251 = vunpack.c.l.b16 %v406
    %v1252 = vunpack.c.l.b16 %v407
    %v1253 = vunpack.c.l.b16 %v408
    %v1254 = vunpack.c.l.b16 %v409
    %v1255 = vunpack.c.l.b16 %v410
    %v1256 = vunpack.c.l.b16 %v411
    %v1257 = vunpack.c.l.b16 %v412
    %v1258 = vunpack.c.l.b16 %v413
    %v1259 = vunpack.c.l.b16 %v414
    %v1260 = vunpack.c.l.b16 %v415
    %v1261 = vunpack.c.l.b16 %v416
    %v1262 = vunpack.c.l.b16 %v417
    %v1263 = vpack.c.b16 %v872, %v871
    %v1264 = vpack.c.b16 %v874, %v873
    %v1265 = vpack.c.b16 %v876, %v875
    %v1266 = vpack.c.b16 %v878, %v877
    %v1267 = vpack.c.b16 %v880, %v879
    %v1268 = vpack.c.b16 %v882, %v881
    %v1269 = vpack.c.b16 %v884, %v883
    %v1270 = vpack.c.b16 %v886, %v885
    %v1271 = vpack.c.b16 %v888, %v887
    %v1272 = vpack.c.b16 %v890, %v889
    %v1273 = vpack.c.b16 %v892, %v891
    %v1274 = vpack.c.b16 %v894, %v893
    %v1275 = vpack.c.b16 %v896, %v895
    %v1276 = vpack.c.b16 %v898, %v897
    %v1277 = vpack.c.b16 %v900, %v899
    %v1278 = vpack.c.b16 %v902, %v901
    %v1279 = vpack.c.b16 %v904, %v903
    %v1280 = vpack.c.b16 %v906, %v905
    %v1281 = vpack.c.b16 %v908, %v907
    %v1282 = vpack.c.b16 %v910, %v909
    %v1283 = vpack.c.b16 %v912, %v911
    %v1284 = vpack.c.b16 %v914, %v913
    %v1285 = vpack.c.b16 %v916, %v915
    %v1286 = vpack.c.b16 %v918, %v917
    %v1287 = vpack.c.b16 %v920, %v919
    %v1288 = vpack.c.b16 %v922, %v921
    %v1289 = vpack.c.b16 %v924, %v923
    %v1290 = vpack.c.b16 %v926, %v925
    %v1291 = vpack.c.b16 %v928, %v927
    %v1292 = vpack.c.b16 %v930, %v929
    %v1293 = vpack.c.b16 %v932, %v931
    %v1294 = vpack.c.b16 %v934, %v933
    %v1295 = vpack.c.b16 %v936, %v935
    %v1296 = vpack.c.b16 %v938, %v937
    %v1297 = vpack.c.b16 %v940, %v939
    %v1298 = vpack.c.b16 %v942, %v941
    %v1299 = vpack.c.b16 %v944, %v943
    %v1300 = vpack.c.b16 %v946, %v945
    %v1301 = vpack.c.b16 %v948, %v947
    %v1302 = vpack.c.b16 %v950, %v949
    %v1303 = vpack.c.b16 %v952, %v951
    %v1304 = vpack.c.b16 %v954, %v953
    %v1305 = vpack.c.b16 %v956, %v955
    %v1306 = vpack.c.b16 %v958, %v957
    %v1307 = vpack.c.b16 %v960, %v959
    %v1308 = vpack.c.b16 %v962, %v961
    %v1309 = vpack.c.b16 %v964, %v963
    %v1310 = vpack.c.b16 %v966, %v965
    %v1311 = vpack.c.b16 %v968, %v967
    %v1312 = vpack.c.b16 %v970, %v969
    %v1313 = vpack.c.b16 %v972, %v971
    %v1314 = vpack.c.b16 %v974, %v973
    %v1315 = vpack.c.b16 %v976, %v975
    %v1316 = vpack.c.b16 %v978, %v977
    %v1317 = vpack.c.b16 %v980, %v979
    %v1318 = vpack.c.b16 %v982, %v981
    %v1319 = vpack.c.b16 %v984, %v983
    %v1320 = vpack.c.b16 %v986, %v985
    %v1321 = vpack.c.b16 %v988, %v987
    %v1322 = vpack.c.b16 %v990, %v989
    %v1323 = vpack.c.b16 %v992, %v991
    %v1324 = vpack.c.b16 %v994, %v993
    %v1325 = vpack.c.b16 %v996, %v995
    %v1326 = vpack.c.b16 %v998, %v997
    %v1327 = vpack.c.b16 %v1000, %v999
    %v1328 = vpack.c.b16 %v1002, %v1001
    %v1329 = vpack.c.b16 %v1004, %v1003
    %v1330 = vpack.c.b16 %v1006, %v1005
    %v1331 = vpack.c.b16 %v1008, %v1007
    %v1332 = vpack.c.b16 %v1010, %v1009
    %v1333 = vpack.c.b16 %v1012, %v1011
    %v1334 = vpack.c.b16 %v1014, %v1013
    %v1335 = vpack.c.b16 %v1016, %v1015
    %v1336 = vpack.c.b16 %v1018, %v1017
    %v1337 = vpack.c.b16 %v1020, %v1019
    %v1338 = vpack.c.b16 %v1022, %v1021
    %v1339 = vpack.c.b16 %v1024, %v1023
    %v1340 = vpack.c.b16 %v1026, %v1025
    %v1341 = vpack.c.b16 %v1028, %v1027
    %v1342 = vpack.c.b16 %v1030, %v1029
    %v1343 = vpack.c.b16 %v1032, %v1031
    %v1344 = vpack.c.b16 %v1034, %v1033
    %v1345 = vpack.c.b16 %v1036, %v1035
    %v1346 = vpack.c.b16 %v1038, %v1037
    %v1347 = vpack.c.b16 %v1040, %v1039
    %v1348 = vpack.c.b16 %v1042, %v1041
    %v1349 = vpack.c.b16 %v1044, %v1043
    %v1350 = vpack.c.b16 %v1046, %v1045
    %v1351 = vpack.c.b16 %v1048, %v1047
    %v1352 = vpack.c.b16 %v1050, %v1049
    %v1353 = vpack.c.b16 %v1052, %v1051
    %v1354 = vpack.c.b16 %v1054, %v1053
    %v1355 = vpack.c.b16 %v1056, %v1055
    %v1356 = vpack.c.b16 %v1058, %v1057
    %v1357 = vpack.c.b16 %v1060, %v1059
    %v1358 = vpack.c.b16 %v1062, %v1061
    %v1359 = vpack.c.b16 %v1064, %v1063
    %v1360 = vpack.c.b16 %v1066, %v1065
    %v1361 = vpack.c.b16 %v1068, %v1067
    %v1362 = vpack.c.b16 %v1070, %v1069
    %v1363 = vpack.c.b16 %v1072, %v1071
    %v1364 = vpack.c.b16 %v1074, %v1073
    %v1365 = vpack.c.b16 %v1076, %v1075
    %v1366 = vpack.c.b16 %v1078, %v1077
    %v1367 = vpack.c.b16 %v1080, %v1079
    %v1368 = vpack.c.b16 %v1082, %v1081
    %v1369 = vpack.c.b16 %v1084, %v1083
    %v1370 = vpack.c.b16 %v1086, %v1085
    %v1371 = vpack.c.b16 %v1088, %v1087
    %v1372 = vpack.c.b16 %v1090, %v1089
    %v1373 = vpack.c.b16 %v1092, %v1091
    %v1374 = vpack.c.b16 %v1094, %v1093
    %v1375 = vpack.c.b16 %v1096, %v1095
    %v1376 = vpack.c.b16 %v1098, %v1097
    %v1377 = vpack.c.b16 %v1100, %v1099
    %v1378 = vpack.c.b16 %v1102, %v1101
    %v1379 = vpack.c.b16 %v1104, %v1103
    %v1380 = vpack.c.b16 %v1106, %v1105
    %v1381 = vpack.c.b16 %v1108, %v1107
    %v1382 = vpack.c.b16 %v1110, %v1109
    %v1383 = vpack.c.b16 %v1112, %v1111
    %v1384 = vpack.c.b16 %v1114, %v1113
    %v1385 = vpack.c.b16 %v1116, %v1115
    %v1386 = vpack.c.b16 %v1118, %v1117
    %v1387 = vpack.c.b16 %v1120, %v1119
    %v1388 = vpack.c.b16 %v1122, %v1121
    %v1389 = vpack.c.b16 %v1124, %v1123
    %v1390 = vpack.c.b16 %v1126, %v1125
    %v1391 = vpack.c.b16 %v1128, %v1127
    %v1392 = vpack.c.b16 %v1130, %v1129
    %v1393 = vpack.c.b16 %v1132, %v1131
    %v1394 = vpack.c.b16 %v1134, %v1133
    %v1395 = vpack.c.b16 %v1136, %v1135
    %v1396 = vpack.c.b16 %v1138, %v1137
    %v1397 = vpack.c.b16 %v1140, %v1139
    %v1398 = vpack.c.b16 %v1142, %v1141
    %v1399 = vpack.c.b16 %v1144, %v1143
    %v1400 = vpack.c.b16 %v1146, %v1145
    %v1401 = vpack.c.b16 %v1148, %v1147
    %v1402 = vpack.c.b16 %v1150, %v1149
    %v1403 = vpack.c.b16 %v1152, %v1151
    %v1404 = vpack.c.b16 %v1154, %v1153
    %v1405 = vpack.c.b16 %v1156, %v1155
    %v1406 = vpack.c.b16 %v1158, %v1157
    %v1407 = vpack.c.b16 %v1160, %v1159
    %v1408 = vpack.c.b16 %v1162, %v1161
    %v1409 = vpack.c.b16 %v1164, %v1163
    %v1410 = vpack.c.b16 %v1166, %v1165
    %v1411 = vpack.c.b16 %v1168, %v1167
    %v1412 = vpack.c.b16 %v1170, %v1169
    %v1413 = vpack.c.b16 %v1172, %v1171
    %v1414 = vpack.c.b16 %v1174, %v1173
    %v1415 = vpack.c.b16 %v1176, %v1175
    %v1416 = vpack.c.b16 %v1178, %v1177
    %v1417 = vpack.c.b16 %v1180, %v1179
    %v1418 = vpack.c.b16 %v1182, %v1181
    %v1419 = vpack.c.b16 %v1184, %v1183
    %v1420 = vpack.c.b16 %v1186, %v1185
    %v1421 = vpack.c.b16 %v1188, %v1187
    %v1422 = vpack.c.b16 %v1190, %v1189
    %v1423 = vpack.c.b16 %v1192, %v1191
    %v1424 = vpack.c.b16 %v1194, %v1193
    %v1425 = vpack.c.b16 %v1196, %v1195
    %v1426 = vpack.c.b16 %v1198, %v1197
    %v1427 = vpack.c.b16 %v1200, %v1199
    %v1428 = vpack.c.b16 %v1202, %v1201
    %v1429 = vpack.c.b16 %v1204, %v1203
    %v1430 = vpack.c.b16 %v1206, %v1205
    %v1431 = vpack.c.b16 %v1208, %v1207
    %v1432 = vpack.c.b16 %v1210, %v1209
    %v1433 = vpack.c.b16 %v1212, %v1211
    %v1434 = vpack.c.b16 %v1214, %v1213
    %v1435 = vpack.c.b16 %v1216, %v1215
    %v1436 = vpack.c.b16 %v1218, %v1217
    %v1437 = vpack.c.b16 %v1220, %v1219
    %v1438 = vpack.c.b16 %v1222, %v1221
    %v1439 = vpack.c.b16 %v1224, %v1223
    %v1440 = vpack.c.b16 %v1226, %v1225
    %v1441 = vpack.c.b16 %v1228, %v1227
    %v1442 = vpack.c.b16 %v1230, %v1229
    %v1443 = vpack.c.b16 %v1232, %v1231
    %v1444 = vpack.c.b16 %v1234, %v1233
    %v1445 = vpack.c.b16 %v1236, %v1235
    %v1446 = vpack.c.b16 %v1238, %v1237
    %v1447 = vpack.c.b16 %v1240, %v1239
    %v1448 = vpack.c.b16 %v1242, %v1241
    %v1449 = vpack.c.b16 %v1244, %v1243
    %v1450 = vpack.c.b16 %v1246, %v1245
    %v1451 = vpack.c.b16 %v1248, %v1247
    %v1452 = vpack.c.b16 %v1250, %v1249
    %v1453 = vpack.c.b16 %v1252, %v1251
    %v1454 = vpack.c.b16 %v1254, %v1253
    %v1455 = vpack.c.b16 %v1256, %v1255
    %v1456 = vpack.c.b16 %v1258, %v1257
    %v1457 = vpack.c.b16 %v1260, %v1259
    %v1458 = vpack.c.b16 %v1262, %v1261
    %vm1655 = vcmask 523264
    %v1656 = vsel %vm1655, %v454, 0
    %1658 = vmatpush.bf16.msra.mxu0 %v1270
    %1659 = vmatpush.bf16.msra.mxu0 %v1269
    %1660 = vmatpush.bf16.msra.mxu0 %v1268
    %1661 = vmatpush.bf16.msra.mxu0 %v1267
    %1662 = vmatpush.bf16.msra.mxu0 %v1266
    %1663 = vmatpush.bf16.msra.mxu0 %v1265
    %1664 = vmatpush.bf16.msra.mxu0 %v1264
    %1665 = vmatpush.bf16.msra.mxu0 %v1263
    %1666 = vmatmul.bf16.gmra.mxu0 %v424
    %v1667 = vpop.f32.mrf.mxu0
    %v1668 = vadd.f32 %v420, %v1667
    %v1669 = vpop.f32.mrf.mxu0
    %1670 = vdwg.mxu0
    %1671 = vmatpush.bf16.msra.mxu0 %v1278
    %1672 = vmatpush.bf16.msra.mxu0 %v1277
    %1673 = vmatpush.bf16.msra.mxu0 %v1276
    %1674 = vmatpush.bf16.msra.mxu0 %v1275
    %1675 = vmatpush.bf16.msra.mxu0 %v1274
    %1676 = vmatpush.bf16.msra.mxu0 %v1273
    %1677 = vmatpush.bf16.msra.mxu0 %v1272
    %1678 = vmatpush.bf16.msra.mxu0 %v1271
    %1679 = vmatmul.bf16.gmra.mxu0 %v425
    %v1680 = vpop.f32.mrf.mxu0
    %v1681 = vadd.f32 %v1668, %v1680
    %v1682 = vpop.f32.mrf.mxu0
    %1683 = vdwg.mxu0
    %1684 = vmatpush.bf16.msra.mxu0 %v1286
    %1685 = vmatpush.bf16.msra.mxu0 %v1285
    %1686 = vmatpush.bf16.msra.mxu0 %v1284
    %1687 = vmatpush.bf16.msra.mxu0 %v1283
    %1688 = vmatpush.bf16.msra.mxu0 %v1282
    %1689 = vmatpush.bf16.msra.mxu0 %v1281
    %1690 = vmatpush.bf16.msra.mxu0 %v1280
    %1691 = vmatpush.bf16.msra.mxu0 %v1279
    %1692 = vmatmul.bf16.gmra.mxu0 %v426
    %v1693 = vpop.f32.mrf.mxu0
    %v1694 = vadd.f32 %v1681, %v1693
    %v1695 = vpop.f32.mrf.mxu0
    %1696 = vdwg.mxu0
    %1697 = vmatpush.bf16.msra.mxu0 %v1294
    %1698 = vmatpush.bf16.msra.mxu0 %v1293
    %1699 = vmatpush.bf16.msra.mxu0 %v1292
    %1700 = vmatpush.bf16.msra.mxu0 %v1291
    %1701 = vmatpush.bf16.msra.mxu0 %v1290
    %1702 = vmatpush.bf16.msra.mxu0 %v1289
    %1703 = vmatpush.bf16.msra.mxu0 %v1288
    %1704 = vmatpush.bf16.msra.mxu0 %v1287
    %1705 = vmatmul.bf16.gmra.mxu0 %v427
    %v1706 = vpop.f32.mrf.mxu0
    %v1707 = vadd.f32 %v1694, %v1706
    %v1708 = vpop.f32.mrf.mxu0
    %1709 = vdwg.mxu0
    %1710 = vmatpush.bf16.msra.mxu0 %v1302
    %1711 = vmatpush.bf16.msra.mxu0 %v1301
    %1712 = vmatpush.bf16.msra.mxu0 %v1300
    %1713 = vmatpush.bf16.msra.mxu0 %v1299
    %1714 = vmatpush.bf16.msra.mxu0 %v1298
    %1715 = vmatpush.bf16.msra.mxu0 %v1297
    %1716 = vmatpush.bf16.msra.mxu0 %v1296
    %1717 = vmatpush.bf16.msra.mxu0 %v1295
    %1718 = vmatmul.bf16.gmra.mxu0 %v428
    %v1719 = vpop.f32.mrf.mxu0
    %v1720 = vadd.f32 %v1707, %v1719
    %v1721 = vpop.f32.mrf.mxu0
    %1722 = vdwg.mxu0
    %1723 = vmatpush.bf16.msra.mxu0 %v1310
    %1724 = vmatpush.bf16.msra.mxu0 %v1309
    %1725 = vmatpush.bf16.msra.mxu0 %v1308
    %1726 = vmatpush.bf16.msra.mxu0 %v1307
    %1727 = vmatpush.bf16.msra.mxu0 %v1306
    %1728 = vmatpush.bf16.msra.mxu0 %v1305
    %1729 = vmatpush.bf16.msra.mxu0 %v1304
    %1730 = vmatpush.bf16.msra.mxu0 %v1303
    %1731 = vmatmul.bf16.gmra.mxu0 %v429
    %v1732 = vpop.f32.mrf.mxu0
    %v1733 = vadd.f32 %v1720, %v1732
    %v1734 = vpop.f32.mrf.mxu0
    %1735 = vdwg.mxu0
    %1736 = vmatpush.bf16.msra.mxu0 %v1318
    %1737 = vmatpush.bf16.msra.mxu0 %v1317
    %1738 = vmatpush.bf16.msra.mxu0 %v1316
    %1739 = vmatpush.bf16.msra.mxu0 %v1315
    %1740 = vmatpush.bf16.msra.mxu0 %v1314
    %1741 = vmatpush.bf16.msra.mxu0 %v1313
    %1742 = vmatpush.bf16.msra.mxu0 %v1312
    %1743 = vmatpush.bf16.msra.mxu0 %v1311
    %1744 = vmatmul.bf16.gmra.mxu0 %v430
    %v1745 = vpop.f32.mrf.mxu0
    %v1746 = vadd.f32 %v1733, %v1745
    %v1747 = vpop.f32.mrf.mxu0
    %1748 = vdwg.mxu0
    %1749 = vmatpush.bf16.msra.mxu0 %v1326
    %1750 = vmatpush.bf16.msra.mxu0 %v1325
    %1751 = vmatpush.bf16.msra.mxu0 %v1324
    %1752 = vmatpush.bf16.msra.mxu0 %v1323
    %1753 = vmatpush.bf16.msra.mxu0 %v1322
    %1754 = vmatpush.bf16.msra.mxu0 %v1321
    %1755 = vmatpush.bf16.msra.mxu0 %v1320
    %1756 = vmatpush.bf16.msra.mxu0 %v1319
    %1757 = vmatmul.bf16.gmra.mxu0 %v431
    %v1758 = vpop.f32.mrf.mxu0
    %v1759 = vadd.f32 %v1746, %v1758
    %v1760 = vpop.f32.mrf.mxu0
    %1761 = vdwg.mxu0
    %1762 = vmatpush.bf16.msra.mxu0 %v1334
    %1763 = vmatpush.bf16.msra.mxu0 %v1333
    %1764 = vmatpush.bf16.msra.mxu0 %v1332
    %1765 = vmatpush.bf16.msra.mxu0 %v1331
    %1766 = vmatpush.bf16.msra.mxu0 %v1330
    %1767 = vmatpush.bf16.msra.mxu0 %v1329
    %1768 = vmatpush.bf16.msra.mxu0 %v1328
    %1769 = vmatpush.bf16.msra.mxu0 %v1327
    %1770 = vmatmul.bf16.gmra.mxu0 %v434
    %v1771 = vpop.f32.mrf.mxu0
    %v1772 = vadd.f32 %v1759, %v1771
    %v1773 = vpop.f32.mrf.mxu0
    %1774 = vdwg.mxu0
    %1775 = vmatpush.bf16.msra.mxu0 %v1342
    %1776 = vmatpush.bf16.msra.mxu0 %v1341
    %1777 = vmatpush.bf16.msra.mxu0 %v1340
    %1778 = vmatpush.bf16.msra.mxu0 %v1339
    %1779 = vmatpush.bf16.msra.mxu0 %v1338
    %1780 = vmatpush.bf16.msra.mxu0 %v1337
    %1781 = vmatpush.bf16.msra.mxu0 %v1336
    %1782 = vmatpush.bf16.msra.mxu0 %v1335
    %1783 = vmatmul.bf16.gmra.mxu0 %v435
    %v1784 = vpop.f32.mrf.mxu0
    %v1785 = vadd.f32 %v1772, %v1784
    %v1786 = vpop.f32.mrf.mxu0
    %1787 = vdwg.mxu0
    %1788 = vmatpush.bf16.msra.mxu0 %v1350
    %1789 = vmatpush.bf16.msra.mxu0 %v1349
    %1790 = vmatpush.bf16.msra.mxu0 %v1348
    %1791 = vmatpush.bf16.msra.mxu0 %v1347
    %1792 = vmatpush.bf16.msra.mxu0 %v1346
    %1793 = vmatpush.bf16.msra.mxu0 %v1345
    %1794 = vmatpush.bf16.msra.mxu0 %v1344
    %1795 = vmatpush.bf16.msra.mxu0 %v1343
    %1796 = vmatmul.bf16.gmra.mxu0 %v436
    %v1797 = vpop.f32.mrf.mxu0
    %v1798 = vadd.f32 %v1785, %v1797
    %v1799 = vpop.f32.mrf.mxu0
    %1800 = vdwg.mxu0
    %1801 = vmatpush.bf16.msra.mxu0 %v1358
    %1802 = vmatpush.bf16.msra.mxu0 %v1357
    %1803 = vmatpush.bf16.msra.mxu0 %v1356
    %1804 = vmatpush.bf16.msra.mxu0 %v1355
    %1805 = vmatpush.bf16.msra.mxu0 %v1354
    %1806 = vmatpush.bf16.msra.mxu0 %v1353
    %1807 = vmatpush.bf16.msra.mxu0 %v1352
    %1808 = vmatpush.bf16.msra.mxu0 %v1351
    %1809 = vmatmul.bf16.gmra.mxu0 %v437
    %v1810 = vpop.f32.mrf.mxu0
    %v1811 = vadd.f32 %v1798, %v1810
    %v1812 = vpop.f32.mrf.mxu0
    %1813 = vdwg.mxu0
    %1814 = vmatpush.bf16.msra.mxu0 %v1366
    %1815 = vmatpush.bf16.msra.mxu0 %v1365
    %1816 = vmatpush.bf16.msra.mxu0 %v1364
    %1817 = vmatpush.bf16.msra.mxu0 %v1363
    %1818 = vmatpush.bf16.msra.mxu0 %v1362
    %1819 = vmatpush.bf16.msra.mxu0 %v1361
    %1820 = vmatpush.bf16.msra.mxu0 %v1360
    %1821 = vmatpush.bf16.msra.mxu0 %v1359
    %1822 = vmatmul.bf16.gmra.mxu0 %v438
    %v1823 = vpop.f32.mrf.mxu0
    %v1824 = vadd.f32 %v1811, %v1823
    %v1825 = vpop.f32.mrf.mxu0
    %1826 = vdwg.mxu0
    %1827 = vmatpush.bf16.msra.mxu0 %v1374
    %1828 = vmatpush.bf16.msra.mxu0 %v1373
    %1829 = vmatpush.bf16.msra.mxu0 %v1372
    %1830 = vmatpush.bf16.msra.mxu0 %v1371
    %1831 = vmatpush.bf16.msra.mxu0 %v1370
    %1832 = vmatpush.bf16.msra.mxu0 %v1369
    %1833 = vmatpush.bf16.msra.mxu0 %v1368
    %1834 = vmatpush.bf16.msra.mxu0 %v1367
    %1835 = vmatmul.bf16.gmra.mxu0 %v439
    %v1836 = vpop.f32.mrf.mxu0
    %v1837 = vadd.f32 %v1824, %v1836
    %v1838 = vpop.f32.mrf.mxu0
    %1839 = vdwg.mxu0
    %1840 = vmatpush.bf16.msra.mxu0 %v1382
    %1841 = vmatpush.bf16.msra.mxu0 %v1381
    %1842 = vmatpush.bf16.msra.mxu0 %v1380
    %1843 = vmatpush.bf16.msra.mxu0 %v1379
    %1844 = vmatpush.bf16.msra.mxu0 %v1378
    %1845 = vmatpush.bf16.msra.mxu0 %v1377
    %1846 = vmatpush.bf16.msra.mxu0 %v1376
    %1847 = vmatpush.bf16.msra.mxu0 %v1375
    %1848 = vmatmul.bf16.gmra.mxu0 %v440
    %v1849 = vpop.f32.mrf.mxu0
    %v1850 = vadd.f32 %v1837, %v1849
    %v1851 = vpop.f32.mrf.mxu0
    %1852 = vdwg.mxu0
    %1853 = vmatpush.bf16.msra.mxu0 %v1390
    %1854 = vmatpush.bf16.msra.mxu0 %v1389
    %1855 = vmatpush.bf16.msra.mxu0 %v1388
    %1856 = vmatpush.bf16.msra.mxu0 %v1387
    %1857 = vmatpush.bf16.msra.mxu0 %v1386
    %1858 = vmatpush.bf16.msra.mxu0 %v1385
    %1859 = vmatpush.bf16.msra.mxu0 %v1384
    %1860 = vmatpush.bf16.msra.mxu0 %v1383
    %1861 = vmatmul.bf16.gmra.mxu0 %v441
    %v1862 = vpop.f32.mrf.mxu0
    %v1863 = vadd.f32 %v1850, %v1862
    %v1864 = vpop.f32.mrf.mxu0
    %1865 = vdwg.mxu0
    %1866 = vmatpush.bf16.msra.mxu0 %v1398
    %1867 = vmatpush.bf16.msra.mxu0 %v1397
    %1868 = vmatpush.bf16.msra.mxu0 %v1396
    %1869 = vmatpush.bf16.msra.mxu0 %v1395
    %1870 = vmatpush.bf16.msra.mxu0 %v1394
    %1871 = vmatpush.bf16.msra.mxu0 %v1393
    %1872 = vmatpush.bf16.msra.mxu0 %v1392
    %1873 = vmatpush.bf16.msra.mxu0 %v1391
    %1874 = vmatmul.bf16.gmra.mxu0 %v444
    %v1875 = vpop.f32.mrf.mxu0
    %v1876 = vadd.f32 %v1863, %v1875
    %v1877 = vpop.f32.mrf.mxu0
    %1878 = vdwg.mxu0
    %1879 = vmatpush.bf16.msra.mxu0 %v1406
    %1880 = vmatpush.bf16.msra.mxu0 %v1405
    %1881 = vmatpush.bf16.msra.mxu0 %v1404
    %1882 = vmatpush.bf16.msra.mxu0 %v1403
    %1883 = vmatpush.bf16.msra.mxu0 %v1402
    %1884 = vmatpush.bf16.msra.mxu0 %v1401
    %1885 = vmatpush.bf16.msra.mxu0 %v1400
    %1886 = vmatpush.bf16.msra.mxu0 %v1399
    %1887 = vmatmul.bf16.gmra.mxu0 %v445
    %v1888 = vpop.f32.mrf.mxu0
    %v1889 = vadd.f32 %v1876, %v1888
    %v1890 = vpop.f32.mrf.mxu0
    %1891 = vdwg.mxu0
    %1892 = vmatpush.bf16.msra.mxu0 %v1414
    %1893 = vmatpush.bf16.msra.mxu0 %v1413
    %1894 = vmatpush.bf16.msra.mxu0 %v1412
    %1895 = vmatpush.bf16.msra.mxu0 %v1411
    %1896 = vmatpush.bf16.msra.mxu0 %v1410
    %1897 = vmatpush.bf16.msra.mxu0 %v1409
    %1898 = vmatpush.bf16.msra.mxu0 %v1408
    %1899 = vmatpush.bf16.msra.mxu0 %v1407
    %1900 = vmatmul.bf16.gmra.mxu0 %v446
    %v1901 = vpop.f32.mrf.mxu0
    %v1902 = vadd.f32 %v1889, %v1901
    %v1903 = vpop.f32.mrf.mxu0
    %1904 = vdwg.mxu0
    %1905 = vmatpush.bf16.msra.mxu0 %v1422
    %1906 = vmatpush.bf16.msra.mxu0 %v1421
    %1907 = vmatpush.bf16.msra.mxu0 %v1420
    %1908 = vmatpush.bf16.msra.mxu0 %v1419
    %1909 = vmatpush.bf16.msra.mxu0 %v1418
    %1910 = vmatpush.bf16.msra.mxu0 %v1417
    %1911 = vmatpush.bf16.msra.mxu0 %v1416
    %1912 = vmatpush.bf16.msra.mxu0 %v1415
    %1913 = vmatmul.bf16.gmra.mxu0 %v447
    %v1914 = vpop.f32.mrf.mxu0
    %v1915 = vadd.f32 %v1902, %v1914
    %v1916 = vpop.f32.mrf.mxu0
    %1917 = vdwg.mxu0
    %1918 = vmatpush.bf16.msra.mxu0 %v1430
    %1919 = vmatpush.bf16.msra.mxu0 %v1429
    %1920 = vmatpush.bf16.msra.mxu0 %v1428
    %1921 = vmatpush.bf16.msra.mxu0 %v1427
    %1922 = vmatpush.bf16.msra.mxu0 %v1426
    %1923 = vmatpush.bf16.msra.mxu0 %v1425
    %1924 = vmatpush.bf16.msra.mxu0 %v1424
    %1925 = vmatpush.bf16.msra.mxu0 %v1423
    %1926 = vmatmul.bf16.gmra.mxu0 %v448
    %v1927 = vpop.f32.mrf.mxu0
    %v1928 = vadd.f32 %v1915, %v1927
    %v1929 = vpop.f32.mrf.mxu0
    %1930 = vdwg.mxu0
    %1931 = vmatpush.bf16.msra.mxu0 %v1438
    %1932 = vmatpush.bf16.msra.mxu0 %v1437
    %1933 = vmatpush.bf16.msra.mxu0 %v1436
    %1934 = vmatpush.bf16.msra.mxu0 %v1435
    %1935 = vmatpush.bf16.msra.mxu0 %v1434
    %1936 = vmatpush.bf16.msra.mxu0 %v1433
    %1937 = vmatpush.bf16.msra.mxu0 %v1432
    %1938 = vmatpush.bf16.msra.mxu0 %v1431
    %1939 = vmatmul.bf16.gmra.mxu0 %v449
    %v1940 = vpop.f32.mrf.mxu0
    %v1941 = vadd.f32 %v1928, %v1940
    %v1942 = vpop.f32.mrf.mxu0
    %1943 = vdwg.mxu0
    %1944 = vmatpush.bf16.msra.mxu0 %v1446
    %1945 = vmatpush.bf16.msra.mxu0 %v1445
    %1946 = vmatpush.bf16.msra.mxu0 %v1444
    %1947 = vmatpush.bf16.msra.mxu0 %v1443
    %1948 = vmatpush.bf16.msra.mxu0 %v1442
    %1949 = vmatpush.bf16.msra.mxu0 %v1441
    %1950 = vmatpush.bf16.msra.mxu0 %v1440
    %1951 = vmatpush.bf16.msra.mxu0 %v1439
    %1952 = vmatmul.bf16.gmra.mxu0 %v450
    %v1953 = vpop.f32.mrf.mxu0
    %v1954 = vadd.f32 %v1941, %v1953
    %v1955 = vpop.f32.mrf.mxu0
    %1956 = vdwg.mxu0
    %1957 = vmatpush.bf16.msra.mxu0 %v1454
    %1958 = vmatpush.bf16.msra.mxu0 %v1453
    %1959 = vmatpush.bf16.msra.mxu0 %v1452
    %1960 = vmatpush.bf16.msra.mxu0 %v1451
    %1961 = vmatpush.bf16.msra.mxu0 %v1450
    %1962 = vmatpush.bf16.msra.mxu0 %v1449
    %1963 = vmatpush.bf16.msra.mxu0 %v1448
    %1964 = vmatpush.bf16.msra.mxu0 %v1447
    %1965 = vmatmul.bf16.gmra.mxu0 %v451
    %v1966 = vpop.f32.mrf.mxu0
    %v1967 = vadd.f32 %v1954, %v1966
    %v1968 = vpop.f32.mrf.mxu0
    %1969 = vdwg.mxu0
    %1970 = vmatpush.bf16.msra.mxu0 0
    %1971 = vmatpush.bf16.msra.mxu0 0
    %1972 = vmatpush.bf16.msra.mxu0 0
    %1973 = vmatpush.bf16.msra.mxu0 0
    %1974 = vmatpush.bf16.msra.mxu0 %v1458
    %1975 = vmatpush.bf16.msra.mxu0 %v1457
    %1976 = vmatpush.bf16.msra.mxu0 %v1456
    %1977 = vmatpush.bf16.msra.mxu0 %v1455
    %1978 = vmatmul.bf16.gmra.mxu0 %v1656
    %v1979 = vpop.f32.mrf.mxu0
    %v1980 = vadd.f32 %v1967, %v1979
    %v1981 = vpop.f32.mrf.mxu0
    %1982 = vdwg.mxu0
    %v1983 = vmax.f32 %v1980, 0.0
    %v1984 = vpack.c.bf16 %v1983, %v1983
    %v1985 = vld [vmem:[%s3] sm:$0xf]
    %v1986 = vld [vmem:[%s3 + $0x4] sm:$0xf]
    %v1987 = vld [vmem:[%s3 + $0x8] sm:$0xf]
    %v1988 = vld [vmem:[%s3 + $0xc] sm:$0xf]
    %v1989 = vld [vmem:[%s3 + $0x10] sm:$0xf]
    %v1990 = vld [vmem:[%s3 + $0x14] sm:$0xf]
    %v1991 = vld [vmem:[%s3 + $0x18] sm:$0xf]
    %v1992 = vld [vmem:[%s3 + $0x1c] sm:$0xf]
    %v1993 = vld [vmem:[%s3 + $0x20] sm:$0xf]
    %v1994 = vld [vmem:[%s3 + $0x24] sm:$0xf]
    %v1995 = vld [vmem:[%s3 + $0x28] sm:$0xf]
    %v1996 = vld [vmem:[%s3 + $0x2c] sm:$0xf]
    %v1997 = vld [vmem:[%s3 + $0x30] sm:$0xf]
    %v1998 = vld [vmem:[%s3 + $0x34] sm:$0xf]
    %v1999 = vld [vmem:[%s3 + $0x38] sm:$0xf]
    %v2000 = vld [vmem:[%s3 + $0x3c] sm:$0xf]
    %v2001 = vld [vmem:[%s4] sm:$0x1]
    %v2003 = vperm.slane %v2001, 0
    %v2021 = vunpack.c.l.b16 %v1985
    %v2022 = vunpack.c.l.b16 %v1986
    %v2023 = vunpack.c.l.b16 %v1987
    %v2024 = vunpack.c.l.b16 %v1988
    %v2025 = vunpack.c.l.b16 %v1989
    %v2026 = vunpack.c.l.b16 %v1990
    %v2027 = vunpack.c.l.b16 %v1991
    %v2028 = vunpack.c.l.b16 %v1992
    %v2029 = vunpack.c.l.b16 %v1993
    %v2030 = vunpack.c.l.b16 %v1994
    %v2031 = vunpack.c.l.b16 %v1995
    %v2032 = vunpack.c.l.b16 %v1996
    %v2033 = vunpack.c.l.b16 %v1997
    %v2034 = vunpack.c.l.b16 %v1998
    %v2035 = vunpack.c.l.b16 %v1999
    %v2036 = vunpack.c.l.b16 %v2000
    %v2037 = vpack.c.b16 %v2022, %v2021
    %v2038 = vpack.c.b16 %v2024, %v2023
    %v2039 = vpack.c.b16 %v2026, %v2025
    %v2040 = vpack.c.b16 %v2028, %v2027
    %v2041 = vpack.c.b16 %v2030, %v2029
    %v2042 = vpack.c.b16 %v2032, %v2031
    %v2043 = vpack.c.b16 %v2034, %v2033
    %v2044 = vpack.c.b16 %v2036, %v2035
    %2053 = vmatpush.bf16.msra.mxu0 %v2044
    %2054 = vmatpush.bf16.msra.mxu0 %v2043
    %2055 = vmatpush.bf16.msra.mxu0 %v2042
    %2056 = vmatpush.bf16.msra.mxu0 %v2041
    %2057 = vmatpush.bf16.msra.mxu0 %v2040
    %2058 = vmatpush.bf16.msra.mxu0 %v2039
    %2059 = vmatpush.bf16.msra.mxu0 %v2038
    %2060 = vmatpush.bf16.msra.mxu0 %v2037
    %2061 = vmatmul.bf16.gmra.mxu0 %v1984
    %v2062 = vpop.f32.mrf.mxu0
    %v2063 = vadd.f32 %v2003, %v2062
    %v2064 = vpop.f32.mrf.mxu0
    %2065 = vdwg.mxu0
    %2066 = vst [vmem:[#allocation2] sm:$0x3] %v2063
    // Predicated region
    $region22: #{mnist_forward.3} parent=1 // pred_check
      _
    $region23: #{mnist_forward.3} parent=1 // pred_check_branch
      %2068 = sbr.rel (0) target = $region25
    $region24: #{mnist_forward.3} parent=1 // pred_region
      %2070 = vsyncadd [#allocation3], 0
      %s2072 = sshll.u32 [#allocation2], 4
      %s2073 = int_to_ptr.vmem [resolvable:$true] %s2072
      %s2074 = sshll.u32 %s5, 4
      %s2075 = int_to_ptr.hbm [resolvable:$true] %s2074
      %2077 = dma.vmem_to_hbm [thread:$0]  %s2073, 32, %s2075, [#allocation3]
    $region25: #{mnist_forward.3} parent=1 // pred_fallthru
      _
    // Predicated region
    $region26: #{mnist_forward.3} parent=1 // pred_check
      _
    $region27: #{mnist_forward.3} parent=1 // pred_check_branch
      %2079 = sbr.rel (0) target = $region29
    $region28: #{mnist_forward.3} parent=1 // pred_region
      %2081 = dma.done [#allocation3], 32
    $region29: #{mnist_forward.3} parent=1 // pred_fallthru
      _
    %2082 = vsyncpa [#allocation3], 1

// kernel: mnist_forward.2
$region0: #{mnist_forward.2}
  #allocation0 [shape = 'u32[]', space=smem, size = 0x4, offset = 0x4, fixed_abs, tag = 'smem constant byte address 0x4 - core index']
  #allocation1 [shape = 'u32[72,128]{1,0:T(1,128)}', space=vmem, size = 0x9000, scoped, tag = 'internal scratch']
  #allocation2 [shape = 'f32[264,32]{1,0:T(8,128)}', space=vmem, size = 0x21000, scoped, tag = 'scratch operand']
  %s0 = inlined_call_operand.vmem [shape: bf16[2,784,9], index: 0, kind: input, shape index: {}]
  %s1 = inlined_call_operand.vmem [shape: bf16[9,32], index: 1, kind: input, shape index: {}]
  %s2 = inlined_call_operand.vmem [shape: f32[1,32], index: 2, kind: input, shape index: {}]
  %s3 = inlined_call_operand.vmem [shape: bf16[288,64], index: 3, kind: input, shape index: {}]
  %s4 = inlined_call_operand.vmem [shape: f32[1,64], index: 4, kind: input, shape index: {}]
  %s5 = inlined_call_operand.vmem [shape: bf16[2,49,64], index: 5, kind: output, shape index: {}]
  %s6 = sld [smem:[#allocation0]]
  $region53: #{mnist_forward.2} parent=0
    _
  %s8 = ssub.s32 1, %s6
  %s9 = scalar_select 0, %s8, %s6
  loop: start=0, step=1, limit=4
  $region2: #{mnist_forward.2} parent=0 // loop_pre_header
    _
  $region3: #{mnist_forward.2} parent=0 // loop_header
    %s11 = sphi 0, %s15
    %p12 = scmp.ge.s32.totalorder %s11, 4
    %s21 = sphi 0, %s23
    %s24 = sphi 0, %s21
    %s25 = sphi 0, %s24
    %s41 = sphi 0, %s25
    %s45 = sphi 0, %s45
    %s47 = sphi 0, %s45
    %s48 = sphi 0, %s47
    %s62 = sphi 0, %s48
    %s66 = sphi 0, %s66
    %s68 = sphi 0, %s66
    %s69 = sphi 0, %s68
    %s83 = sphi 0, %s69
    %s87 = sphi 0, %s87
    %s89 = sphi 0, %s87
    %s90 = sphi 0, %s89
    %s104 = sphi 0, %s90
    %s108 = sphi 0, %s108
    %s110 = sphi 0, %s108
    %s111 = sphi 0, %s110
    %s125 = sphi 0, %s111
    %s131 = sphi 0, %s133
    %s134 = sphi 0, %s131
    %s135 = sphi 0, %s134
    %s151 = sphi 0, %s135
  $region4: #{mnist_forward.2} parent=0 // loop_header_branch
    %14 = sbr.rel (%p12) target = $region8
  $region5: #{mnist_forward.2} parent=0 // loop_body
    %s16 = ssub.s32 %s11, 1
    %s17 = ssub.s32 %s11, 2
    %s18 = sadd.s32 %s11, 1
    %s19 = ssub.s32 %s11, %s18
    %p20 = scmp.eq.s32.totalorder %s19, 0
    %s22 = sadd.s32 %s21, 1
    %s23 = scalar_select %p20, %s21, %s22
    %p26 = pneg %p20
    %p27 = scmp.eq.s32.totalorder %s11, 1
    %p28 = por %p26, %p27
    %p29 = scmp.ne.s32.totalorder %s21, %s24
    %p30 = scmp.eq.s32.totalorder %s11, 0
    %p31 = por %p29, %p30
    %p32 = scmp.ne.s32.totalorder %s21, %s24
    %p33 = scmp.eq.s32.totalorder %s16, 1
    %p34 = por %p32, %p33
    %p35 = scmp.ne.s32.totalorder %s24, %s25
    %p36 = scmp.eq.s32.totalorder %s16, 0
    %p37 = por %p35, %p36
    %p38 = scmp.ne.s32.totalorder %s24, %s25
    %p39 = scmp.eq.s32.totalorder %s17, 1
    %p40 = por %p38, %p39
    %p42 = scmp.ne.s32.totalorder %s25, %s41
    %p43 = scmp.eq.s32.totalorder %s17, 0
    %p44 = por %p42, %p43
    %s46 = sadd.s32 %s45, 1
    %p49 = scmp.eq.s32.totalorder %s11, 1
    %p50 = scmp.ne.s32.totalorder %s45, %s47
    %p51 = scmp.eq.s32.totalorder %s11, 0
    %p52 = por %p50, %p51
    %p53 = scmp.ne.s32.totalorder %s45, %s47
    %p54 = scmp.eq.s32.totalorder %s16, 1
    %p55 = por %p53, %p54
    %p56 = scmp.ne.s32.totalorder %s47, %s48
    %p57 = scmp.eq.s32.totalorder %s16, 0
    %p58 = por %p56, %p57
    %p59 = scmp.ne.s32.totalorder %s47, %s48
    %p60 = scmp.eq.s32.totalorder %s17, 1
    %p61 = por %p59, %p60
    %p63 = scmp.ne.s32.totalorder %s48, %s62
    %p64 = scmp.eq.s32.totalorder %s17, 0
    %p65 = por %p63, %p64
    %s67 = sadd.s32 %s66, 1
    %p70 = scmp.eq.s32.totalorder %s11, 1
    %p71 = scmp.ne.s32.totalorder %s66, %s68
    %p72 = scmp.eq.s32.totalorder %s11, 0
    %p73 = por %p71, %p72
    %p74 = scmp.ne.s32.totalorder %s66, %s68
    %p75 = scmp.eq.s32.totalorder %s16, 1
    %p76 = por %p74, %p75
    %p77 = scmp.ne.s32.totalorder %s68, %s69
    %p78 = scmp.eq.s32.totalorder %s16, 0
    %p79 = por %p77, %p78
    %p80 = scmp.ne.s32.totalorder %s68, %s69
    %p81 = scmp.eq.s32.totalorder %s17, 1
    %p82 = por %p80, %p81
    %p84 = scmp.ne.s32.totalorder %s69, %s83
    %p85 = scmp.eq.s32.totalorder %s17, 0
    %p86 = por %p84, %p85
    %s88 = sadd.s32 %s87, 1
    %p91 = scmp.eq.s32.totalorder %s11, 1
    %p92 = scmp.ne.s32.totalorder %s87, %s89
    %p93 = scmp.eq.s32.totalorder %s11, 0
    %p94 = por %p92, %p93
    %p95 = scmp.ne.s32.totalorder %s87, %s89
    %p96 = scmp.eq.s32.totalorder %s16, 1
    %p97 = por %p95, %p96
    %p98 = scmp.ne.s32.totalorder %s89, %s90
    %p99 = scmp.eq.s32.totalorder %s16, 0
    %p100 = por %p98, %p99
    %p101 = scmp.ne.s32.totalorder %s89, %s90
    %p102 = scmp.eq.s32.totalorder %s17, 1
    %p103 = por %p101, %p102
    %p105 = scmp.ne.s32.totalorder %s90, %s104
    %p106 = scmp.eq.s32.totalorder %s17, 0
    %p107 = por %p105, %p106
    %s109 = sadd.s32 %s108, 1
    %p112 = scmp.eq.s32.totalorder %s11, 1
    %p113 = scmp.ne.s32.totalorder %s108, %s110
    %p114 = scmp.eq.s32.totalorder %s11, 0
    %p115 = por %p113, %p114
    %p116 = scmp.ne.s32.totalorder %s108, %s110
    %p117 = scmp.eq.s32.totalorder %s16, 1
    %p118 = por %p116, %p117
    %p119 = scmp.ne.s32.totalorder %s110, %s111
    %p120 = scmp.eq.s32.totalorder %s16, 0
    %p121 = por %p119, %p120
    %p122 = scmp.ne.s32.totalorder %s110, %s111
    %p123 = scmp.eq.s32.totalorder %s17, 1
    %p124 = por %p122, %p123
    %p126 = scmp.ne.s32.totalorder %s111, %s125
    %p127 = scmp.eq.s32.totalorder %s17, 0
    %p128 = por %p126, %p127
    %s129 = ssub.s32 %s11, %s18
    %p130 = scmp.eq.s32.totalorder %s129, 0
    %s132 = sadd.s32 %s131, 1
    %s133 = scalar_select %p130, %s131, %s132
    %p136 = pneg %p130
    %p137 = scmp.eq.s32.totalorder %s11, 1
    %p138 = por %p136, %p137
    %p139 = scmp.ne.s32.totalorder %s131, %s134
    %p140 = scmp.eq.s32.totalorder %s11, 0
    %p141 = por %p139, %p140
    %p142 = scmp.ne.s32.totalorder %s131, %s134
    %p143 = scmp.eq.s32.totalorder %s16, 1
    %p144 = por %p142, %p143
    %p145 = scmp.ne.s32.totalorder %s134, %s135
    %p146 = scmp.eq.s32.totalorder %s16, 0
    %p147 = por %p145, %p146
    %p148 = scmp.ne.s32.totalorder %s134, %s135
    %p149 = scmp.eq.s32.totalorder %s17, 1
    %p150 = por %p148, %p149
    %p152 = scmp.ne.s32.totalorder %s135, %s151
    %p153 = scmp.eq.s32.totalorder %s17, 0
    %p154 = por %p152, %p153
    %p155 = scmp.le.s32.totalorder 1, %s11
    %p156 = scmp.lt.s32.totalorder %s11, 3
    %p157 = pnand %p155, %p156
    %p158 = pneg %p157
    // Predicated region
    $region9: #{mnist_forward.2} parent=5 // pred_check
      _
    $region10: #{mnist_forward.2} parent=5 // pred_check_branch
      %160 = sbr.rel (%p157) target = $region12
    $region11: #{mnist_forward.2} parent=5 // pred_region
      %s161 = ssub.s32 %s11, 1
      // Predicated region
      $region13: #{mnist_forward.2} parent=11 // pred_check
        %p162 = pneg %p58
      $region14: #{mnist_forward.2} parent=11 // pred_check_branch
        %164 = sbr.rel (%p162) target = $region16
      $region15: #{mnist_forward.2} parent=11 // pred_region
        _
      $region16: #{mnist_forward.2} parent=11 // pred_fallthru
        _
      // Predicated region
      $region17: #{mnist_forward.2} parent=11 // pred_check
        %p165 = pneg %p79
      $region18: #{mnist_forward.2} parent=11 // pred_check_branch
        %167 = sbr.rel (%p165) target = $region20
      $region19: #{mnist_forward.2} parent=11 // pred_region
        _
      $region20: #{mnist_forward.2} parent=11 // pred_fallthru
        _
      // Predicated region
      $region21: #{mnist_forward.2} parent=11 // pred_check
        %p168 = pneg %p100
      $region22: #{mnist_forward.2} parent=11 // pred_check_branch
        %170 = sbr.rel (%p168) target = $region24
      $region23: #{mnist_forward.2} parent=11 // pred_region
        _
      $region24: #{mnist_forward.2} parent=11 // pred_fallthru
        _
      // Predicated region
      $region25: #{mnist_forward.2} parent=11 // pred_check
        %p171 = pneg %p121
      $region26: #{mnist_forward.2} parent=11 // pred_check_branch
        %173 = sbr.rel (%p171) target = $region28
      $region27: #{mnist_forward.2} parent=11 // pred_region
        _
      $region28: #{mnist_forward.2} parent=11 // pred_fallthru
        _
    $region12: #{mnist_forward.2} parent=5 // pred_fallthru
      _
    %p174 = scmp.lt.s32.totalorder %s11, 2
    // Predicated region
    $region29: #{mnist_forward.2} parent=5 // pred_check
      %p175 = pneg %p174
    $region30: #{mnist_forward.2} parent=5 // pred_check_branch
      %177 = sbr.rel (%p175) target = $region32
    $region31: #{mnist_forward.2} parent=5 // pred_region
      // Predicated region
      $region33: #{mnist_forward.2} parent=31 // pred_check
        %p178 = pneg %p31
      $region34: #{mnist_forward.2} parent=31 // pred_check_branch
        %180 = sbr.rel (%p178) target = $region36
      $region35: #{mnist_forward.2} parent=31 // pred_region
        %p181 = scmp.lt.s32.totalorder %s11, 1
        %s182 = scalar_select %p181, %s11, 1
        %s183 = smul.addr %s182, 98
        %s184 = smul.addr %s183, 4
        %s185 = scalar_lea.vmem %s0, %s184
      $region36: #{mnist_forward.2} parent=31 // pred_fallthru
        _
    $region32: #{mnist_forward.2} parent=5 // pred_fallthru
      _
    %p186 = scmp.le.s32.totalorder 1, %s11
    %p187 = scmp.lt.s32.totalorder %s11, 3
    %p188 = pnand %p186, %p187
    %p189 = pneg %p188
    // Predicated region
    $region37: #{mnist_forward.2} parent=5 // pred_check
      _
    $region38: #{mnist_forward.2} parent=5 // pred_check_branch
      %191 = sbr.rel (%p188) target = $region40
    $region39: #{mnist_forward.2} parent=5 // pred_region
      %s192 = ssub.s32 %s11, 1
      %p193 = scmp.lt.s32.totalorder %s16, 1
      %s194 = scalar_select %p193, %s16, 1
      %s195 = smul.addr %s194, 98
      %s196 = smul.addr %s195, 4
      %s197 = scalar_lea.vmem %s0, %s196
      %p198 = pneg %p37
      %p199 = pneg %p34
      %p200 = pneg %p58
      %p201 = pneg %p55
      %p202 = pneg %p79
      %p203 = pneg %p76
      %p204 = pneg %p100
      %p205 = pneg %p97
      %p206 = pneg %p121
      %p207 = pneg %p118
      %p208 = pneg %p147
      %p209 = pneg %p144
      %p210 = scmp.lt.s32.totalorder %s16, 1
      %s211 = scalar_select %p210, %s16, 1
      %s212 = smul.addr %s211, 7
      %s213 = smul.addr %s212, 4
      %s214 = scalar_lea.vmem %s5, %s213
      %p215 = scmp.lt.s32.totalorder %s16, 1
      %s216 = scalar_select %p215, %s16, 1
      %s217 = smul.addr %s216, 98
      %s218 = smul.addr %s217, 4
      %s219 = scalar_lea.vmem %s0, %s218
      %p220 = scmp.lt.s32.totalorder %s16, 1
      %s221 = scalar_select %p220, %s16, 1
      %s222 = smul.addr %s221, 7
      %s223 = smul.addr %s222, 4
      %s224 = scalar_lea.vmem %s5, %s223
      %v226 = vld [vmem:[%s219] sm:$0xf]
      %v227 = vld [vmem:[%s219 + $0x4] sm:$0xf]
      %v228 = vld [vmem:[%s219 + $0x8] sm:$0xf]
      %v229 = vld [vmem:[%s219 + $0xc] sm:$0xf]
      %v230 = vld [vmem:[%s219 + $0x10] sm:$0xf]
      %v231 = vld [vmem:[%s219 + $0x14] sm:$0xf]
      %v232 = vld [vmem:[%s219 + $0x18] sm:$0xf]
      %v233 = vld [vmem:[%s219 + $0x1c] sm:$0xf]
      %v234 = vld [vmem:[%s219 + $0x20] sm:$0xf]
      %v235 = vld [vmem:[%s219 + $0x24] sm:$0xf]
      %v236 = vld [vmem:[%s219 + $0x28] sm:$0xf]
      %v237 = vld [vmem:[%s219 + $0x2c] sm:$0xf]
      %v238 = vld [vmem:[%s219 + $0x30] sm:$0xf]
      %v239 = vld [vmem:[%s219 + $0x34] sm:$0xf]
      %v240 = vld [vmem:[%s219 + $0x38] sm:$0xf]
      %v241 = vld [vmem:[%s219 + $0x3c] sm:$0xf]
      %v242 = vld [vmem:[%s219 + $0x40] sm:$0xf]
      %v243 = vld [vmem:[%s219 + $0x44] sm:$0xf]
      %v244 = vld [vmem:[%s219 + $0x48] sm:$0xf]
      %v245 = vld [vmem:[%s219 + $0x4c] sm:$0xf]
      %v246 = vld [vmem:[%s219 + $0x50] sm:$0xf]
      %v247 = vld [vmem:[%s219 + $0x54] sm:$0xf]
      %v248 = vld [vmem:[%s219 + $0x58] sm:$0xf]
      %v249 = vld [vmem:[%s219 + $0x5c] sm:$0xf]
      %v250 = vld [vmem:[%s219 + $0x60] sm:$0xf]
      %v251 = vld [vmem:[%s219 + $0x64] sm:$0xf]
      %v252 = vld [vmem:[%s219 + $0x68] sm:$0xf]
      %v253 = vld [vmem:[%s219 + $0x6c] sm:$0xf]
      %v254 = vld [vmem:[%s219 + $0x70] sm:$0xf]
      %v255 = vld [vmem:[%s219 + $0x74] sm:$0xf]
      %v256 = vld [vmem:[%s219 + $0x78] sm:$0xf]
      %v257 = vld [vmem:[%s219 + $0x7c] sm:$0xf]
      %v258 = vld [vmem:[%s219 + $0x80] sm:$0xf]
      %v259 = vld [vmem:[%s219 + $0x84] sm:$0xf]
      %v260 = vld [vmem:[%s219 + $0x88] sm:$0xf]
      %v261 = vld [vmem:[%s219 + $0x8c] sm:$0xf]
      %v262 = vld [vmem:[%s219 + $0x90] sm:$0xf]
      %v263 = vld [vmem:[%s219 + $0x94] sm:$0xf]
      %v264 = vld [vmem:[%s219 + $0x98] sm:$0xf]
      %v265 = vld [vmem:[%s219 + $0x9c] sm:$0xf]
      %v266 = vld [vmem:[%s219 + $0xa0] sm:$0xf]
      %v267 = vld [vmem:[%s219 + $0xa4] sm:$0xf]
      %v268 = vld [vmem:[%s219 + $0xa8] sm:$0xf]
      %v269 = vld [vmem:[%s219 + $0xac] sm:$0xf]
      %v270 = vld [vmem:[%s219 + $0xb0] sm:$0xf]
      %v271 = vld [vmem:[%s219 + $0xb4] sm:$0xf]
      %v272 = vld [vmem:[%s219 + $0xb8] sm:$0xf]
      %v273 = vld [vmem:[%s219 + $0xbc] sm:$0xf]
      %v274 = vld [vmem:[%s219 + $0xc0] sm:$0xf]
      %v275 = vld [vmem:[%s219 + $0xc4] sm:$0xf]
      %v276 = vld [vmem:[%s219 + $0xc8] sm:$0xf]
      %v277 = vld [vmem:[%s219 + $0xcc] sm:$0xf]
      %v278 = vld [vmem:[%s219 + $0xd0] sm:$0xf]
      %v279 = vld [vmem:[%s219 + $0xd4] sm:$0xf]
      %v280 = vld [vmem:[%s219 + $0xd8] sm:$0xf]
      %v281 = vld [vmem:[%s219 + $0xdc] sm:$0xf]
      %v282 = vld [vmem:[%s219 + $0xe0] sm:$0xf]
      %v283 = vld [vmem:[%s219 + $0xe4] sm:$0xf]
      %v284 = vld [vmem:[%s219 + $0xe8] sm:$0xf]
      %v285 = vld [vmem:[%s219 + $0xec] sm:$0xf]
      %v286 = vld [vmem:[%s219 + $0xf0] sm:$0xf]
      %v287 = vld [vmem:[%s219 + $0xf4] sm:$0xf]
      %v288 = vld [vmem:[%s219 + $0xf8] sm:$0xf]
      %v289 = vld [vmem:[%s219 + $0xfc] sm:$0xf]
      %v290 = vld [vmem:[%s219 + $0x100] sm:$0xf]
      %v291 = vld [vmem:[%s219 + $0x104] sm:$0xf]
      %v292 = vld [vmem:[%s219 + $0x108] sm:$0xf]
      %v293 = vld [vmem:[%s219 + $0x10c] sm:$0xf]
      %v294 = vld [vmem:[%s219 + $0x110] sm:$0xf]
      %v295 = vld [vmem:[%s219 + $0x114] sm:$0xf]
      %v296 = vld [vmem:[%s219 + $0x118] sm:$0xf]
      %v297 = vld [vmem:[%s219 + $0x11c] sm:$0xf]
      %v298 = vld [vmem:[%s219 + $0x120] sm:$0xf]
      %v299 = vld [vmem:[%s219 + $0x124] sm:$0xf]
      %v300 = vld [vmem:[%s219 + $0x128] sm:$0xf]
      %v301 = vld [vmem:[%s219 + $0x12c] sm:$0xf]
      %v302 = vld [vmem:[%s219 + $0x130] sm:$0xf]
      %v303 = vld [vmem:[%s219 + $0x134] sm:$0xf]
      %v304 = vld [vmem:[%s219 + $0x138] sm:$0xf]
      %v305 = vld [vmem:[%s219 + $0x13c] sm:$0xf]
      %v306 = vld [vmem:[%s219 + $0x140] sm:$0xf]
      %v307 = vld [vmem:[%s219 + $0x144] sm:$0xf]
      %v308 = vld [vmem:[%s219 + $0x148] sm:$0xf]
      %v309 = vld [vmem:[%s219 + $0x14c] sm:$0xf]
      %v310 = vld [vmem:[%s219 + $0x150] sm:$0xf]
      %v311 = vld [vmem:[%s219 + $0x154] sm:$0xf]
      %v312 = vld [vmem:[%s219 + $0x158] sm:$0xf]
      %v313 = vld [vmem:[%s219 + $0x15c] sm:$0xf]
      %v314 = vld [vmem:[%s219 + $0x160] sm:$0xf]
      %v315 = vld [vmem:[%s219 + $0x164] sm:$0xf]
      %v316 = vld [vmem:[%s219 + $0x168] sm:$0xf]
      %v317 = vld [vmem:[%s219 + $0x16c] sm:$0xf]
      %v318 = vld [vmem:[%s219 + $0x170] sm:$0xf]
      %v319 = vld [vmem:[%s219 + $0x174] sm:$0xf]
      %v320 = vld [vmem:[%s219 + $0x178] sm:$0xf]
      %v321 = vld [vmem:[%s219 + $0x17c] sm:$0xf]
      %v322 = vld [vmem:[%s219 + $0x180] sm:$0xf]
      %v323 = vld [vmem:[%s219 + $0x184] sm:$0xf]
      %v324 = vld [vmem:[%s1] sm:$0xf]
      %v325 = vld [vmem:[%s1 + $0x4] sm:$0x1]
      %v326 = vld [vmem:[%s2] sm:$0x1]
      %v328 = vperm.slane %v326, 0
      %v428 = vunpack.c.l.b16 %v226
      %v429 = vunpack.c.l.b16 %v227
      %v430 = vunpack.c.l.b16 %v228
      %v431 = vunpack.c.l.b16 %v229
      %v432 = vunpack.c.l.b16 %v230
      %v433 = vunpack.c.l.b16 %v231
      %v434 = vunpack.c.l.b16 %v232
      %v435 = vunpack.c.l.b16 %v233
      %v436 = vunpack.c.l.b16 %v234
      %v437 = vunpack.c.l.b16 %v235
      %v438 = vunpack.c.l.b16 %v236
      %v439 = vunpack.c.l.b16 %v237
      %v440 = vunpack.c.l.b16 %v238
      %v441 = vunpack.c.l.b16 %v239
      %v442 = vunpack.c.l.b16 %v240
      %v443 = vunpack.c.l.b16 %v241
      %v444 = vunpack.c.l.b16 %v242
      %v445 = vunpack.c.l.b16 %v243
      %v446 = vunpack.c.l.b16 %v244
      %v447 = vunpack.c.l.b16 %v245
      %v448 = vunpack.c.l.b16 %v246
      %v449 = vunpack.c.l.b16 %v247
      %v450 = vunpack.c.l.b16 %v248
      %v451 = vunpack.c.l.b16 %v249
      %v452 = vunpack.c.l.b16 %v250
      %v453 = vunpack.c.l.b16 %v251
      %v454 = vunpack.c.l.b16 %v252
      %v455 = vunpack.c.l.b16 %v253
      %v456 = vunpack.c.l.b16 %v254
      %v457 = vunpack.c.l.b16 %v255
      %v458 = vunpack.c.l.b16 %v256
      %v459 = vunpack.c.l.b16 %v257
      %v460 = vunpack.c.l.b16 %v258
      %v461 = vunpack.c.l.b16 %v259
      %v462 = vunpack.c.l.b16 %v260
      %v463 = vunpack.c.l.b16 %v261
      %v464 = vunpack.c.l.b16 %v262
      %v465 = vunpack.c.l.b16 %v263
      %v466 = vunpack.c.l.b16 %v264
      %v467 = vunpack.c.l.b16 %v265
      %v468 = vunpack.c.l.b16 %v266
      %v469 = vunpack.c.l.b16 %v267
      %v470 = vunpack.c.l.b16 %v268
      %v471 = vunpack.c.l.b16 %v269
      %v472 = vunpack.c.l.b16 %v270
      %v473 = vunpack.c.l.b16 %v271
      %v474 = vunpack.c.l.b16 %v272
      %v475 = vunpack.c.l.b16 %v273
      %v476 = vunpack.c.l.b16 %v274
      %v477 = vunpack.c.l.b16 %v275
      %v478 = vunpack.c.l.b16 %v276
      %v479 = vunpack.c.l.b16 %v277
      %v480 = vunpack.c.l.b16 %v278
      %v481 = vunpack.c.l.b16 %v279
      %v482 = vunpack.c.l.b16 %v280
      %v483 = vunpack.c.l.b16 %v281
      %v484 = vunpack.c.l.b16 %v282
      %v485 = vunpack.c.l.b16 %v283
      %v486 = vunpack.c.l.b16 %v284
      %v487 = vunpack.c.l.b16 %v285
      %v488 = vunpack.c.l.b16 %v286
      %v489 = vunpack.c.l.b16 %v287
      %v490 = vunpack.c.l.b16 %v288
      %v491 = vunpack.c.l.b16 %v289
      %v492 = vunpack.c.l.b16 %v290
      %v493 = vunpack.c.l.b16 %v291
      %v494 = vunpack.c.l.b16 %v292
      %v495 = vunpack.c.l.b16 %v293
      %v496 = vunpack.c.l.b16 %v294
      %v497 = vunpack.c.l.b16 %v295
      %v498 = vunpack.c.l.b16 %v296
      %v499 = vunpack.c.l.b16 %v297
      %v500 = vunpack.c.l.b16 %v298
      %v501 = vunpack.c.l.b16 %v299
      %v502 = vunpack.c.l.b16 %v300
      %v503 = vunpack.c.l.b16 %v301
      %v504 = vunpack.c.l.b16 %v302
      %v505 = vunpack.c.l.b16 %v303
      %v506 = vunpack.c.l.b16 %v304
      %v507 = vunpack.c.l.b16 %v305
      %v508 = vunpack.c.l.b16 %v306
      %v509 = vunpack.c.l.b16 %v307
      %v510 = vunpack.c.l.b16 %v308
      %v511 = vunpack.c.l.b16 %v309
      %v512 = vunpack.c.l.b16 %v310
      %v513 = vunpack.c.l.b16 %v311
      %v514 = vunpack.c.l.b16 %v312
      %v515 = vunpack.c.l.b16 %v313
      %v516 = vunpack.c.l.b16 %v314
      %v517 = vunpack.c.l.b16 %v315
      %v518 = vunpack.c.l.b16 %v316
      %v519 = vunpack.c.l.b16 %v317
      %v520 = vunpack.c.l.b16 %v318
      %v521 = vunpack.c.l.b16 %v319
      %v522 = vunpack.c.l.b16 %v320
      %v523 = vunpack.c.l.b16 %v321
      %v524 = vunpack.c.l.b16 %v322
      %v525 = vunpack.c.l.b16 %v323
      %v526 = vpack.c.b16 %v429, %v428
      %v527 = vpack.c.b16 %v431, %v430
      %v528 = vpack.c.b16 %v433, %v432
      %v529 = vpack.c.b16 %v435, %v434
      %v530 = vpack.c.b16 %v437, %v436
      %v531 = vpack.c.b16 %v439, %v438
      %v532 = vpack.c.b16 %v441, %v440
      %v533 = vpack.c.b16 %v443, %v442
      %v534 = vpack.c.b16 %v445, %v444
      %v535 = vpack.c.b16 %v447, %v446
      %v536 = vpack.c.b16 %v449, %v448
      %v537 = vpack.c.b16 %v451, %v450
      %v538 = vpack.c.b16 %v453, %v452
      %v539 = vpack.c.b16 %v455, %v454
      %v540 = vpack.c.b16 %v457, %v456
      %v541 = vpack.c.b16 %v459, %v458
      %v542 = vpack.c.b16 %v461, %v460
      %v543 = vpack.c.b16 %v463, %v462
      %v544 = vpack.c.b16 %v465, %v464
      %v545 = vpack.c.b16 %v467, %v466
      %v546 = vpack.c.b16 %v469, %v468
      %v547 = vpack.c.b16 %v471, %v470
      %v548 = vpack.c.b16 %v473, %v472
      %v549 = vpack.c.b16 %v475, %v474
      %v550 = vpack.c.b16 %v477, %v476
      %v551 = vpack.c.b16 %v479, %v478
      %v552 = vpack.c.b16 %v481, %v480
      %v553 = vpack.c.b16 %v483, %v482
      %v554 = vpack.c.b16 %v485, %v484
      %v555 = vpack.c.b16 %v487, %v486
      %v556 = vpack.c.b16 %v489, %v488
      %v557 = vpack.c.b16 %v491, %v490
      %v558 = vpack.c.b16 %v493, %v492
      %v559 = vpack.c.b16 %v495, %v494
      %v560 = vpack.c.b16 %v497, %v496
      %v561 = vpack.c.b16 %v499, %v498
      %v562 = vpack.c.b16 %v501, %v500
      %v563 = vpack.c.b16 %v503, %v502
      %v564 = vpack.c.b16 %v505, %v504
      %v565 = vpack.c.b16 %v507, %v506
      %v566 = vpack.c.b16 %v509, %v508
      %v567 = vpack.c.b16 %v511, %v510
      %v568 = vpack.c.b16 %v513, %v512
      %v569 = vpack.c.b16 %v515, %v514
      %v570 = vpack.c.b16 %v517, %v516
      %v571 = vpack.c.b16 %v519, %v518
      %v572 = vpack.c.b16 %v521, %v520
      %v573 = vpack.c.b16 %v523, %v522
      %v574 = vpack.c.b16 %v525, %v524
      %v577 = vunpack.c.l.b16 %v324
      %v578 = vunpack.c.l.b16 %v325
      %v579 = vpack.c.b16 %v578, %v577
      %vm580 = vcmask 72704
      %v582 = vsel %vm580, %v526, 0
      %v585 = vsel %vm580, %v527, 0
      %v588 = vsel %vm580, %v528, 0
      %v591 = vsel %vm580, %v529, 0
      %v594 = vsel %vm580, %v530, 0
      %v597 = vsel %vm580, %v531, 0
      %v600 = vsel %vm580, %v532, 0
      %v603 = vsel %vm580, %v533, 0
      %v606 = vsel %vm580, %v534, 0
      %v609 = vsel %vm580, %v535, 0
      %v612 = vsel %vm580, %v536, 0
      %v615 = vsel %vm580, %v537, 0
      %v618 = vsel %vm580, %v538, 0
      %v621 = vsel %vm580, %v539, 0
      %v624 = vsel %vm580, %v540, 0
      %v627 = vsel %vm580, %v541, 0
      %v630 = vsel %vm580, %v542, 0
      %v633 = vsel %vm580, %v543, 0
      %v636 = vsel %vm580, %v544, 0
      %v639 = vsel %vm580, %v545, 0
      %v642 = vsel %vm580, %v546, 0
      %v645 = vsel %vm580, %v547, 0
      %v648 = vsel %vm580, %v548, 0
      %v651 = vsel %vm580, %v549, 0
      %v654 = vsel %vm580, %v550, 0
      %v657 = vsel %vm580, %v551, 0
      %v660 = vsel %vm580, %v552, 0
      %v663 = vsel %vm580, %v553, 0
      %v666 = vsel %vm580, %v554, 0
      %v669 = vsel %vm580, %v555, 0
      %v672 = vsel %vm580, %v556, 0
      %v675 = vsel %vm580, %v557, 0
      %v678 = vsel %vm580, %v558, 0
      %v681 = vsel %vm580, %v559, 0
      %v684 = vsel %vm580, %v560, 0
      %v687 = vsel %vm580, %v561, 0
      %v690 = vsel %vm580, %v562, 0
      %v693 = vsel %vm580, %v563, 0
      %v696 = vsel %vm580, %v564, 0
      %v699 = vsel %vm580, %v565, 0
      %v702 = vsel %vm580, %v566, 0
      %v705 = vsel %vm580, %v567, 0
      %v708 = vsel %vm580, %v568, 0
      %v711 = vsel %vm580, %v569, 0
      %v714 = vsel %vm580, %v570, 0
      %v717 = vsel %vm580, %v571, 0
      %v720 = vsel %vm580, %v572, 0
      %v723 = vsel %vm580, %v573, 0
      %v726 = vsel %vm580, %v574, 0
      %vm728 = vcmask 1043456
      %vm729 = vcmask 1044480
      %v730 = vsel %vm728, 4294967295, 65535
      %v731 = vsel %vm729, %v730, 0
      %v733 = vand.u32 %v579, %v731
      %735 = vmatpush.bf16.msra.mxu0 0
      %736 = vmatpush.bf16.msra.mxu0 0
      %737 = vmatpush.bf16.msra.mxu0 0
      %738 = vmatpush.bf16.msra.mxu0 0
      %739 = vmatpush.bf16.msra.mxu0 0
      %740 = vmatpush.bf16.msra.mxu0 0
      %741 = vmatpush.bf16.msra.mxu0 0
      %742 = vmatpush.bf16.msra.mxu0 %v733
      %743 = vmatmul.bf16.gmra.mxu0 %v582
      %v744 = vpop.f32.mrf.mxu0
      %v745 = vadd.f32 %v328, %v744
      %v746 = vpop.f32.mrf.mxu0
      %v747 = vadd.f32 %v328, %v746
      %748 = vmatmul.bf16.gmra.mxu0 %v585
      %v749 = vpop.f32.mrf.mxu0
      %v750 = vadd.f32 %v328, %v749
      %v751 = vpop.f32.mrf.mxu0
      %v752 = vadd.f32 %v328, %v751
      %753 = vmatmul.bf16.gmra.mxu0 %v588
      %v754 = vpop.f32.mrf.mxu0
      %v755 = vadd.f32 %v328, %v754
      %v756 = vpop.f32.mrf.mxu0
      %v757 = vadd.f32 %v328, %v756
      %758 = vmatmul.bf16.gmra.mxu0 %v591
      %v759 = vpop.f32.mrf.mxu0
      %v760 = vadd.f32 %v328, %v759
      %v761 = vpop.f32.mrf.mxu0
      %v762 = vadd.f32 %v328, %v761
      %763 = vmatmul.bf16.gmra.mxu0 %v594
      %v764 = vpop.f32.mrf.mxu0
      %v765 = vadd.f32 %v328, %v764
      %v766 = vpop.f32.mrf.mxu0
      %v767 = vadd.f32 %v328, %v766
      %768 = vmatmul.bf16.gmra.mxu0 %v597
      %v769 = vpop.f32.mrf.mxu0
      %v770 = vadd.f32 %v328, %v769
      %v771 = vpop.f32.mrf.mxu0
      %v772 = vadd.f32 %v328, %v771
      %773 = vmatmul.bf16.gmra.mxu0 %v600
      %v774 = vpop.f32.mrf.mxu0
      %v775 = vadd.f32 %v328, %v774
      %v776 = vpop.f32.mrf.mxu0
      %v777 = vadd.f32 %v328, %v776
      %778 = vmatmul.bf16.gmra.mxu0 %v603
      %v779 = vpop.f32.mrf.mxu0
      %v780 = vadd.f32 %v328, %v779
      %v781 = vpop.f32.mrf.mxu0
      %v782 = vadd.f32 %v328, %v781
      %783 = vmatmul.bf16.gmra.mxu0 %v606
      %v784 = vpop.f32.mrf.mxu0
      %v785 = vadd.f32 %v328, %v784
      %v786 = vpop.f32.mrf.mxu0
      %v787 = vadd.f32 %v328, %v786
      %788 = vmatmul.bf16.gmra.mxu0 %v609
      %v789 = vpop.f32.mrf.mxu0
      %v790 = vadd.f32 %v328, %v789
      %v791 = vpop.f32.mrf.mxu0
      %v792 = vadd.f32 %v328, %v791
      %793 = vmatmul.bf16.gmra.mxu0 %v612
      %v794 = vpop.f32.mrf.mxu0
      %v795 = vadd.f32 %v328, %v794
      %v796 = vpop.f32.mrf.mxu0
      %v797 = vadd.f32 %v328, %v796
      %798 = vmatmul.bf16.gmra.mxu0 %v615
      %v799 = vpop.f32.mrf.mxu0
      %v800 = vadd.f32 %v328, %v799
      %v801 = vpop.f32.mrf.mxu0
      %v802 = vadd.f32 %v328, %v801
      %803 = vmatmul.bf16.gmra.mxu0 %v618
      %v804 = vpop.f32.mrf.mxu0
      %v805 = vadd.f32 %v328, %v804
      %v806 = vpop.f32.mrf.mxu0
      %v807 = vadd.f32 %v328, %v806
      %808 = vmatmul.bf16.gmra.mxu0 %v621
      %v809 = vpop.f32.mrf.mxu0
      %v810 = vadd.f32 %v328, %v809
      %v811 = vpop.f32.mrf.mxu0
      %v812 = vadd.f32 %v328, %v811
      %813 = vmatmul.bf16.gmra.mxu0 %v624
      %v814 = vpop.f32.mrf.mxu0
      %v815 = vadd.f32 %v328, %v814
      %v816 = vpop.f32.mrf.mxu0
      %v817 = vadd.f32 %v328, %v816
      %818 = vmatmul.bf16.gmra.mxu0 %v627
      %v819 = vpop.f32.mrf.mxu0
      %v820 = vadd.f32 %v328, %v819
      %v821 = vpop.f32.mrf.mxu0
      %v822 = vadd.f32 %v328, %v821
      %823 = vmatmul.bf16.gmra.mxu0 %v630
      %v824 = vpop.f32.mrf.mxu0
      %v825 = vadd.f32 %v328, %v824
      %v826 = vpop.f32.mrf.mxu0
      %v827 = vadd.f32 %v328, %v826
      %828 = vmatmul.bf16.gmra.mxu0 %v633
      %v829 = vpop.f32.mrf.mxu0
      %v830 = vadd.f32 %v328, %v829
      %v831 = vpop.f32.mrf.mxu0
      %v832 = vadd.f32 %v328, %v831
      %833 = vmatmul.bf16.gmra.mxu0 %v636
      %v834 = vpop.f32.mrf.mxu0
      %v835 = vadd.f32 %v328, %v834
      %v836 = vpop.f32.mrf.mxu0
      %v837 = vadd.f32 %v328, %v836
      %838 = vmatmul.bf16.gmra.mxu0 %v639
      %v839 = vpop.f32.mrf.mxu0
      %v840 = vadd.f32 %v328, %v839
      %v841 = vpop.f32.mrf.mxu0
      %v842 = vadd.f32 %v328, %v841
      %843 = vmatmul.bf16.gmra.mxu0 %v642
      %v844 = vpop.f32.mrf.mxu0
      %v845 = vadd.f32 %v328, %v844
      %v846 = vpop.f32.mrf.mxu0
      %v847 = vadd.f32 %v328, %v846
      %848 = vmatmul.bf16.gmra.mxu0 %v645
      %v849 = vpop.f32.mrf.mxu0
      %v850 = vadd.f32 %v328, %v849
      %v851 = vpop.f32.mrf.mxu0
      %v852 = vadd.f32 %v328, %v851
      %853 = vmatmul.bf16.gmra.mxu0 %v648
      %v854 = vpop.f32.mrf.mxu0
      %v855 = vadd.f32 %v328, %v854
      %v856 = vpop.f32.mrf.mxu0
      %v857 = vadd.f32 %v328, %v856
      %858 = vmatmul.bf16.gmra.mxu0 %v651
      %v859 = vpop.f32.mrf.mxu0
      %v860 = vadd.f32 %v328, %v859
      %v861 = vpop.f32.mrf.mxu0
      %v862 = vadd.f32 %v328, %v861
      %863 = vmatmul.bf16.gmra.mxu0 %v654
      %v864 = vpop.f32.mrf.mxu0
      %v865 = vadd.f32 %v328, %v864
      %v866 = vpop.f32.mrf.mxu0
      %v867 = vadd.f32 %v328, %v866
      %868 = vmatmul.bf16.gmra.mxu0 %v657
      %v869 = vpop.f32.mrf.mxu0
      %v870 = vadd.f32 %v328, %v869
      %v871 = vpop.f32.mrf.mxu0
      %v872 = vadd.f32 %v328, %v871
      %873 = vmatmul.bf16.gmra.mxu0 %v660
      %v874 = vpop.f32.mrf.mxu0
      %v875 = vadd.f32 %v328, %v874
      %v876 = vpop.f32.mrf.mxu0
      %v877 = vadd.f32 %v328, %v876
      %878 = vmatmul.bf16.gmra.mxu0 %v663
      %v879 = vpop.f32.mrf.mxu0
      %v880 = vadd.f32 %v328, %v879
      %v881 = vpop.f32.mrf.mxu0
      %v882 = vadd.f32 %v328, %v881
      %883 = vmatmul.bf16.gmra.mxu0 %v666
      %v884 = vpop.f32.mrf.mxu0
      %v885 = vadd.f32 %v328, %v884
      %v886 = vpop.f32.mrf.mxu0
      %v887 = vadd.f32 %v328, %v886
      %888 = vmatmul.bf16.gmra.mxu0 %v669
      %v889 = vpop.f32.mrf.mxu0
      %v890 = vadd.f32 %v328, %v889
      %v891 = vpop.f32.mrf.mxu0
      %v892 = vadd.f32 %v328, %v891
      %893 = vmatmul.bf16.gmra.mxu0 %v672
      %v894 = vpop.f32.mrf.mxu0
      %v895 = vadd.f32 %v328, %v894
      %v896 = vpop.f32.mrf.mxu0
      %v897 = vadd.f32 %v328, %v896
      %898 = vmatmul.bf16.gmra.mxu0 %v675
      %v899 = vpop.f32.mrf.mxu0
      %v900 = vadd.f32 %v328, %v899
      %v901 = vpop.f32.mrf.mxu0
      %v902 = vadd.f32 %v328, %v901
      %903 = vmatmul.bf16.gmra.mxu0 %v678
      %v904 = vpop.f32.mrf.mxu0
      %v905 = vadd.f32 %v328, %v904
      %v906 = vpop.f32.mrf.mxu0
      %v907 = vadd.f32 %v328, %v906
      %908 = vmatmul.bf16.gmra.mxu0 %v681
      %v909 = vpop.f32.mrf.mxu0
      %v910 = vadd.f32 %v328, %v909
      %v911 = vpop.f32.mrf.mxu0
      %v912 = vadd.f32 %v328, %v911
      %913 = vmatmul.bf16.gmra.mxu0 %v684
      %v914 = vpop.f32.mrf.mxu0
      %v915 = vadd.f32 %v328, %v914
      %v916 = vpop.f32.mrf.mxu0
      %v917 = vadd.f32 %v328, %v916
      %918 = vmatmul.bf16.gmra.mxu0 %v687
      %v919 = vpop.f32.mrf.mxu0
      %v920 = vadd.f32 %v328, %v919
      %v921 = vpop.f32.mrf.mxu0
      %v922 = vadd.f32 %v328, %v921
      %923 = vmatmul.bf16.gmra.mxu0 %v690
      %v924 = vpop.f32.mrf.mxu0
      %v925 = vadd.f32 %v328, %v924
      %v926 = vpop.f32.mrf.mxu0
      %v927 = vadd.f32 %v328, %v926
      %928 = vmatmul.bf16.gmra.mxu0 %v693
      %v929 = vpop.f32.mrf.mxu0
      %v930 = vadd.f32 %v328, %v929
      %v931 = vpop.f32.mrf.mxu0
      %v932 = vadd.f32 %v328, %v931
      %933 = vmatmul.bf16.gmra.mxu0 %v696
      %v934 = vpop.f32.mrf.mxu0
      %v935 = vadd.f32 %v328, %v934
      %v936 = vpop.f32.mrf.mxu0
      %v937 = vadd.f32 %v328, %v936
      %938 = vmatmul.bf16.gmra.mxu0 %v699
      %v939 = vpop.f32.mrf.mxu0
      %v940 = vadd.f32 %v328, %v939
      %v941 = vpop.f32.mrf.mxu0
      %v942 = vadd.f32 %v328, %v941
      %943 = vmatmul.bf16.gmra.mxu0 %v702
      %v944 = vpop.f32.mrf.mxu0
      %v945 = vadd.f32 %v328, %v944
      %v946 = vpop.f32.mrf.mxu0
      %v947 = vadd.f32 %v328, %v946
      %948 = vmatmul.bf16.gmra.mxu0 %v705
      %v949 = vpop.f32.mrf.mxu0
      %v950 = vadd.f32 %v328, %v949
      %v951 = vpop.f32.mrf.mxu0
      %v952 = vadd.f32 %v328, %v951
      %953 = vmatmul.bf16.gmra.mxu0 %v708
      %v954 = vpop.f32.mrf.mxu0
      %v955 = vadd.f32 %v328, %v954
      %v956 = vpop.f32.mrf.mxu0
      %v957 = vadd.f32 %v328, %v956
      %958 = vmatmul.bf16.gmra.mxu0 %v711
      %v959 = vpop.f32.mrf.mxu0
      %v960 = vadd.f32 %v328, %v959
      %v961 = vpop.f32.mrf.mxu0
      %v962 = vadd.f32 %v328, %v961
      %963 = vmatmul.bf16.gmra.mxu0 %v714
      %v964 = vpop.f32.mrf.mxu0
      %v965 = vadd.f32 %v328, %v964
      %v966 = vpop.f32.mrf.mxu0
      %v967 = vadd.f32 %v328, %v966
      %968 = vmatmul.bf16.gmra.mxu0 %v717
      %v969 = vpop.f32.mrf.mxu0
      %v970 = vadd.f32 %v328, %v969
      %v971 = vpop.f32.mrf.mxu0
      %v972 = vadd.f32 %v328, %v971
      %973 = vmatmul.bf16.gmra.mxu0 %v720
      %v974 = vpop.f32.mrf.mxu0
      %v975 = vadd.f32 %v328, %v974
      %v976 = vpop.f32.mrf.mxu0
      %v977 = vadd.f32 %v328, %v976
      %978 = vmatmul.bf16.gmra.mxu0 %v723
      %v979 = vpop.f32.mrf.mxu0
      %v980 = vadd.f32 %v328, %v979
      %v981 = vpop.f32.mrf.mxu0
      %v982 = vadd.f32 %v328, %v981
      %983 = vmatmul.bf16.gmra.mxu0 %v726
      %v984 = vpop.f32.mrf.mxu0
      %v985 = vadd.f32 %v328, %v984
      %v986 = vpop.f32.mrf.mxu0
      %v987 = vadd.f32 %v328, %v986
      %988 = vdwg.mxu0
      %v989 = vmax.f32 %v745, 0.0
      %v990 = vmax.f32 %v747, 0.0
      %v991 = vmax.f32 %v750, 0.0
      %v992 = vmax.f32 %v752, 0.0
      %v993 = vmax.f32 %v755, 0.0
      %v994 = vmax.f32 %v757, 0.0
      %v995 = vmax.f32 %v760, 0.0
      %v996 = vmax.f32 %v762, 0.0
      %v997 = vmax.f32 %v765, 0.0
      %v998 = vmax.f32 %v767, 0.0
      %v999 = vmax.f32 %v770, 0.0
      %v1000 = vmax.f32 %v772, 0.0
      %v1001 = vmax.f32 %v775, 0.0
      %v1002 = vmax.f32 %v777, 0.0
      %v1003 = vmax.f32 %v780, 0.0
      %v1004 = vmax.f32 %v782, 0.0
      %v1005 = vmax.f32 %v785, 0.0
      %v1006 = vmax.f32 %v787, 0.0
      %v1007 = vmax.f32 %v790, 0.0
      %v1008 = vmax.f32 %v792, 0.0
      %v1009 = vmax.f32 %v795, 0.0
      %v1010 = vmax.f32 %v797, 0.0
      %v1011 = vmax.f32 %v800, 0.0
      %v1012 = vmax.f32 %v802, 0.0
      %v1013 = vmax.f32 %v805, 0.0
      %v1014 = vmax.f32 %v807, 0.0
      %v1015 = vmax.f32 %v810, 0.0
      %v1016 = vmax.f32 %v812, 0.0
      %v1017 = vmax.f32 %v815, 0.0
      %v1018 = vmax.f32 %v817, 0.0
      %v1019 = vmax.f32 %v820, 0.0
      %v1020 = vmax.f32 %v822, 0.0
      %v1021 = vmax.f32 %v825, 0.0
      %v1022 = vmax.f32 %v827, 0.0
      %v1023 = vmax.f32 %v830, 0.0
      %v1024 = vmax.f32 %v832, 0.0
      %v1025 = vmax.f32 %v835, 0.0
      %v1026 = vmax.f32 %v837, 0.0
      %v1027 = vmax.f32 %v840, 0.0
      %v1028 = vmax.f32 %v842, 0.0
      %v1029 = vmax.f32 %v845, 0.0
      %v1030 = vmax.f32 %v847, 0.0
      %v1031 = vmax.f32 %v850, 0.0
      %v1032 = vmax.f32 %v852, 0.0
      %v1033 = vmax.f32 %v855, 0.0
      %v1034 = vmax.f32 %v857, 0.0
      %v1035 = vmax.f32 %v860, 0.0
      %v1036 = vmax.f32 %v862, 0.0
      %v1037 = vmax.f32 %v865, 0.0
      %v1038 = vmax.f32 %v867, 0.0
      %v1039 = vmax.f32 %v870, 0.0
      %v1040 = vmax.f32 %v872, 0.0
      %v1041 = vmax.f32 %v875, 0.0
      %v1042 = vmax.f32 %v877, 0.0
      %v1043 = vmax.f32 %v880, 0.0
      %v1044 = vmax.f32 %v882, 0.0
      %v1045 = vmax.f32 %v885, 0.0
      %v1046 = vmax.f32 %v887, 0.0
      %v1047 = vmax.f32 %v890, 0.0
      %v1048 = vmax.f32 %v892, 0.0
      %v1049 = vmax.f32 %v895, 0.0
      %v1050 = vmax.f32 %v897, 0.0
      %v1051 = vmax.f32 %v900, 0.0
      %v1052 = vmax.f32 %v902, 0.0
      %v1053 = vmax.f32 %v905, 0.0
      %v1054 = vmax.f32 %v907, 0.0
      %v1055 = vmax.f32 %v910, 0.0
      %v1056 = vmax.f32 %v912, 0.0
      %v1057 = vmax.f32 %v915, 0.0
      %v1058 = vmax.f32 %v917, 0.0
      %v1059 = vmax.f32 %v920, 0.0
      %v1060 = vmax.f32 %v922, 0.0
      %v1061 = vmax.f32 %v925, 0.0
      %v1062 = vmax.f32 %v927, 0.0
      %v1063 = vmax.f32 %v930, 0.0
      %v1064 = vmax.f32 %v932, 0.0
      %v1065 = vmax.f32 %v935, 0.0
      %v1066 = vmax.f32 %v937, 0.0
      %v1067 = vmax.f32 %v940, 0.0
      %v1068 = vmax.f32 %v942, 0.0
      %v1069 = vmax.f32 %v945, 0.0
      %v1070 = vmax.f32 %v947, 0.0
      %v1071 = vmax.f32 %v950, 0.0
      %v1072 = vmax.f32 %v952, 0.0
      %v1073 = vmax.f32 %v955, 0.0
      %v1074 = vmax.f32 %v957, 0.0
      %v1075 = vmax.f32 %v960, 0.0
      %v1076 = vmax.f32 %v962, 0.0
      %v1077 = vmax.f32 %v965, 0.0
      %v1078 = vmax.f32 %v967, 0.0
      %v1079 = vmax.f32 %v970, 0.0
      %v1080 = vmax.f32 %v972, 0.0
      %v1081 = vmax.f32 %v975, 0.0
      %v1082 = vmax.f32 %v977, 0.0
      %v1083 = vmax.f32 %v980, 0.0
      %v1084 = vmax.f32 %v982, 0.0
      %v1085 = vmax.f32 %v985, 0.0
      %v1086 = vmax.f32 %v987, 0.0
      %v1112 = vrot.slane %v1013, 4
      %v1113 = vrot.slane %v1014, 4
      %v1114 = vsel %vm728, %v1112, %v1113
      %v1115 = vrot.slane %v1015, 4
      %v1116 = vsel %vm728, %v1113, %v1115
      %v1117 = vrot.slane %v1016, 4
      %v1118 = vsel %vm728, %v1115, %v1117
      %v1119 = vrot.slane %v1017, 4
      %v1120 = vsel %vm728, %v1117, %v1119
      %v1121 = vrot.slane %v1018, 4
      %v1122 = vsel %vm728, %v1119, %v1121
      %v1123 = vrot.slane %v1019, 4
      %v1124 = vsel %vm728, %v1121, %v1123
      %v1125 = vrot.slane %v1020, 4
      %v1126 = vsel %vm728, %v1123, %v1125
      %v1127 = vrot.slane %v1021, 4
      %v1128 = vsel %vm728, %v1125, %v1127
      %v1129 = vrot.slane %v1022, 4
      %v1130 = vsel %vm728, %v1127, %v1129
      %v1131 = vrot.slane %v1023, 4
      %v1132 = vsel %vm728, %v1129, %v1131
      %v1133 = vrot.slane %v1024, 4
      %v1134 = vsel %vm728, %v1131, %v1133
      %v1135 = vrot.slane %v1025, 4
      %v1136 = vsel %vm728, %v1133, %v1135
      %v1137 = vrot.slane %v1026, 4
      %v1138 = vsel %vm728, %v1135, %v1137
      %v1139 = vrot.slane %v1027, 4
      %v1140 = vsel %vm728, %v1137, %v1139
      %v1141 = vrot.slane %v1028, 4
      %v1142 = vsel %vm728, %v1139, %v1141
      %v1143 = vrot.slane %v1029, 4
      %v1144 = vsel %vm728, %v1141, %v1143
      %v1145 = vrot.slane %v1030, 4
      %v1146 = vsel %vm728, %v1143, %v1145
      %v1147 = vrot.slane %v1031, 4
      %v1148 = vsel %vm728, %v1145, %v1147
      %v1149 = vrot.slane %v1032, 4
      %v1150 = vsel %vm728, %v1147, %v1149
      %v1151 = vrot.slane %v1033, 4
      %v1152 = vsel %vm728, %v1149, %v1151
      %v1153 = vrot.slane %v1034, 4
      %v1154 = vsel %vm728, %v1151, %v1153
      %v1155 = vrot.slane %v1035, 4
      %v1156 = vsel %vm728, %v1153, %v1155
      %v1157 = vrot.slane %v1036, 4
      %v1158 = vsel %vm728, %v1155, %v1157
      %v1159 = vrot.slane %v1037, 4
      %v1160 = vsel %vm728, %v1157, %v1159
      %v1186 = vmax.f32 %v989, %v1114
      %v1187 = vmax.f32 %v990, %v1116
      %v1188 = vmax.f32 %v991, %v1118
      %v1189 = vmax.f32 %v992, %v1120
      %v1190 = vmax.f32 %v993, %v1122
      %v1191 = vmax.f32 %v994, %v1124
      %v1192 = vmax.f32 %v995, %v1126
      %v1193 = vmax.f32 %v996, %v1128
      %v1194 = vmax.f32 %v997, %v1130
      %v1195 = vmax.f32 %v998, %v1132
      %v1196 = vmax.f32 %v999, %v1134
      %v1197 = vmax.f32 %v1000, %v1136
      %v1198 = vmax.f32 %v1001, %v1138
      %v1199 = vmax.f32 %v1002, %v1140
      %v1200 = vmax.f32 %v1003, %v1142
      %v1201 = vmax.f32 %v1004, %v1144
      %v1202 = vmax.f32 %v1005, %v1146
      %v1203 = vmax.f32 %v1006, %v1148
      %v1204 = vmax.f32 %v1007, %v1150
      %v1205 = vmax.f32 %v1008, %v1152
      %v1206 = vmax.f32 %v1009, %v1154
      %v1207 = vmax.f32 %v1010, %v1156
      %v1208 = vmax.f32 %v1011, %v1158
      %v1209 = vmax.f32 %v1012, %v1160
      %v1210 = vmax.f32 %v1013, %v1159
      %v1236 = vrot.slane %v1062, 4
      %v1237 = vrot.slane %v1063, 4
      %v1238 = vsel %vm728, %v1236, %v1237
      %v1239 = vrot.slane %v1064, 4
      %v1240 = vsel %vm728, %v1237, %v1239
      %v1241 = vrot.slane %v1065, 4
      %v1242 = vsel %vm728, %v1239, %v1241
      %v1243 = vrot.slane %v1066, 4
      %v1244 = vsel %vm728, %v1241, %v1243
      %v1245 = vrot.slane %v1067, 4
      %v1246 = vsel %vm728, %v1243, %v1245
      %v1247 = vrot.slane %v1068, 4
      %v1248 = vsel %vm728, %v1245, %v1247
      %v1249 = vrot.slane %v1069, 4
      %v1250 = vsel %vm728, %v1247, %v1249
      %v1251 = vrot.slane %v1070, 4
      %v1252 = vsel %vm728, %v1249, %v1251
      %v1253 = vrot.slane %v1071, 4
      %v1254 = vsel %vm728, %v1251, %v1253
      %v1255 = vrot.slane %v1072, 4
      %v1256 = vsel %vm728, %v1253, %v1255
      %v1257 = vrot.slane %v1073, 4
      %v1258 = vsel %vm728, %v1255, %v1257
      %v1259 = vrot.slane %v1074, 4
      %v1260 = vsel %vm728, %v1257, %v1259
      %v1261 = vrot.slane %v1075, 4
      %v1262 = vsel %vm728, %v1259, %v1261
      %v1263 = vrot.slane %v1076, 4
      %v1264 = vsel %vm728, %v1261, %v1263
      %v1265 = vrot.slane %v1077, 4
      %v1266 = vsel %vm728, %v1263, %v1265
      %v1267 = vrot.slane %v1078, 4
      %v1268 = vsel %vm728, %v1265, %v1267
      %v1269 = vrot.slane %v1079, 4
      %v1270 = vsel %vm728, %v1267, %v1269
      %v1271 = vrot.slane %v1080, 4
      %v1272 = vsel %vm728, %v1269, %v1271
      %v1273 = vrot.slane %v1081, 4
      %v1274 = vsel %vm728, %v1271, %v1273
      %v1275 = vrot.slane %v1082, 4
      %v1276 = vsel %vm728, %v1273, %v1275
      %v1277 = vrot.slane %v1083, 4
      %v1278 = vsel %vm728, %v1275, %v1277
      %v1279 = vrot.slane %v1084, 4
      %v1280 = vsel %vm728, %v1277, %v1279
      %v1281 = vrot.slane %v1085, 4
      %v1282 = vsel %vm728, %v1279, %v1281
      %v1283 = vrot.slane %v1086, 4
      %v1284 = vsel %vm728, %v1281, %v1283
      %v1310 = vmax.f32 %v1038, %v1238
      %v1311 = vmax.f32 %v1039, %v1240
      %v1312 = vmax.f32 %v1040, %v1242
      %v1313 = vmax.f32 %v1041, %v1244
      %v1314 = vmax.f32 %v1042, %v1246
      %v1315 = vmax.f32 %v1043, %v1248
      %v1316 = vmax.f32 %v1044, %v1250
      %v1317 = vmax.f32 %v1045, %v1252
      %v1318 = vmax.f32 %v1046, %v1254
      %v1319 = vmax.f32 %v1047, %v1256
      %v1320 = vmax.f32 %v1048, %v1258
      %v1321 = vmax.f32 %v1049, %v1260
      %v1322 = vmax.f32 %v1050, %v1262
      %v1323 = vmax.f32 %v1051, %v1264
      %v1324 = vmax.f32 %v1052, %v1266
      %v1325 = vmax.f32 %v1053, %v1268
      %v1326 = vmax.f32 %v1054, %v1270
      %v1327 = vmax.f32 %v1055, %v1272
      %v1328 = vmax.f32 %v1056, %v1274
      %v1329 = vmax.f32 %v1057, %v1276
      %v1330 = vmax.f32 %v1058, %v1278
      %v1331 = vmax.f32 %v1059, %v1280
      %v1332 = vmax.f32 %v1060, %v1282
      %v1333 = vmax.f32 %v1061, %v1284
      %v1334 = vmax.f32 %v1062, %v1283
      %v1335 = vmax.f32 %v1186, %v1310
      %v1336 = vmax.f32 %v1187, %v1311
      %v1337 = vmax.f32 %v1188, %v1312
      %v1338 = vmax.f32 %v1189, %v1313
      %v1339 = vmax.f32 %v1190, %v1314
      %v1340 = vmax.f32 %v1191, %v1315
      %v1341 = vmax.f32 %v1192, %v1316
      %v1342 = vmax.f32 %v1193, %v1317
      %v1343 = vmax.f32 %v1194, %v1318
      %v1344 = vmax.f32 %v1195, %v1319
      %v1345 = vmax.f32 %v1196, %v1320
      %v1346 = vmax.f32 %v1197, %v1321
      %v1347 = vmax.f32 %v1198, %v1322
      %v1348 = vmax.f32 %v1199, %v1323
      %v1349 = vmax.f32 %v1200, %v1324
      %v1350 = vmax.f32 %v1201, %v1325
      %v1351 = vmax.f32 %v1202, %v1326
      %v1352 = vmax.f32 %v1203, %v1327
      %v1353 = vmax.f32 %v1204, %v1328
      %v1354 = vmax.f32 %v1205, %v1329
      %v1355 = vmax.f32 %v1206, %v1330
      %v1356 = vmax.f32 %v1207, %v1331
      %v1357 = vmax.f32 %v1208, %v1332
      %v1358 = vmax.f32 %v1209, %v1333
      %v1359 = vmax.f32 %v1210, %v1334
      %vm1360 = vcmask 261120
      %1361 = vst.msk [vmem:[#allocation2] sm:$0xff] %vm1360, 0.0
      %1362 = vst.msk [vmem:[#allocation2 + $0x8] sm:$0xff] %vm1360, 0.0
      %1363 = vst.msk [vmem:[#allocation2 + $0x10] sm:$0xff] %vm1360, 0.0
      %1364 = vst.msk [vmem:[#allocation2 + $0x18] sm:$0xff] %vm1360, 0.0
      %1365 = vst.msk [vmem:[#allocation2 + $0x20] sm:$0xff] %vm1360, 0.0
      %1366 = vst.msk [vmem:[#allocation2 + $0x28] sm:$0xff] %vm1360, 0.0
      %1367 = vst.msk [vmem:[#allocation2 + $0x30] sm:$0xff] %vm1360, 0.0
      %1368 = vst.msk [vmem:[#allocation2 + $0x38] sm:$0xff] %vm1360, 0.0
      %1369 = vst.msk [vmem:[#allocation2 + $0x40] sm:$0xff] %vm1360, 0.0
      %1370 = vst.msk [vmem:[#allocation2 + $0x48] sm:$0xff] %vm1360, 0.0
      %1371 = vst.msk [vmem:[#allocation2 + $0x50] sm:$0xff] %vm1360, 0.0
      %1372 = vst.msk [vmem:[#allocation2 + $0x58] sm:$0xff] %vm1360, 0.0
      %1373 = vst.msk [vmem:[#allocation2 + $0x60] sm:$0xff] %vm1360, 0.0
      %1374 = vst.msk [vmem:[#allocation2 + $0x68] sm:$0xff] %vm1360, 0.0
      %1375 = vst.msk [vmem:[#allocation2 + $0x70] sm:$0xff] %vm1360, 0.0
      %1376 = vst.msk [vmem:[#allocation2 + $0x78] sm:$0xff] %vm1360, 0.0
      %1377 = vst.msk [vmem:[#allocation2 + $0x80] sm:$0xff] %vm1360, 0.0
      %1378 = vst.msk [vmem:[#allocation2 + $0x88] sm:$0xff] %vm1360, 0.0
      %1379 = vst.msk [vmem:[#allocation2 + $0x90] sm:$0xff] %vm1360, 0.0
      %1380 = vst.msk [vmem:[#allocation2 + $0x98] sm:$0xff] %vm1360, 0.0
      %1381 = vst.msk [vmem:[#allocation2 + $0xa0] sm:$0xff] %vm1360, 0.0
      %1382 = vst.msk [vmem:[#allocation2 + $0xa8] sm:$0xff] %vm1360, 0.0
      %1383 = vst.msk [vmem:[#allocation2 + $0xb0] sm:$0xff] %vm1360, 0.0
      %1384 = vst.msk [vmem:[#allocation2 + $0xb8] sm:$0xff] %vm1360, 0.0
      %1385 = vst.msk [vmem:[#allocation2 + $0xc0] sm:$0xff] %vm1360, 0.0
      %1386 = vst.msk [vmem:[#allocation2 + $0xc8] sm:$0xff] %vm1360, 0.0
      %1387 = vst.msk [vmem:[#allocation2 + $0xd0] sm:$0xff] %vm1360, 0.0
      %1388 = vst.msk [vmem:[#allocation2 + $0xd8] sm:$0xff] %vm1360, 0.0
      %1389 = vst.msk [vmem:[#allocation2 + $0xe0] sm:$0xff] %vm1360, 0.0
      %1390 = vst.msk [vmem:[#allocation2 + $0xe8] sm:$0xff] %vm1360, 0.0
      %1391 = vst.msk [vmem:[#allocation2 + $0xf0] sm:$0xff] %vm1360, 0.0
      %1392 = vst.msk [vmem:[#allocation2 + $0xf8] sm:$0xff] %vm1360, 0.0
      %1393 = vst.msk [vmem:[#allocation2 + $0x100] sm:$0xff] %vm1360, 0.0
      %1394 = vst.msk [vmem:[#allocation2 + $0x11] sm:$0xff] %vm1360, %v1335
      %vm1395 = vcmask 259072
      %1396 = vst.msk [vmem:[#allocation2 + $0x19] sm:$0x3f] %vm1395, %v1336
      %vm1397 = vcmask 261126
      %1398 = vst.msk [vmem:[#allocation2 + $0x1b] sm:$0xc0] %vm1397, %v1336
      %1399 = vst.msk [vmem:[#allocation2 + $0x23] sm:$0xff] %vm1360, %v1337
      %vm1400 = vcmask 257024
      %1401 = vst.msk [vmem:[#allocation2 + $0x2b] sm:$0xf] %vm1400, %v1338
      %vm1402 = vcmask 261124
      %1403 = vst.msk [vmem:[#allocation2 + $0x2d] sm:$0xf0] %vm1402, %v1338
      %1404 = vst.msk [vmem:[#allocation2 + $0x35] sm:$0xff] %vm1360, %v1339
      %vm1405 = vcmask 254976
      %1406 = vst.msk [vmem:[#allocation2 + $0x3d] sm:$0x3] %vm1405, %v1340
      %vm1407 = vcmask 261122
      %1408 = vst.msk [vmem:[#allocation2 + $0x3f] sm:$0xfc] %vm1407, %v1340
      %1409 = vst.msk [vmem:[#allocation2 + $0x47] sm:$0xff] %vm1360, %v1341
      %1410 = vst.msk [vmem:[#allocation2 + $0x51] sm:$0xff] %vm1360, %v1342
      %1411 = vst.msk [vmem:[#allocation2 + $0x59] sm:$0x3f] %vm1395, %v1343
      %1412 = vst.msk [vmem:[#allocation2 + $0x5b] sm:$0xc0] %vm1397, %v1343
      %1413 = vst.msk [vmem:[#allocation2 + $0x63] sm:$0xff] %vm1360, %v1344
      %1414 = vst.msk [vmem:[#allocation2 + $0x6b] sm:$0xf] %vm1400, %v1345
      %1415 = vst.msk [vmem:[#allocation2 + $0x6d] sm:$0xf0] %vm1402, %v1345
      %1416 = vst.msk [vmem:[#allocation2 + $0x75] sm:$0xff] %vm1360, %v1346
      %1417 = vst.msk [vmem:[#allocation2 + $0x7d] sm:$0x3] %vm1405, %v1347
      %1418 = vst.msk [vmem:[#allocation2 + $0x7f] sm:$0xfc] %vm1407, %v1347
      %1419 = vst.msk [vmem:[#allocation2 + $0x87] sm:$0xff] %vm1360, %v1348
      %1420 = vst.msk [vmem:[#allocation2 + $0x91] sm:$0xff] %vm1360, %v1349
      %1421 = vst.msk [vmem:[#allocation2 + $0x99] sm:$0x3f] %vm1395, %v1350
      %1422 = vst.msk [vmem:[#allocation2 + $0x9b] sm:$0xc0] %vm1397, %v1350
      %1423 = vst.msk [vmem:[#allocation2 + $0xa3] sm:$0xff] %vm1360, %v1351
      %1424 = vst.msk [vmem:[#allocation2 + $0xab] sm:$0xf] %vm1400, %v1352
      %1425 = vst.msk [vmem:[#allocation2 + $0xad] sm:$0xf0] %vm1402, %v1352
      %1426 = vst.msk [vmem:[#allocation2 + $0xb5] sm:$0xff] %vm1360, %v1353
      %1427 = vst.msk [vmem:[#allocation2 + $0xbd] sm:$0x3] %vm1405, %v1354
      %1428 = vst.msk [vmem:[#allocation2 + $0xbf] sm:$0xfc] %vm1407, %v1354
      %1429 = vst.msk [vmem:[#allocation2 + $0xc7] sm:$0xff] %vm1360, %v1355
      %1430 = vst.msk [vmem:[#allocation2 + $0xd1] sm:$0xff] %vm1360, %v1356
      %1431 = vst.msk [vmem:[#allocation2 + $0xd9] sm:$0x3f] %vm1395, %v1357
      %1432 = vst.msk [vmem:[#allocation2 + $0xdb] sm:$0xc0] %vm1397, %v1357
      %1433 = vst.msk [vmem:[#allocation2 + $0xe3] sm:$0xff] %vm1360, %v1358
      %1434 = vst.msk [vmem:[#allocation2 + $0xeb] sm:$0xf] %vm1400, %v1359
      %v1435 = vld [vmem:[#allocation2] sm:$0xff]
      %v1436 = vld [vmem:[#allocation2 + $0x8] sm:$0xff]
      %v1437 = vld [vmem:[#allocation2 + $0x10] sm:$0xff]
      %v1438 = vld [vmem:[#allocation2 + $0x18] sm:$0xff]
      %v1439 = vld [vmem:[#allocation2 + $0x20] sm:$0xff]
      %v1440 = vld [vmem:[#allocation2 + $0x28] sm:$0xff]
      %v1441 = vld [vmem:[#allocation2 + $0x30] sm:$0xff]
      %v1442 = vld [vmem:[#allocation2 + $0x38] sm:$0xff]
      %v1443 = vld [vmem:[#allocation2 + $0x40] sm:$0xff]
      %v1444 = vld [vmem:[#allocation2 + $0x48] sm:$0xff]
      %v1445 = vld [vmem:[#allocation2 + $0x50] sm:$0xff]
      %v1446 = vld [vmem:[#allocation2 + $0x58] sm:$0xff]
      %v1447 = vld [vmem:[#allocation2 + $0x60] sm:$0xff]
      %v1448 = vld [vmem:[#allocation2 + $0x68] sm:$0xff]
      %v1449 = vld [vmem:[#allocation2 + $0x70] sm:$0xff]
      %v1450 = vld [vmem:[#allocation2 + $0x78] sm:$0xff]
      %v1451 = vld [vmem:[#allocation2 + $0x80] sm:$0xff]
      %v1452 = vld [vmem:[#allocation2 + $0x88] sm:$0xff]
      %v1453 = vld [vmem:[#allocation2 + $0x90] sm:$0xff]
      %v1454 = vld [vmem:[#allocation2 + $0x98] sm:$0xff]
      %v1455 = vld [vmem:[#allocation2 + $0xa0] sm:$0xff]
      %v1456 = vld [vmem:[#allocation2 + $0xa8] sm:$0xff]
      %v1457 = vld [vmem:[#allocation2 + $0xb0] sm:$0xff]
      %v1458 = vld [vmem:[#allocation2 + $0xb8] sm:$0xff]
      %v1459 = vld [vmem:[#allocation2 + $0xc0] sm:$0xff]
      %v1460 = vld [vmem:[#allocation2 + $0xc8] sm:$0xff]
      %v1461 = vld [vmem:[#allocation2 + $0xd0] sm:$0xff]
      %v1462 = vld [vmem:[#allocation2 + $0xd8] sm:$0xff]
      %v1463 = vld [vmem:[#allocation2 + $0x1] sm:$0xff]
      %v1464 = vld [vmem:[#allocation2 + $0x9] sm:$0xff]
      %v1465 = vld [vmem:[#allocation2 + $0x11] sm:$0xff]
      %v1466 = vld [vmem:[#allocation2 + $0x19] sm:$0xff]
      %v1467 = vld [vmem:[#allocation2 + $0x21] sm:$0xff]
      %v1468 = vld [vmem:[#allocation2 + $0x29] sm:$0xff]
      %v1469 = vld [vmem:[#allocation2 + $0x31] sm:$0xff]
      %v1470 = vld [vmem:[#allocation2 + $0x39] sm:$0xff]
      %v1471 = vld [vmem:[#allocation2 + $0x41] sm:$0xff]
      %v1472 = vld [vmem:[#allocation2 + $0x49] sm:$0xff]
      %v1473 = vld [vmem:[#allocation2 + $0x51] sm:$0xff]
      %v1474 = vld [vmem:[#allocation2 + $0x59] sm:$0xff]
      %v1475 = vld [vmem:[#allocation2 + $0x61] sm:$0xff]
      %v1476 = vld [vmem:[#allocation2 + $0x69] sm:$0xff]
      %v1477 = vld [vmem:[#allocation2 + $0x71] sm:$0xff]
      %v1478 = vld [vmem:[#allocation2 + $0x79] sm:$0xff]
      %v1479 = vld [vmem:[#allocation2 + $0x81] sm:$0xff]
      %v1480 = vld [vmem:[#allocation2 + $0x89] sm:$0xff]
      %v1481 = vld [vmem:[#allocation2 + $0x91] sm:$0xff]
      %v1482 = vld [vmem:[#allocation2 + $0x99] sm:$0xff]
      %v1483 = vld [vmem:[#allocation2 + $0xa1] sm:$0xff]
      %v1484 = vld [vmem:[#allocation2 + $0xa9] sm:$0xff]
      %v1485 = vld [vmem:[#allocation2 + $0xb1] sm:$0xff]
      %v1486 = vld [vmem:[#allocation2 + $0xb9] sm:$0xff]
      %v1487 = vld [vmem:[#allocation2 + $0xc1] sm:$0xff]
      %v1488 = vld [vmem:[#allocation2 + $0xc9] sm:$0xff]
      %v1489 = vld [vmem:[#allocation2 + $0xd1] sm:$0xff]
      %v1490 = vld [vmem:[#allocation2 + $0xd9] sm:$0xff]
      %v1491 = vld [vmem:[#allocation2 + $0x2] sm:$0xff]
      %v1492 = vld [vmem:[#allocation2 + $0xa] sm:$0xff]
      %v1493 = vld [vmem:[#allocation2 + $0x12] sm:$0xff]
      %v1494 = vld [vmem:[#allocation2 + $0x1a] sm:$0xff]
      %v1495 = vld [vmem:[#allocation2 + $0x22] sm:$0xff]
      %v1496 = vld [vmem:[#allocation2 + $0x2a] sm:$0xff]
      %v1497 = vld [vmem:[#allocation2 + $0x32] sm:$0xff]
      %v1498 = vld [vmem:[#allocation2 + $0x3a] sm:$0xff]
      %v1499 = vld [vmem:[#allocation2 + $0x42] sm:$0xff]
      %v1500 = vld [vmem:[#allocation2 + $0x4a] sm:$0xff]
      %v1501 = vld [vmem:[#allocation2 + $0x52] sm:$0xff]
      %v1502 = vld [vmem:[#allocation2 + $0x5a] sm:$0xff]
      %v1503 = vld [vmem:[#allocation2 + $0x62] sm:$0xff]
      %v1504 = vld [vmem:[#allocation2 + $0x6a] sm:$0xff]
      %v1505 = vld [vmem:[#allocation2 + $0x72] sm:$0xff]
      %v1506 = vld [vmem:[#allocation2 + $0x7a] sm:$0xff]
      %v1507 = vld [vmem:[#allocation2 + $0x82] sm:$0xff]
      %v1508 = vld [vmem:[#allocation2 + $0x8a] sm:$0xff]
      %v1509 = vld [vmem:[#allocation2 + $0x92] sm:$0xff]
      %v1510 = vld [vmem:[#allocation2 + $0x9a] sm:$0xff]
      %v1511 = vld [vmem:[#allocation2 + $0xa2] sm:$0xff]
      %v1512 = vld [vmem:[#allocation2 + $0xaa] sm:$0xff]
      %v1513 = vld [vmem:[#allocation2 + $0xb2] sm:$0xff]
      %v1514 = vld [vmem:[#allocation2 + $0xba] sm:$0xff]
      %v1515 = vld [vmem:[#allocation2 + $0xc2] sm:$0xff]
      %v1516 = vld [vmem:[#allocation2 + $0xca] sm:$0xff]
      %v1517 = vld [vmem:[#allocation2 + $0xd2] sm:$0xff]
      %v1518 = vld [vmem:[#allocation2 + $0xda] sm:$0xff]
      %v1519 = vld [vmem:[#allocation2 + $0xe0] sm:$0xff]
      %v1520 = vld [vmem:[#allocation2 + $0xe8] sm:$0xff]
      %v1521 = vld [vmem:[#allocation2 + $0xe1] sm:$0xff]
      %v1522 = vld [vmem:[#allocation2 + $0xe9] sm:$0xff]
      %v1523 = vld [vmem:[#allocation2 + $0xe2] sm:$0xff]
      %v1524 = vld [vmem:[#allocation2 + $0xea] sm:$0xff]
      %v1525 = vld [vmem:[#allocation2 + $0xf0] sm:$0xff]
      %v1526 = vld [vmem:[#allocation2 + $0xf8] sm:$0xff]
      %v1527 = vld [vmem:[#allocation2 + $0xf1] sm:$0xff]
      %v1528 = vld [vmem:[#allocation2 + $0xf9] sm:$0xff]
      %v1529 = vld [vmem:[#allocation2 + $0xf2] sm:$0xff]
      %v1530 = vld [vmem:[#allocation2 + $0xfa] sm:$0xff]
      %1559 = vrot.lane.b32.xlu0 %v1463, 32
      %v1560 = vpop.permute.xlu0 %1559
      %1561 = vrot.lane.b32.xlu0 %v1464, 32
      %v1562 = vpop.permute.xlu0 %1561
      %1563 = vrot.lane.b32.xlu0 %v1465, 32
      %v1564 = vpop.permute.xlu0 %1563
      %1565 = vrot.lane.b32.xlu0 %v1466, 32
      %v1566 = vpop.permute.xlu0 %1565
      %1567 = vrot.lane.b32.xlu0 %v1467, 32
      %v1568 = vpop.permute.xlu0 %1567
      %1569 = vrot.lane.b32.xlu0 %v1468, 32
      %v1570 = vpop.permute.xlu0 %1569
      %1571 = vrot.lane.b32.xlu0 %v1469, 32
      %v1572 = vpop.permute.xlu0 %1571
      %1573 = vrot.lane.b32.xlu0 %v1470, 32
      %v1574 = vpop.permute.xlu0 %1573
      %1575 = vrot.lane.b32.xlu0 %v1471, 32
      %v1576 = vpop.permute.xlu0 %1575
      %1577 = vrot.lane.b32.xlu0 %v1472, 32
      %v1578 = vpop.permute.xlu0 %1577
      %1579 = vrot.lane.b32.xlu0 %v1473, 32
      %v1580 = vpop.permute.xlu0 %1579
      %1581 = vrot.lane.b32.xlu0 %v1474, 32
      %v1582 = vpop.permute.xlu0 %1581
      %1583 = vrot.lane.b32.xlu0 %v1475, 32
      %v1584 = vpop.permute.xlu0 %1583
      %1585 = vrot.lane.b32.xlu0 %v1476, 32
      %v1586 = vpop.permute.xlu0 %1585
      %1587 = vrot.lane.b32.xlu0 %v1477, 32
      %v1588 = vpop.permute.xlu0 %1587
      %1589 = vrot.lane.b32.xlu0 %v1478, 32
      %v1590 = vpop.permute.xlu0 %1589
      %1591 = vrot.lane.b32.xlu0 %v1479, 32
      %v1592 = vpop.permute.xlu0 %1591
      %1593 = vrot.lane.b32.xlu0 %v1480, 32
      %v1594 = vpop.permute.xlu0 %1593
      %1595 = vrot.lane.b32.xlu0 %v1481, 32
      %v1596 = vpop.permute.xlu0 %1595
      %1597 = vrot.lane.b32.xlu0 %v1482, 32
      %v1598 = vpop.permute.xlu0 %1597
      %1599 = vrot.lane.b32.xlu0 %v1483, 32
      %v1600 = vpop.permute.xlu0 %1599
      %1601 = vrot.lane.b32.xlu0 %v1484, 32
      %v1602 = vpop.permute.xlu0 %1601
      %1603 = vrot.lane.b32.xlu0 %v1485, 32
      %v1604 = vpop.permute.xlu0 %1603
      %1605 = vrot.lane.b32.xlu0 %v1486, 32
      %v1606 = vpop.permute.xlu0 %1605
      %1607 = vrot.lane.b32.xlu0 %v1487, 32
      %v1608 = vpop.permute.xlu0 %1607
      %1609 = vrot.lane.b32.xlu0 %v1488, 32
      %v1610 = vpop.permute.xlu0 %1609
      %1611 = vrot.lane.b32.xlu0 %v1489, 32
      %v1612 = vpop.permute.xlu0 %1611
      %1613 = vrot.lane.b32.xlu0 %v1490, 32
      %v1614 = vpop.permute.xlu0 %1613
      %1671 = vrot.lane.b32.xlu0 %v1491, 64
      %v1672 = vpop.permute.xlu0 %1671
      %1673 = vrot.lane.b32.xlu0 %v1492, 64
      %v1674 = vpop.permute.xlu0 %1673
      %1675 = vrot.lane.b32.xlu0 %v1493, 64
      %v1676 = vpop.permute.xlu0 %1675
      %1677 = vrot.lane.b32.xlu0 %v1494, 64
      %v1678 = vpop.permute.xlu0 %1677
      %1679 = vrot.lane.b32.xlu0 %v1495, 64
      %v1680 = vpop.permute.xlu0 %1679
      %1681 = vrot.lane.b32.xlu0 %v1496, 64
      %v1682 = vpop.permute.xlu0 %1681
      %1683 = vrot.lane.b32.xlu0 %v1497, 64
      %v1684 = vpop.permute.xlu0 %1683
      %1685 = vrot.lane.b32.xlu0 %v1498, 64
      %v1686 = vpop.permute.xlu0 %1685
      %1687 = vrot.lane.b32.xlu0 %v1499, 64
      %v1688 = vpop.permute.xlu0 %1687
      %1689 = vrot.lane.b32.xlu0 %v1500, 64
      %v1690 = vpop.permute.xlu0 %1689
      %1691 = vrot.lane.b32.xlu0 %v1501, 64
      %v1692 = vpop.permute.xlu0 %1691
      %1693 = vrot.lane.b32.xlu0 %v1502, 64
      %v1694 = vpop.permute.xlu0 %1693
      %1695 = vrot.lane.b32.xlu0 %v1503, 64
      %v1696 = vpop.permute.xlu0 %1695
      %1697 = vrot.lane.b32.xlu0 %v1504, 64
      %v1698 = vpop.permute.xlu0 %1697
      %1699 = vrot.lane.b32.xlu0 %v1505, 64
      %v1700 = vpop.permute.xlu0 %1699
      %1701 = vrot.lane.b32.xlu0 %v1506, 64
      %v1702 = vpop.permute.xlu0 %1701
      %1703 = vrot.lane.b32.xlu0 %v1507, 64
      %v1704 = vpop.permute.xlu0 %1703
      %1705 = vrot.lane.b32.xlu0 %v1508, 64
      %v1706 = vpop.permute.xlu0 %1705
      %1707 = vrot.lane.b32.xlu0 %v1509, 64
      %v1708 = vpop.permute.xlu0 %1707
      %1709 = vrot.lane.b32.xlu0 %v1510, 64
      %v1710 = vpop.permute.xlu0 %1709
      %1711 = vrot.lane.b32.xlu0 %v1511, 64
      %v1712 = vpop.permute.xlu0 %1711
      %1713 = vrot.lane.b32.xlu0 %v1512, 64
      %v1714 = vpop.permute.xlu0 %1713
      %1715 = vrot.lane.b32.xlu0 %v1513, 64
      %v1716 = vpop.permute.xlu0 %1715
      %1717 = vrot.lane.b32.xlu0 %v1514, 64
      %v1718 = vpop.permute.xlu0 %1717
      %1719 = vrot.lane.b32.xlu0 %v1515, 64
      %v1720 = vpop.permute.xlu0 %1719
      %1721 = vrot.lane.b32.xlu0 %v1516, 64
      %v1722 = vpop.permute.xlu0 %1721
      %1723 = vrot.lane.b32.xlu0 %v1517, 64
      %v1724 = vpop.permute.xlu0 %1723
      %1725 = vrot.lane.b32.xlu0 %v1518, 64
      %v1726 = vpop.permute.xlu0 %1725
      %1783 = vrot.lane.b32.xlu0 %v1437, 96
      %v1784 = vpop.permute.xlu0 %1783
      %1785 = vrot.lane.b32.xlu0 %v1438, 96
      %v1786 = vpop.permute.xlu0 %1785
      %1787 = vrot.lane.b32.xlu0 %v1439, 96
      %v1788 = vpop.permute.xlu0 %1787
      %1789 = vrot.lane.b32.xlu0 %v1440, 96
      %v1790 = vpop.permute.xlu0 %1789
      %1791 = vrot.lane.b32.xlu0 %v1441, 96
      %v1792 = vpop.permute.xlu0 %1791
      %1793 = vrot.lane.b32.xlu0 %v1442, 96
      %v1794 = vpop.permute.xlu0 %1793
      %1795 = vrot.lane.b32.xlu0 %v1443, 96
      %v1796 = vpop.permute.xlu0 %1795
      %1797 = vrot.lane.b32.xlu0 %v1444, 96
      %v1798 = vpop.permute.xlu0 %1797
      %1799 = vrot.lane.b32.xlu0 %v1445, 96
      %v1800 = vpop.permute.xlu0 %1799
      %1801 = vrot.lane.b32.xlu0 %v1446, 96
      %v1802 = vpop.permute.xlu0 %1801
      %1803 = vrot.lane.b32.xlu0 %v1447, 96
      %v1804 = vpop.permute.xlu0 %1803
      %1805 = vrot.lane.b32.xlu0 %v1448, 96
      %v1806 = vpop.permute.xlu0 %1805
      %1807 = vrot.lane.b32.xlu0 %v1449, 96
      %v1808 = vpop.permute.xlu0 %1807
      %1809 = vrot.lane.b32.xlu0 %v1450, 96
      %v1810 = vpop.permute.xlu0 %1809
      %1811 = vrot.lane.b32.xlu0 %v1451, 96
      %v1812 = vpop.permute.xlu0 %1811
      %1813 = vrot.lane.b32.xlu0 %v1452, 96
      %v1814 = vpop.permute.xlu0 %1813
      %1815 = vrot.lane.b32.xlu0 %v1453, 96
      %v1816 = vpop.permute.xlu0 %1815
      %1817 = vrot.lane.b32.xlu0 %v1454, 96
      %v1818 = vpop.permute.xlu0 %1817
      %1819 = vrot.lane.b32.xlu0 %v1455, 96
      %v1820 = vpop.permute.xlu0 %1819
      %1821 = vrot.lane.b32.xlu0 %v1456, 96
      %v1822 = vpop.permute.xlu0 %1821
      %1823 = vrot.lane.b32.xlu0 %v1457, 96
      %v1824 = vpop.permute.xlu0 %1823
      %1825 = vrot.lane.b32.xlu0 %v1458, 96
      %v1826 = vpop.permute.xlu0 %1825
      %1827 = vrot.lane.b32.xlu0 %v1459, 96
      %v1828 = vpop.permute.xlu0 %1827
      %1829 = vrot.lane.b32.xlu0 %v1460, 96
      %v1830 = vpop.permute.xlu0 %1829
      %1831 = vrot.lane.b32.xlu0 %v1461, 96
      %v1832 = vpop.permute.xlu0 %1831
      %1833 = vrot.lane.b32.xlu0 %v1462, 96
      %v1834 = vpop.permute.xlu0 %1833
      %1835 = vrot.lane.b32.xlu0 %v1519, 96
      %v1836 = vpop.permute.xlu0 %1835
      %1837 = vrot.lane.b32.xlu0 %v1520, 96
      %v1838 = vpop.permute.xlu0 %1837
      %1869 = vrot.lane.b32.xlu0 %v1493, 32
      %v1870 = vpop.permute.xlu0 %1869
      %1871 = vrot.lane.b32.xlu0 %v1494, 32
      %v1872 = vpop.permute.xlu0 %1871
      %1873 = vrot.lane.b32.xlu0 %v1495, 32
      %v1874 = vpop.permute.xlu0 %1873
      %1875 = vrot.lane.b32.xlu0 %v1496, 32
      %v1876 = vpop.permute.xlu0 %1875
      %1877 = vrot.lane.b32.xlu0 %v1497, 32
      %v1878 = vpop.permute.xlu0 %1877
      %1879 = vrot.lane.b32.xlu0 %v1498, 32
      %v1880 = vpop.permute.xlu0 %1879
      %1881 = vrot.lane.b32.xlu0 %v1499, 32
      %v1882 = vpop.permute.xlu0 %1881
      %1883 = vrot.lane.b32.xlu0 %v1500, 32
      %v1884 = vpop.permute.xlu0 %1883
      %1885 = vrot.lane.b32.xlu0 %v1501, 32
      %v1886 = vpop.permute.xlu0 %1885
      %1887 = vrot.lane.b32.xlu0 %v1502, 32
      %v1888 = vpop.permute.xlu0 %1887
      %1889 = vrot.lane.b32.xlu0 %v1503, 32
      %v1890 = vpop.permute.xlu0 %1889
      %1891 = vrot.lane.b32.xlu0 %v1504, 32
      %v1892 = vpop.permute.xlu0 %1891
      %1893 = vrot.lane.b32.xlu0 %v1505, 32
      %v1894 = vpop.permute.xlu0 %1893
      %1895 = vrot.lane.b32.xlu0 %v1506, 32
      %v1896 = vpop.permute.xlu0 %1895
      %1897 = vrot.lane.b32.xlu0 %v1507, 32
      %v1898 = vpop.permute.xlu0 %1897
      %1899 = vrot.lane.b32.xlu0 %v1508, 32
      %v1900 = vpop.permute.xlu0 %1899
      %1901 = vrot.lane.b32.xlu0 %v1509, 32
      %v1902 = vpop.permute.xlu0 %1901
      %1903 = vrot.lane.b32.xlu0 %v1510, 32
      %v1904 = vpop.permute.xlu0 %1903
      %1905 = vrot.lane.b32.xlu0 %v1511, 32
      %v1906 = vpop.permute.xlu0 %1905
      %1907 = vrot.lane.b32.xlu0 %v1512, 32
      %v1908 = vpop.permute.xlu0 %1907
      %1909 = vrot.lane.b32.xlu0 %v1513, 32
      %v1910 = vpop.permute.xlu0 %1909
      %1911 = vrot.lane.b32.xlu0 %v1514, 32
      %v1912 = vpop.permute.xlu0 %1911
      %1913 = vrot.lane.b32.xlu0 %v1515, 32
      %v1914 = vpop.permute.xlu0 %1913
      %1915 = vrot.lane.b32.xlu0 %v1516, 32
      %v1916 = vpop.permute.xlu0 %1915
      %1917 = vrot.lane.b32.xlu0 %v1517, 32
      %v1918 = vpop.permute.xlu0 %1917
      %1919 = vrot.lane.b32.xlu0 %v1518, 32
      %v1920 = vpop.permute.xlu0 %1919
      %1921 = vrot.lane.b32.xlu0 %v1523, 32
      %v1922 = vpop.permute.xlu0 %1921
      %1923 = vrot.lane.b32.xlu0 %v1524, 32
      %v1924 = vpop.permute.xlu0 %1923
      %1955 = vrot.lane.b32.xlu0 %v1439, 64
      %v1956 = vpop.permute.xlu0 %1955
      %1957 = vrot.lane.b32.xlu0 %v1440, 64
      %v1958 = vpop.permute.xlu0 %1957
      %1959 = vrot.lane.b32.xlu0 %v1441, 64
      %v1960 = vpop.permute.xlu0 %1959
      %1961 = vrot.lane.b32.xlu0 %v1442, 64
      %v1962 = vpop.permute.xlu0 %1961
      %1963 = vrot.lane.b32.xlu0 %v1443, 64
      %v1964 = vpop.permute.xlu0 %1963
      %1965 = vrot.lane.b32.xlu0 %v1444, 64
      %v1966 = vpop.permute.xlu0 %1965
      %1967 = vrot.lane.b32.xlu0 %v1445, 64
      %v1968 = vpop.permute.xlu0 %1967
      %1969 = vrot.lane.b32.xlu0 %v1446, 64
      %v1970 = vpop.permute.xlu0 %1969
      %1971 = vrot.lane.b32.xlu0 %v1447, 64
      %v1972 = vpop.permute.xlu0 %1971
      %1973 = vrot.lane.b32.xlu0 %v1448, 64
      %v1974 = vpop.permute.xlu0 %1973
      %1975 = vrot.lane.b32.xlu0 %v1449, 64
      %v1976 = vpop.permute.xlu0 %1975
      %1977 = vrot.lane.b32.xlu0 %v1450, 64
      %v1978 = vpop.permute.xlu0 %1977
      %1979 = vrot.lane.b32.xlu0 %v1451, 64
      %v1980 = vpop.permute.xlu0 %1979
      %1981 = vrot.lane.b32.xlu0 %v1452, 64
      %v1982 = vpop.permute.xlu0 %1981
      %1983 = vrot.lane.b32.xlu0 %v1453, 64
      %v1984 = vpop.permute.xlu0 %1983
      %1985 = vrot.lane.b32.xlu0 %v1454, 64
      %v1986 = vpop.permute.xlu0 %1985
      %1987 = vrot.lane.b32.xlu0 %v1455, 64
      %v1988 = vpop.permute.xlu0 %1987
      %1989 = vrot.lane.b32.xlu0 %v1456, 64
      %v1990 = vpop.permute.xlu0 %1989
      %1991 = vrot.lane.b32.xlu0 %v1457, 64
      %v1992 = vpop.permute.xlu0 %1991
      %1993 = vrot.lane.b32.xlu0 %v1458, 64
      %v1994 = vpop.permute.xlu0 %1993
      %1995 = vrot.lane.b32.xlu0 %v1459, 64
      %v1996 = vpop.permute.xlu0 %1995
      %1997 = vrot.lane.b32.xlu0 %v1460, 64
      %v1998 = vpop.permute.xlu0 %1997
      %1999 = vrot.lane.b32.xlu0 %v1461, 64
      %v2000 = vpop.permute.xlu0 %1999
      %2001 = vrot.lane.b32.xlu0 %v1462, 64
      %v2002 = vpop.permute.xlu0 %2001
      %2003 = vrot.lane.b32.xlu0 %v1519, 64
      %v2004 = vpop.permute.xlu0 %2003
      %2005 = vrot.lane.b32.xlu0 %v1520, 64
      %v2006 = vpop.permute.xlu0 %2005
      %2007 = vrot.lane.b32.xlu0 %v1525, 64
      %v2008 = vpop.permute.xlu0 %2007
      %2009 = vrot.lane.b32.xlu0 %v1526, 64
      %v2010 = vpop.permute.xlu0 %2009
      %2043 = vrot.lane.b32.xlu0 %v1467, 96
      %v2044 = vpop.permute.xlu0 %2043
      %2045 = vrot.lane.b32.xlu0 %v1468, 96
      %v2046 = vpop.permute.xlu0 %2045
      %2047 = vrot.lane.b32.xlu0 %v1469, 96
      %v2048 = vpop.permute.xlu0 %2047
      %2049 = vrot.lane.b32.xlu0 %v1470, 96
      %v2050 = vpop.permute.xlu0 %2049
      %2051 = vrot.lane.b32.xlu0 %v1471, 96
      %v2052 = vpop.permute.xlu0 %2051
      %2053 = vrot.lane.b32.xlu0 %v1472, 96
      %v2054 = vpop.permute.xlu0 %2053
      %2055 = vrot.lane.b32.xlu0 %v1473, 96
      %v2056 = vpop.permute.xlu0 %2055
      %2057 = vrot.lane.b32.xlu0 %v1474, 96
      %v2058 = vpop.permute.xlu0 %2057
      %2059 = vrot.lane.b32.xlu0 %v1475, 96
      %v2060 = vpop.permute.xlu0 %2059
      %2061 = vrot.lane.b32.xlu0 %v1476, 96
      %v2062 = vpop.permute.xlu0 %2061
      %2063 = vrot.lane.b32.xlu0 %v1477, 96
      %v2064 = vpop.permute.xlu0 %2063
      %2065 = vrot.lane.b32.xlu0 %v1478, 96
      %v2066 = vpop.permute.xlu0 %2065
      %2067 = vrot.lane.b32.xlu0 %v1479, 96
      %v2068 = vpop.permute.xlu0 %2067
      %2069 = vrot.lane.b32.xlu0 %v1480, 96
      %v2070 = vpop.permute.xlu0 %2069
      %2071 = vrot.lane.b32.xlu0 %v1481, 96
      %v2072 = vpop.permute.xlu0 %2071
      %2073 = vrot.lane.b32.xlu0 %v1482, 96
      %v2074 = vpop.permute.xlu0 %2073
      %2075 = vrot.lane.b32.xlu0 %v1483, 96
      %v2076 = vpop.permute.xlu0 %2075
      %2077 = vrot.lane.b32.xlu0 %v1484, 96
      %v2078 = vpop.permute.xlu0 %2077
      %2079 = vrot.lane.b32.xlu0 %v1485, 96
      %v2080 = vpop.permute.xlu0 %2079
      %2081 = vrot.lane.b32.xlu0 %v1486, 96
      %v2082 = vpop.permute.xlu0 %2081
      %2083 = vrot.lane.b32.xlu0 %v1487, 96
      %v2084 = vpop.permute.xlu0 %2083
      %2085 = vrot.lane.b32.xlu0 %v1488, 96
      %v2086 = vpop.permute.xlu0 %2085
      %2087 = vrot.lane.b32.xlu0 %v1489, 96
      %v2088 = vpop.permute.xlu0 %2087
      %2089 = vrot.lane.b32.xlu0 %v1490, 96
      %v2090 = vpop.permute.xlu0 %2089
      %2091 = vrot.lane.b32.xlu0 %v1521, 96
      %v2092 = vpop.permute.xlu0 %2091
      %2093 = vrot.lane.b32.xlu0 %v1522, 96
      %v2094 = vpop.permute.xlu0 %2093
      %2095 = vrot.lane.b32.xlu0 %v1527, 96
      %v2096 = vpop.permute.xlu0 %2095
      %2097 = vrot.lane.b32.xlu0 %v1528, 96
      %v2098 = vpop.permute.xlu0 %2097
      %v2127 = vsel %vm1360, %v1435, %v1560
      %v2128 = vsel %vm1360, %v1436, %v1562
      %v2129 = vsel %vm1360, %v1437, %v1564
      %v2130 = vsel %vm1360, %v1438, %v1566
      %v2131 = vsel %vm1360, %v1439, %v1568
      %v2132 = vsel %vm1360, %v1440, %v1570
      %v2133 = vsel %vm1360, %v1441, %v1572
      %v2134 = vsel %vm1360, %v1442, %v1574
      %v2135 = vsel %vm1360, %v1443, %v1576
      %v2136 = vsel %vm1360, %v1444, %v1578
      %v2137 = vsel %vm1360, %v1445, %v1580
      %v2138 = vsel %vm1360, %v1446, %v1582
      %v2139 = vsel %vm1360, %v1447, %v1584
      %v2140 = vsel %vm1360, %v1448, %v1586
      %v2141 = vsel %vm1360, %v1449, %v1588
      %v2142 = vsel %vm1360, %v1450, %v1590
      %v2143 = vsel %vm1360, %v1451, %v1592
      %v2144 = vsel %vm1360, %v1452, %v1594
      %v2145 = vsel %vm1360, %v1453, %v1596
      %v2146 = vsel %vm1360, %v1454, %v1598
      %v2147 = vsel %vm1360, %v1455, %v1600
      %v2148 = vsel %vm1360, %v1456, %v1602
      %v2149 = vsel %vm1360, %v1457, %v1604
      %v2150 = vsel %vm1360, %v1458, %v1606
      %v2151 = vsel %vm1360, %v1459, %v1608
      %v2152 = vsel %vm1360, %v1460, %v1610
      %v2153 = vsel %vm1360, %v1461, %v1612
      %v2154 = vsel %vm1360, %v1462, %v1614
      %vm2155 = vcmask 523264
      %v2156 = vsel %vm2155, %v2127, %v1672
      %v2157 = vsel %vm2155, %v2128, %v1674
      %v2158 = vsel %vm2155, %v2129, %v1676
      %v2159 = vsel %vm2155, %v2130, %v1678
      %v2160 = vsel %vm2155, %v2131, %v1680
      %v2161 = vsel %vm2155, %v2132, %v1682
      %v2162 = vsel %vm2155, %v2133, %v1684
      %v2163 = vsel %vm2155, %v2134, %v1686
      %v2164 = vsel %vm2155, %v2135, %v1688
      %v2165 = vsel %vm2155, %v2136, %v1690
      %v2166 = vsel %vm2155, %v2137, %v1692
      %v2167 = vsel %vm2155, %v2138, %v1694
      %v2168 = vsel %vm2155, %v2139, %v1696
      %v2169 = vsel %vm2155, %v2140, %v1698
      %v2170 = vsel %vm2155, %v2141, %v1700
      %v2171 = vsel %vm2155, %v2142, %v1702
      %v2172 = vsel %vm2155, %v2143, %v1704
      %v2173 = vsel %vm2155, %v2144, %v1706
      %v2174 = vsel %vm2155, %v2145, %v1708
      %v2175 = vsel %vm2155, %v2146, %v1710
      %v2176 = vsel %vm2155, %v2147, %v1712
      %v2177 = vsel %vm2155, %v2148, %v1714
      %v2178 = vsel %vm2155, %v2149, %v1716
      %v2179 = vsel %vm2155, %v2150, %v1718
      %v2180 = vsel %vm2155, %v2151, %v1720
      %v2181 = vsel %vm2155, %v2152, %v1722
      %v2182 = vsel %vm2155, %v2153, %v1724
      %v2183 = vsel %vm2155, %v2154, %v1726
      %vm2184 = vcmask 785408
      %v2185 = vsel %vm2184, %v2156, %v1784
      %v2186 = vsel %vm2184, %v2157, %v1786
      %v2187 = vsel %vm2184, %v2158, %v1788
      %v2188 = vsel %vm2184, %v2159, %v1790
      %v2189 = vsel %vm2184, %v2160, %v1792
      %v2190 = vsel %vm2184, %v2161, %v1794
      %v2191 = vsel %vm2184, %v2162, %v1796
      %v2192 = vsel %vm2184, %v2163, %v1798
      %v2193 = vsel %vm2184, %v2164, %v1800
      %v2194 = vsel %vm2184, %v2165, %v1802
      %v2195 = vsel %vm2184, %v2166, %v1804
      %v2196 = vsel %vm2184, %v2167, %v1806
      %v2197 = vsel %vm2184, %v2168, %v1808
      %v2198 = vsel %vm2184, %v2169, %v1810
      %v2199 = vsel %vm2184, %v2170, %v1812
      %v2200 = vsel %vm2184, %v2171, %v1814
      %v2201 = vsel %vm2184, %v2172, %v1816
      %v2202 = vsel %vm2184, %v2173, %v1818
      %v2203 = vsel %vm2184, %v2174, %v1820
      %v2204 = vsel %vm2184, %v2175, %v1822
      %v2205 = vsel %vm2184, %v2176, %v1824
      %v2206 = vsel %vm2184, %v2177, %v1826
      %v2207 = vsel %vm2184, %v2178, %v1828
      %v2208 = vsel %vm2184, %v2179, %v1830
      %v2209 = vsel %vm2184, %v2180, %v1832
      %v2210 = vsel %vm2184, %v2181, %v1834
      %v2211 = vsel %vm2184, %v2182, %v1836
      %v2212 = vsel %vm2184, %v2183, %v1838
      %v2213 = vsel %vm1360, %v1465, %v1870
      %v2214 = vsel %vm1360, %v1466, %v1872
      %v2215 = vsel %vm1360, %v1467, %v1874
      %v2216 = vsel %vm1360, %v1468, %v1876
      %v2217 = vsel %vm1360, %v1469, %v1878
      %v2218 = vsel %vm1360, %v1470, %v1880
      %v2219 = vsel %vm1360, %v1471, %v1882
      %v2220 = vsel %vm1360, %v1472, %v1884
      %v2221 = vsel %vm1360, %v1473, %v1886
      %v2222 = vsel %vm1360, %v1474, %v1888
      %v2223 = vsel %vm1360, %v1475, %v1890
      %v2224 = vsel %vm1360, %v1476, %v1892
      %v2225 = vsel %vm1360, %v1477, %v1894
      %v2226 = vsel %vm1360, %v1478, %v1896
      %v2227 = vsel %vm1360, %v1479, %v1898
      %v2228 = vsel %vm1360, %v1480, %v1900
      %v2229 = vsel %vm1360, %v1481, %v1902
      %v2230 = vsel %vm1360, %v1482, %v1904
      %v2231 = vsel %vm1360, %v1483, %v1906
      %v2232 = vsel %vm1360, %v1484, %v1908
      %v2233 = vsel %vm1360, %v1485, %v1910
      %v2234 = vsel %vm1360, %v1486, %v1912
      %v2235 = vsel %vm1360, %v1487, %v1914
      %v2236 = vsel %vm1360, %v1488, %v1916
      %v2237 = vsel %vm1360, %v1489, %v1918
      %v2238 = vsel %vm1360, %v1490, %v1920
      %v2239 = vsel %vm1360, %v1521, %v1922
      %v2240 = vsel %vm1360, %v1522, %v1924
      %v2241 = vsel %vm2155, %v2213, %v1956
      %v2242 = vsel %vm2155, %v2214, %v1958
      %v2243 = vsel %vm2155, %v2215, %v1960
      %v2244 = vsel %vm2155, %v2216, %v1962
      %v2245 = vsel %vm2155, %v2217, %v1964
      %v2246 = vsel %vm2155, %v2218, %v1966
      %v2247 = vsel %vm2155, %v2219, %v1968
      %v2248 = vsel %vm2155, %v2220, %v1970
      %v2249 = vsel %vm2155, %v2221, %v1972
      %v2250 = vsel %vm2155, %v2222, %v1974
      %v2251 = vsel %vm2155, %v2223, %v1976
      %v2252 = vsel %vm2155, %v2224, %v1978
      %v2253 = vsel %vm2155, %v2225, %v1980
      %v2254 = vsel %vm2155, %v2226, %v1982
      %v2255 = vsel %vm2155, %v2227, %v1984
      %v2256 = vsel %vm2155, %v2228, %v1986
      %v2257 = vsel %vm2155, %v2229, %v1988
      %v2258 = vsel %vm2155, %v2230, %v1990
      %v2259 = vsel %vm2155, %v2231, %v1992
      %v2260 = vsel %vm2155, %v2232, %v1994
      %v2261 = vsel %vm2155, %v2233, %v1996
      %v2262 = vsel %vm2155, %v2234, %v1998
      %v2263 = vsel %vm2155, %v2235, %v2000
      %v2264 = vsel %vm2155, %v2236, %v2002
      %v2265 = vsel %vm2155, %v2237, %v2004
      %v2266 = vsel %vm2155, %v2238, %v2006
      %v2267 = vsel %vm2155, %v2239, %v2008
      %v2268 = vsel %vm2155, %v2240, %v2010
      %v2269 = vsel %vm2184, %v2241, %v2044
      %v2270 = vsel %vm2184, %v2242, %v2046
      %v2271 = vsel %vm2184, %v2243, %v2048
      %v2272 = vsel %vm2184, %v2244, %v2050
      %v2273 = vsel %vm2184, %v2245, %v2052
      %v2274 = vsel %vm2184, %v2246, %v2054
      %v2275 = vsel %vm2184, %v2247, %v2056
      %v2276 = vsel %vm2184, %v2248, %v2058
      %v2277 = vsel %vm2184, %v2249, %v2060
      %v2278 = vsel %vm2184, %v2250, %v2062
      %v2279 = vsel %vm2184, %v2251, %v2064
      %v2280 = vsel %vm2184, %v2252, %v2066
      %v2281 = vsel %vm2184, %v2253, %v2068
      %v2282 = vsel %vm2184, %v2254, %v2070
      %v2283 = vsel %vm2184, %v2255, %v2072
      %v2284 = vsel %vm2184, %v2256, %v2074
      %v2285 = vsel %vm2184, %v2257, %v2076
      %v2286 = vsel %vm2184, %v2258, %v2078
      %v2287 = vsel %vm2184, %v2259, %v2080
      %v2288 = vsel %vm2184, %v2260, %v2082
      %v2289 = vsel %vm2184, %v2261, %v2084
      %v2290 = vsel %vm2184, %v2262, %v2086
      %v2291 = vsel %vm2184, %v2263, %v2088
      %v2292 = vsel %vm2184, %v2264, %v2090
      %v2293 = vsel %vm2184, %v2265, %v2092
      %v2294 = vsel %vm2184, %v2266, %v2094
      %v2295 = vsel %vm2184, %v2267, %v2096
      %v2296 = vsel %vm2184, %v2268, %v2098
      %v2297 = vpack.c.bf16 %v2186, %v2185
      %v2298 = vpack.c.bf16 %v2270, %v2269
      %v2299 = vpack.c.bf16 %v1496, %v1495
      %v2300 = vpack.c.bf16 %v2188, %v2187
      %v2301 = vpack.c.bf16 %v2272, %v2271
      %v2302 = vpack.c.bf16 %v1498, %v1497
      %v2303 = vpack.c.bf16 %v2190, %v2189
      %v2304 = vpack.c.bf16 %v2274, %v2273
      %v2305 = vpack.c.bf16 %v1500, %v1499
      %v2306 = vpack.c.bf16 %v2192, %v2191
      %v2307 = vpack.c.bf16 %v2276, %v2275
      %v2308 = vpack.c.bf16 %v1502, %v1501
      %v2309 = vpack.c.bf16 %v2194, %v2193
      %v2310 = vpack.c.bf16 %v2278, %v2277
      %v2311 = vpack.c.bf16 %v1504, %v1503
      %v2312 = vpack.c.bf16 %v2196, %v2195
      %v2313 = vpack.c.bf16 %v2280, %v2279
      %v2314 = vpack.c.bf16 %v1506, %v1505
      %v2315 = vpack.c.bf16 %v2198, %v2197
      %v2316 = vpack.c.bf16 %v2282, %v2281
      %v2317 = vpack.c.bf16 %v1508, %v1507
      %v2318 = vpack.c.bf16 %v2200, %v2199
      %v2319 = vpack.c.bf16 %v2284, %v2283
      %v2320 = vpack.c.bf16 %v1510, %v1509
      %v2321 = vpack.c.bf16 %v2202, %v2201
      %v2322 = vpack.c.bf16 %v2286, %v2285
      %v2323 = vpack.c.bf16 %v1512, %v1511
      %v2324 = vpack.c.bf16 %v2204, %v2203
      %v2325 = vpack.c.bf16 %v2288, %v2287
      %v2326 = vpack.c.bf16 %v1514, %v1513
      %v2327 = vpack.c.bf16 %v2206, %v2205
      %v2328 = vpack.c.bf16 %v2290, %v2289
      %v2329 = vpack.c.bf16 %v1516, %v1515
      %v2330 = vpack.c.bf16 %v2208, %v2207
      %v2331 = vpack.c.bf16 %v2292, %v2291
      %v2332 = vpack.c.bf16 %v1518, %v1517
      %v2333 = vpack.c.bf16 %v2210, %v2209
      %v2334 = vpack.c.bf16 %v2294, %v2293
      %v2335 = vpack.c.bf16 %v1524, %v1523
      %v2336 = vpack.c.bf16 %v2212, %v2211
      %v2337 = vpack.c.bf16 %v2296, %v2295
      %v2338 = vpack.c.bf16 %v1530, %v1529
      %v2339 = vld [vmem:[%s3] sm:$0xf]
      %v2340 = vld [vmem:[%s3 + $0x4] sm:$0xf]
      %v2341 = vld [vmem:[%s3 + $0x8] sm:$0xf]
      %v2342 = vld [vmem:[%s3 + $0xc] sm:$0xf]
      %v2343 = vld [vmem:[%s3 + $0x10] sm:$0xf]
      %v2344 = vld [vmem:[%s3 + $0x14] sm:$0xf]
      %v2345 = vld [vmem:[%s3 + $0x18] sm:$0xf]
      %v2346 = vld [vmem:[%s3 + $0x1c] sm:$0xf]
      %v2347 = vld [vmem:[%s3 + $0x20] sm:$0xf]
      %v2348 = vld [vmem:[%s3 + $0x24] sm:$0xf]
      %v2349 = vld [vmem:[%s3 + $0x28] sm:$0xf]
      %v2350 = vld [vmem:[%s3 + $0x2c] sm:$0xf]
      %v2351 = vld [vmem:[%s3 + $0x30] sm:$0xf]
      %v2352 = vld [vmem:[%s3 + $0x34] sm:$0xf]
      %v2353 = vld [vmem:[%s3 + $0x38] sm:$0xf]
      %v2354 = vld [vmem:[%s3 + $0x3c] sm:$0xf]
      %v2355 = vld [vmem:[%s3 + $0x40] sm:$0xf]
      %v2356 = vld [vmem:[%s3 + $0x44] sm:$0xf]
      %v2357 = vld [vmem:[%s3 + $0x48] sm:$0xf]
      %v2358 = vld [vmem:[%s3 + $0x4c] sm:$0xf]
      %v2359 = vld [vmem:[%s3 + $0x50] sm:$0xf]
      %v2360 = vld [vmem:[%s3 + $0x54] sm:$0xf]
      %v2361 = vld [vmem:[%s3 + $0x58] sm:$0xf]
      %v2362 = vld [vmem:[%s3 + $0x5c] sm:$0xf]
      %v2363 = vld [vmem:[%s3 + $0x60] sm:$0xf]
      %v2364 = vld [vmem:[%s3 + $0x64] sm:$0xf]
      %v2365 = vld [vmem:[%s3 + $0x68] sm:$0xf]
      %v2366 = vld [vmem:[%s3 + $0x6c] sm:$0xf]
      %v2367 = vld [vmem:[%s3 + $0x70] sm:$0xf]
      %v2368 = vld [vmem:[%s3 + $0x74] sm:$0xf]
      %v2369 = vld [vmem:[%s3 + $0x78] sm:$0xf]
      %v2370 = vld [vmem:[%s3 + $0x7c] sm:$0xf]
      %v2371 = vld [vmem:[%s3 + $0x80] sm:$0xf]
      %v2372 = vld [vmem:[%s3 + $0x84] sm:$0xf]
      %v2373 = vld [vmem:[%s3 + $0x88] sm:$0xf]
      %v2374 = vld [vmem:[%s3 + $0x8c] sm:$0xf]
      %v2375 = vld [vmem:[%s4] sm:$0x1]
      %v2377 = vperm.slane %v2375, 0
      %v2415 = vunpack.c.l.b16 %v2339
      %v2416 = vunpack.c.l.b16 %v2340
      %v2417 = vunpack.c.l.b16 %v2341
      %v2418 = vunpack.c.l.b16 %v2342
      %v2419 = vunpack.c.l.b16 %v2343
      %v2420 = vunpack.c.l.b16 %v2344
      %v2421 = vunpack.c.l.b16 %v2345
      %v2422 = vunpack.c.l.b16 %v2346
      %v2423 = vunpack.c.l.b16 %v2347
      %v2424 = vunpack.c.l.b16 %v2348
      %v2425 = vunpack.c.l.b16 %v2349
      %v2426 = vunpack.c.l.b16 %v2350
      %v2427 = vunpack.c.l.b16 %v2351
      %v2428 = vunpack.c.l.b16 %v2352
      %v2429 = vunpack.c.l.b16 %v2353
      %v2430 = vunpack.c.l.b16 %v2354
      %v2431 = vunpack.c.l.b16 %v2355
      %v2432 = vunpack.c.l.b16 %v2356
      %v2433 = vunpack.c.l.b16 %v2357
      %v2434 = vunpack.c.l.b16 %v2358
      %v2435 = vunpack.c.l.b16 %v2359
      %v2436 = vunpack.c.l.b16 %v2360
      %v2437 = vunpack.c.l.b16 %v2361
      %v2438 = vunpack.c.l.b16 %v2362
      %v2439 = vunpack.c.l.b16 %v2363
      %v2440 = vunpack.c.l.b16 %v2364
      %v2441 = vunpack.c.l.b16 %v2365
      %v2442 = vunpack.c.l.b16 %v2366
      %v2443 = vunpack.c.l.b16 %v2367
      %v2444 = vunpack.c.l.b16 %v2368
      %v2445 = vunpack.c.l.b16 %v2369
      %v2446 = vunpack.c.l.b16 %v2370
      %v2447 = vunpack.c.l.b16 %v2371
      %v2448 = vunpack.c.l.b16 %v2372
      %v2449 = vunpack.c.l.b16 %v2373
      %v2450 = vunpack.c.l.b16 %v2374
      %v2451 = vpack.c.b16 %v2416, %v2415
      %v2452 = vpack.c.b16 %v2418, %v2417
      %v2453 = vpack.c.b16 %v2420, %v2419
      %v2454 = vpack.c.b16 %v2422, %v2421
      %v2455 = vpack.c.b16 %v2424, %v2423
      %v2456 = vpack.c.b16 %v2426, %v2425
      %v2457 = vpack.c.b16 %v2428, %v2427
      %v2458 = vpack.c.b16 %v2430, %v2429
      %v2459 = vpack.c.b16 %v2432, %v2431
      %v2460 = vpack.c.b16 %v2434, %v2433
      %v2461 = vpack.c.b16 %v2436, %v2435
      %v2462 = vpack.c.b16 %v2438, %v2437
      %v2463 = vpack.c.b16 %v2440, %v2439
      %v2464 = vpack.c.b16 %v2442, %v2441
      %v2465 = vpack.c.b16 %v2444, %v2443
      %v2466 = vpack.c.b16 %v2446, %v2445
      %v2467 = vpack.c.b16 %v2448, %v2447
      %v2468 = vpack.c.b16 %v2450, %v2449
      %v2488 = vsel %vm1360, %v2299, 0
      %v2491 = vsel %vm1360, %v2302, 0
      %v2494 = vsel %vm1360, %v2305, 0
      %v2497 = vsel %vm1360, %v2308, 0
      %v2500 = vsel %vm1360, %v2311, 0
      %v2503 = vsel %vm1360, %v2314, 0
      %v2506 = vsel %vm1360, %v2317, 0
      %v2509 = vsel %vm1360, %v2320, 0
      %v2512 = vsel %vm1360, %v2323, 0
      %v2515 = vsel %vm1360, %v2326, 0
      %v2518 = vsel %vm1360, %v2329, 0
      %v2521 = vsel %vm1360, %v2332, 0
      %v2524 = vsel %vm1360, %v2335, 0
      %v2527 = vsel %vm1360, %v2338, 0
      %2529 = vmatpush.bf16.msra.mxu0 %v2458
      %2530 = vmatpush.bf16.msra.mxu0 %v2457
      %2531 = vmatpush.bf16.msra.mxu0 %v2456
      %2532 = vmatpush.bf16.msra.mxu0 %v2455
      %2533 = vmatpush.bf16.msra.mxu0 %v2454
      %2534 = vmatpush.bf16.msra.mxu0 %v2453
      %2535 = vmatpush.bf16.msra.mxu0 %v2452
      %2536 = vmatpush.bf16.msra.mxu0 %v2451
      %2537 = vmatmul.bf16.gmra.mxu0 %v2297
      %v2538 = vpop.f32.mrf.mxu0
      %v2539 = vadd.f32 %v2377, %v2538
      %v2540 = vpop.f32.mrf.mxu0
      %v2541 = vadd.f32 %v2377, %v2540
      %2542 = vmatmul.bf16.gmra.mxu0 %v2300
      %v2543 = vpop.f32.mrf.mxu0
      %v2544 = vadd.f32 %v2377, %v2543
      %v2545 = vpop.f32.mrf.mxu0
      %v2546 = vadd.f32 %v2377, %v2545
      %2547 = vmatmul.bf16.gmra.mxu0 %v2303
      %v2548 = vpop.f32.mrf.mxu0
      %v2549 = vadd.f32 %v2377, %v2548
      %v2550 = vpop.f32.mrf.mxu0
      %v2551 = vadd.f32 %v2377, %v2550
      %2552 = vmatmul.bf16.gmra.mxu0 %v2306
      %v2553 = vpop.f32.mrf.mxu0
      %v2554 = vadd.f32 %v2377, %v2553
      %v2555 = vpop.f32.mrf.mxu0
      %v2556 = vadd.f32 %v2377, %v2555
      %2557 = vmatmul.bf16.gmra.mxu0 %v2309
      %v2558 = vpop.f32.mrf.mxu0
      %v2559 = vadd.f32 %v2377, %v2558
      %v2560 = vpop.f32.mrf.mxu0
      %v2561 = vadd.f32 %v2377, %v2560
      %2562 = vmatmul.bf16.gmra.mxu0 %v2312
      %v2563 = vpop.f32.mrf.mxu0
      %v2564 = vadd.f32 %v2377, %v2563
      %v2565 = vpop.f32.mrf.mxu0
      %v2566 = vadd.f32 %v2377, %v2565
      %2567 = vmatmul.bf16.gmra.mxu0 %v2315
      %v2568 = vpop.f32.mrf.mxu0
      %v2569 = vadd.f32 %v2377, %v2568
      %v2570 = vpop.f32.mrf.mxu0
      %v2571 = vadd.f32 %v2377, %v2570
      %2572 = vmatmul.bf16.gmra.mxu0 %v2318
      %v2573 = vpop.f32.mrf.mxu0
      %v2574 = vadd.f32 %v2377, %v2573
      %v2575 = vpop.f32.mrf.mxu0
      %v2576 = vadd.f32 %v2377, %v2575
      %2577 = vmatmul.bf16.gmra.mxu0 %v2321
      %v2578 = vpop.f32.mrf.mxu0
      %v2579 = vadd.f32 %v2377, %v2578
      %v2580 = vpop.f32.mrf.mxu0
      %v2581 = vadd.f32 %v2377, %v2580
      %2582 = vmatmul.bf16.gmra.mxu0 %v2324
      %v2583 = vpop.f32.mrf.mxu0
      %v2584 = vadd.f32 %v2377, %v2583
      %v2585 = vpop.f32.mrf.mxu0
      %v2586 = vadd.f32 %v2377, %v2585
      %2587 = vmatmul.bf16.gmra.mxu0 %v2327
      %v2588 = vpop.f32.mrf.mxu0
      %v2589 = vadd.f32 %v2377, %v2588
      %v2590 = vpop.f32.mrf.mxu0
      %v2591 = vadd.f32 %v2377, %v2590
      %2592 = vmatmul.bf16.gmra.mxu0 %v2330
      %v2593 = vpop.f32.mrf.mxu0
      %v2594 = vadd.f32 %v2377, %v2593
      %v2595 = vpop.f32.mrf.mxu0
      %v2596 = vadd.f32 %v2377, %v2595
      %2597 = vmatmul.bf16.gmra.mxu0 %v2333
      %v2598 = vpop.f32.mrf.mxu0
      %v2599 = vadd.f32 %v2377, %v2598
      %v2600 = vpop.f32.mrf.mxu0
      %v2601 = vadd.f32 %v2377, %v2600
      %2602 = vmatmul.bf16.gmra.mxu0 %v2336
      %v2603 = vpop.f32.mrf.mxu0
      %v2604 = vadd.f32 %v2377, %v2603
      %v2605 = vpop.f32.mrf.mxu0
      %v2606 = vadd.f32 %v2377, %v2605
      %2607 = vdwg.mxu0
      %2608 = vmatpush.bf16.msra.mxu0 %v2466
      %2609 = vmatpush.bf16.msra.mxu0 %v2465
      %2610 = vmatpush.bf16.msra.mxu0 %v2464
      %2611 = vmatpush.bf16.msra.mxu0 %v2463
      %2612 = vmatpush.bf16.msra.mxu0 %v2462
      %2613 = vmatpush.bf16.msra.mxu0 %v2461
      %2614 = vmatpush.bf16.msra.mxu0 %v2460
      %2615 = vmatpush.bf16.msra.mxu0 %v2459
      %2616 = vmatmul.bf16.gmra.mxu0 %v2298
      %v2617 = vpop.f32.mrf.mxu0
      %v2618 = vadd.f32 %v2539, %v2617
      %v2619 = vpop.f32.mrf.mxu0
      %v2620 = vadd.f32 %v2541, %v2619
      %2621 = vmatmul.bf16.gmra.mxu0 %v2301
      %v2622 = vpop.f32.mrf.mxu0
      %v2623 = vadd.f32 %v2544, %v2622
      %v2624 = vpop.f32.mrf.mxu0
      %v2625 = vadd.f32 %v2546, %v2624
      %2626 = vmatmul.bf16.gmra.mxu0 %v2304
      %v2627 = vpop.f32.mrf.mxu0
      %v2628 = vadd.f32 %v2549, %v2627
      %v2629 = vpop.f32.mrf.mxu0
      %v2630 = vadd.f32 %v2551, %v2629
      %2631 = vmatmul.bf16.gmra.mxu0 %v2307
      %v2632 = vpop.f32.mrf.mxu0
      %v2633 = vadd.f32 %v2554, %v2632
      %v2634 = vpop.f32.mrf.mxu0
      %v2635 = vadd.f32 %v2556, %v2634
      %2636 = vmatmul.bf16.gmra.mxu0 %v2310
      %v2637 = vpop.f32.mrf.mxu0
      %v2638 = vadd.f32 %v2559, %v2637
      %v2639 = vpop.f32.mrf.mxu0
      %v2640 = vadd.f32 %v2561, %v2639
      %2641 = vmatmul.bf16.gmra.mxu0 %v2313
      %v2642 = vpop.f32.mrf.mxu0
      %v2643 = vadd.f32 %v2564, %v2642
      %v2644 = vpop.f32.mrf.mxu0
      %v2645 = vadd.f32 %v2566, %v2644
      %2646 = vmatmul.bf16.gmra.mxu0 %v2316
      %v2647 = vpop.f32.mrf.mxu0
      %v2648 = vadd.f32 %v2569, %v2647
      %v2649 = vpop.f32.mrf.mxu0
      %v2650 = vadd.f32 %v2571, %v2649
      %2651 = vmatmul.bf16.gmra.mxu0 %v2319
      %v2652 = vpop.f32.mrf.mxu0
      %v2653 = vadd.f32 %v2574, %v2652
      %v2654 = vpop.f32.mrf.mxu0
      %v2655 = vadd.f32 %v2576, %v2654
      %2656 = vmatmul.bf16.gmra.mxu0 %v2322
      %v2657 = vpop.f32.mrf.mxu0
      %v2658 = vadd.f32 %v2579, %v2657
      %v2659 = vpop.f32.mrf.mxu0
      %v2660 = vadd.f32 %v2581, %v2659
      %2661 = vmatmul.bf16.gmra.mxu0 %v2325
      %v2662 = vpop.f32.mrf.mxu0
      %v2663 = vadd.f32 %v2584, %v2662
      %v2664 = vpop.f32.mrf.mxu0
      %v2665 = vadd.f32 %v2586, %v2664
      %2666 = vmatmul.bf16.gmra.mxu0 %v2328
      %v2667 = vpop.f32.mrf.mxu0
      %v2668 = vadd.f32 %v2589, %v2667
      %v2669 = vpop.f32.mrf.mxu0
      %v2670 = vadd.f32 %v2591, %v2669
      %2671 = vmatmul.bf16.gmra.mxu0 %v2331
      %v2672 = vpop.f32.mrf.mxu0
      %v2673 = vadd.f32 %v2594, %v2672
      %v2674 = vpop.f32.mrf.mxu0
      %v2675 = vadd.f32 %v2596, %v2674
      %2676 = vmatmul.bf16.gmra.mxu0 %v2334
      %v2677 = vpop.f32.mrf.mxu0
      %v2678 = vadd.f32 %v2599, %v2677
      %v2679 = vpop.f32.mrf.mxu0
      %v2680 = vadd.f32 %v2601, %v2679
      %2681 = vmatmul.bf16.gmra.mxu0 %v2337
      %v2682 = vpop.f32.mrf.mxu0
      %v2683 = vadd.f32 %v2604, %v2682
      %v2684 = vpop.f32.mrf.mxu0
      %v2685 = vadd.f32 %v2606, %v2684
      %2686 = vdwg.mxu0
      %2687 = vmatpush.bf16.msra.mxu0 0
      %2688 = vmatpush.bf16.msra.mxu0 0
      %2689 = vmatpush.bf16.msra.mxu0 0
      %2690 = vmatpush.bf16.msra.mxu0 0
      %2691 = vmatpush.bf16.msra.mxu0 0
      %2692 = vmatpush.bf16.msra.mxu0 0
      %2693 = vmatpush.bf16.msra.mxu0 %v2468
      %2694 = vmatpush.bf16.msra.mxu0 %v2467
      %2695 = vmatmul.bf16.gmra.mxu0 %v2488
      %v2696 = vpop.f32.mrf.mxu0
      %v2697 = vadd.f32 %v2618, %v2696
      %v2698 = vpop.f32.mrf.mxu0
      %v2699 = vadd.f32 %v2620, %v2698
      %2700 = vmatmul.bf16.gmra.mxu0 %v2491
      %v2701 = vpop.f32.mrf.mxu0
      %v2702 = vadd.f32 %v2623, %v2701
      %v2703 = vpop.f32.mrf.mxu0
      %v2704 = vadd.f32 %v2625, %v2703
      %2705 = vmatmul.bf16.gmra.mxu0 %v2494
      %v2706 = vpop.f32.mrf.mxu0
      %v2707 = vadd.f32 %v2628, %v2706
      %v2708 = vpop.f32.mrf.mxu0
      %v2709 = vadd.f32 %v2630, %v2708
      %2710 = vmatmul.bf16.gmra.mxu0 %v2497
      %v2711 = vpop.f32.mrf.mxu0
      %v2712 = vadd.f32 %v2633, %v2711
      %v2713 = vpop.f32.mrf.mxu0
      %v2714 = vadd.f32 %v2635, %v2713
      %2715 = vmatmul.bf16.gmra.mxu0 %v2500
      %v2716 = vpop.f32.mrf.mxu0
      %v2717 = vadd.f32 %v2638, %v2716
      %v2718 = vpop.f32.mrf.mxu0
      %v2719 = vadd.f32 %v2640, %v2718
      %2720 = vmatmul.bf16.gmra.mxu0 %v2503
      %v2721 = vpop.f32.mrf.mxu0
      %v2722 = vadd.f32 %v2643, %v2721
      %v2723 = vpop.f32.mrf.mxu0
      %v2724 = vadd.f32 %v2645, %v2723
      %2725 = vmatmul.bf16.gmra.mxu0 %v2506
      %v2726 = vpop.f32.mrf.mxu0
      %v2727 = vadd.f32 %v2648, %v2726
      %v2728 = vpop.f32.mrf.mxu0
      %v2729 = vadd.f32 %v2650, %v2728
      %2730 = vmatmul.bf16.gmra.mxu0 %v2509
      %v2731 = vpop.f32.mrf.mxu0
      %v2732 = vadd.f32 %v2653, %v2731
      %v2733 = vpop.f32.mrf.mxu0
      %v2734 = vadd.f32 %v2655, %v2733
      %2735 = vmatmul.bf16.gmra.mxu0 %v2512
      %v2736 = vpop.f32.mrf.mxu0
      %v2737 = vadd.f32 %v2658, %v2736
      %v2738 = vpop.f32.mrf.mxu0
      %v2739 = vadd.f32 %v2660, %v2738
      %2740 = vmatmul.bf16.gmra.mxu0 %v2515
      %v2741 = vpop.f32.mrf.mxu0
      %v2742 = vadd.f32 %v2663, %v2741
      %v2743 = vpop.f32.mrf.mxu0
      %v2744 = vadd.f32 %v2665, %v2743
      %2745 = vmatmul.bf16.gmra.mxu0 %v2518
      %v2746 = vpop.f32.mrf.mxu0
      %v2747 = vadd.f32 %v2668, %v2746
      %v2748 = vpop.f32.mrf.mxu0
      %v2749 = vadd.f32 %v2670, %v2748
      %2750 = vmatmul.bf16.gmra.mxu0 %v2521
      %v2751 = vpop.f32.mrf.mxu0
      %v2752 = vadd.f32 %v2673, %v2751
      %v2753 = vpop.f32.mrf.mxu0
      %v2754 = vadd.f32 %v2675, %v2753
      %2755 = vmatmul.bf16.gmra.mxu0 %v2524
      %v2756 = vpop.f32.mrf.mxu0
      %v2757 = vadd.f32 %v2678, %v2756
      %v2758 = vpop.f32.mrf.mxu0
      %v2759 = vadd.f32 %v2680, %v2758
      %2760 = vmatmul.bf16.gmra.mxu0 %v2527
      %v2761 = vpop.f32.mrf.mxu0
      %v2762 = vadd.f32 %v2683, %v2761
      %v2763 = vpop.f32.mrf.mxu0
      %v2764 = vadd.f32 %v2685, %v2763
      %2765 = vdwg.mxu0
      %v2766 = vmax.f32 %v2697, 0.0
      %v2767 = vmax.f32 %v2699, 0.0
      %v2768 = vmax.f32 %v2702, 0.0
      %v2769 = vmax.f32 %v2704, 0.0
      %v2770 = vmax.f32 %v2707, 0.0
      %v2771 = vmax.f32 %v2709, 0.0
      %v2772 = vmax.f32 %v2712, 0.0
      %v2773 = vmax.f32 %v2714, 0.0
      %v2774 = vmax.f32 %v2717, 0.0
      %v2775 = vmax.f32 %v2719, 0.0
      %v2776 = vmax.f32 %v2722, 0.0
      %v2777 = vmax.f32 %v2724, 0.0
      %v2778 = vmax.f32 %v2727, 0.0
      %v2779 = vmax.f32 %v2729, 0.0
      %v2780 = vmax.f32 %v2732, 0.0
      %v2781 = vmax.f32 %v2734, 0.0
      %v2782 = vmax.f32 %v2737, 0.0
      %v2783 = vmax.f32 %v2739, 0.0
      %v2784 = vmax.f32 %v2742, 0.0
      %v2785 = vmax.f32 %v2744, 0.0
      %v2786 = vmax.f32 %v2747, 0.0
      %v2787 = vmax.f32 %v2749, 0.0
      %v2788 = vmax.f32 %v2752, 0.0
      %v2789 = vmax.f32 %v2754, 0.0
      %v2790 = vmax.f32 %v2757, 0.0
      %v2791 = vmax.f32 %v2759, 0.0
      %v2792 = vmax.f32 %v2762, 0.0
      %v2793 = vmax.f32 %v2764, 0.0
      %v2794 = vmax.f32 %v2766, %v2768
      %v2795 = vmax.f32 %v2767, %v2769
      %v2796 = vmax.f32 %v2770, %v2772
      %v2797 = vmax.f32 %v2771, %v2773
      %v2798 = vmax.f32 %v2774, %v2776
      %v2799 = vmax.f32 %v2775, %v2777
      %v2800 = vmax.f32 %v2778, %v2780
      %v2801 = vmax.f32 %v2779, %v2781
      %v2802 = vmax.f32 %v2782, %v2784
      %v2803 = vmax.f32 %v2783, %v2785
      %v2804 = vmax.f32 %v2786, %v2788
      %v2805 = vmax.f32 %v2787, %v2789
      %v2806 = vmax.f32 %v2790, %v2792
      %v2807 = vmax.f32 %v2791, %v2793
      %v2809 = vrot.slane %v2794, 1
      %v2811 = vmax.f32 %v2794, %v2809
      %v2813 = vrot.slane %v2795, 1
      %v2815 = vmax.f32 %v2795, %v2813
      %v2817 = vrot.slane %v2796, 1
      %v2819 = vmax.f32 %v2796, %v2817
      %v2821 = vrot.slane %v2797, 1
      %v2823 = vmax.f32 %v2797, %v2821
      %v2825 = vrot.slane %v2798, 1
      %v2827 = vmax.f32 %v2798, %v2825
      %v2829 = vrot.slane %v2799, 1
      %v2831 = vmax.f32 %v2799, %v2829
      %v2833 = vrot.slane %v2800, 1
      %v2835 = vmax.f32 %v2800, %v2833
      %v2837 = vrot.slane %v2801, 1
      %v2839 = vmax.f32 %v2801, %v2837
      %v2841 = vrot.slane %v2802, 1
      %v2843 = vmax.f32 %v2802, %v2841
      %v2845 = vrot.slane %v2803, 1
      %v2847 = vmax.f32 %v2803, %v2845
      %v2849 = vrot.slane %v2804, 1
      %v2851 = vmax.f32 %v2804, %v2849
      %v2853 = vrot.slane %v2805, 1
      %v2855 = vmax.f32 %v2805, %v2853
      %v2857 = vrot.slane %v2806, 1
      %v2859 = vmax.f32 %v2806, %v2857
      %v2861 = vrot.slane %v2807, 1
      %v2863 = vmax.f32 %v2807, %v2861
      %v2865 = vrot.slane %v2811, 1
      %v2867 = vrot.slane %v2811, 2
      %v2869 = vrot.slane %v2811, 3
      %v2872 = vrot.slane %v2815, 4
      %v2874 = vrot.slane %v2815, 5
      %v2876 = vrot.slane %v2815, 6
      %v2879 = vrot.slane %v2819, 1
      %v2881 = vrot.slane %v2819, 2
      %v2883 = vrot.slane %v2819, 3
      %v2885 = vrot.slane %v2819, 4
      %v2888 = vrot.slane %v2823, 5
      %v2890 = vrot.slane %v2823, 6
      %v2892 = vrot.slane %v2823, 7
      %v2895 = vrot.slane %v2827, 2
      %v2897 = vrot.slane %v2827, 3
      %vm2899 = vcmask 1040384
      %v2900 = vsel %vm2899, %v2811, %v2865
      %vm2901 = vcmask 1041408
      %v2902 = vsel %vm2901, %v2900, %v2867
      %vm2903 = vcmask 1042432
      %v2904 = vsel %vm2903, %v2902, %v2869
      %v2905 = vsel %vm728, %v2904, %v2872
      %v2906 = vsel %vm729, %v2905, %v2874
      %vm2907 = vcmask 1045504
      %v2908 = vsel %vm2907, %v2906, %v2876
      %vm2909 = vcmask 1046528
      %v2910 = vsel %vm2909, %v2908, %v2879
      %v2911 = vsel %vm2899, %v2881, %v2883
      %v2912 = vsel %vm2901, %v2911, %v2885
      %v2913 = vsel %vm2903, %v2912, %v2888
      %v2914 = vsel %vm728, %v2913, %v2890
      %v2915 = vsel %vm729, %v2914, %v2892
      %v2916 = vsel %vm2907, %v2915, %v2895
      %v2917 = vsel %vm2909, %v2916, %v2897
      %v2918 = vrot.slane %v2827, 4
      %v2920 = vrot.slane %v2827, 5
      %v2923 = vrot.slane %v2831, 6
      %v2925 = vrot.slane %v2831, 7
      %v2928 = vrot.slane %v2835, 3
      %v2930 = vrot.slane %v2835, 4
      %v2932 = vrot.slane %v2835, 5
      %v2934 = vrot.slane %v2835, 6
      %v2937 = vrot.slane %v2839, 7
      %v2939 = vrot.slane %v2839, 1
      %v2942 = vrot.slane %v2843, 4
      %v2944 = vrot.slane %v2843, 5
      %v2946 = vrot.slane %v2843, 6
      %v2948 = vrot.slane %v2843, 7
      %v2950 = vsel %vm2899, %v2918, %v2920
      %v2951 = vsel %vm2901, %v2950, %v2923
      %v2952 = vsel %vm2903, %v2951, %v2925
      %v2953 = vsel %vm728, %v2952, %v2831
      %v2954 = vsel %vm729, %v2953, %v2928
      %v2955 = vsel %vm2907, %v2954, %v2930
      %v2956 = vsel %vm2909, %v2955, %v2932
      %v2957 = vsel %vm2899, %v2934, %v2937
      %v2958 = vsel %vm2901, %v2957, %v2839
      %v2959 = vsel %vm2903, %v2958, %v2939
      %v2960 = vsel %vm728, %v2959, %v2942
      %v2961 = vsel %vm729, %v2960, %v2944
      %v2962 = vsel %vm2907, %v2961, %v2946
      %v2963 = vsel %vm2909, %v2962, %v2948
      %v2965 = vrot.slane %v2847, 1
      %v2967 = vrot.slane %v2847, 2
      %v2970 = vrot.slane %v2851, 5
      %v2972 = vrot.slane %v2851, 6
      %v2974 = vrot.slane %v2851, 7
      %v2977 = vrot.slane %v2855, 1
      %v2979 = vrot.slane %v2855, 2
      %v2981 = vrot.slane %v2855, 3
      %v2984 = vrot.slane %v2859, 6
      %v2986 = vrot.slane %v2859, 7
      %v2988 = vrot.slane %v2859, 1
      %v2991 = vrot.slane %v2863, 2
      %v2993 = vrot.slane %v2863, 3
      %v2995 = vsel %vm2899, %v2847, %v2965
      %v2996 = vsel %vm2901, %v2995, %v2967
      %v2997 = vsel %vm2903, %v2996, %v2970
      %v2998 = vsel %vm728, %v2997, %v2972
      %v2999 = vsel %vm729, %v2998, %v2974
      %v3000 = vsel %vm2907, %v2999, %v2851
      %v3001 = vsel %vm2909, %v3000, %v2977
      %v3002 = vsel %vm2899, %v2979, %v2981
      %v3003 = vsel %vm2901, %v3002, %v2984
      %v3004 = vsel %vm2903, %v3003, %v2986
      %v3005 = vsel %vm728, %v3004, %v2859
      %v3006 = vsel %vm729, %v3005, %v2988
      %v3007 = vsel %vm2907, %v3006, %v2991
      %v3008 = vsel %vm2909, %v3007, %v2993
      %v3009 = vrot.slane %v2863, 4
      %v3011 = vpack.c.bf16 %v2910, %v2910
      %v3012 = vpack.c.bf16 %v2917, %v2917
      %v3013 = vpack.c.bf16 %v2956, %v2956
      %v3014 = vpack.c.bf16 %v2963, %v2963
      %v3015 = vpack.c.bf16 %v3001, %v3001
      %v3016 = vpack.c.bf16 %v3008, %v3008
      %v3017 = vpack.c.bf16 %v3009, %v3009
      %vm3018 = vcmask 519168
      %3019 = vst.msk [vmem:[%s224] sm:$0xf] %vm3018, %v3011
      %3020 = vst.msk [vmem:[%s224 + $0x4] sm:$0xf] %vm3018, %v3012
      %3021 = vst.msk [vmem:[%s224 + $0x8] sm:$0xf] %vm3018, %v3013
      %3022 = vst.msk [vmem:[%s224 + $0xc] sm:$0xf] %vm3018, %v3014
      %3023 = vst.msk [vmem:[%s224 + $0x10] sm:$0xf] %vm3018, %v3015
      %3024 = vst.msk [vmem:[%s224 + $0x14] sm:$0xf] %vm3018, %v3016
      %vm3025 = vcmask 516096
      %vm3026 = vsmask.f32 256
      %vm3027 = vmand %vm3025, %vm3026
      %v3028 = vld [vmem:[%s224 + $0x18] sm:$0x1]
      %v3029 = vsel %vm3027, %v3017, %v3028
      %3030 = vst [vmem:[%s224 + $0x18] sm:$0x1] %v3029
      %p3031 = scmp.lt.s32.totalorder %s16, 1
      %s3032 = scalar_select %p3031, %s16, 1
      %s3033 = smul.addr %s3032, 7
      %s3034 = smul.addr %s3033, 4
      %s3035 = scalar_lea.vmem %s5, %s3034
      // Predicated region
      $region41: #{mnist_forward.2} parent=39 // pred_check
        %p3036 = pneg %p144
      $region42: #{mnist_forward.2} parent=39 // pred_check_branch
        %3038 = sbr.rel (%p3036) target = $region44
      $region43: #{mnist_forward.2} parent=39 // pred_region
        _
      $region44: #{mnist_forward.2} parent=39 // pred_fallthru
        _
    $region40: #{mnist_forward.2} parent=5 // pred_fallthru
      _
    %p3039 = scmp.le.s32.totalorder 2, %s11
    // Predicated region
    $region45: #{mnist_forward.2} parent=5 // pred_check
      %p3040 = pneg %p3039
    $region46: #{mnist_forward.2} parent=5 // pred_check_branch
      %3042 = sbr.rel (%p3040) target = $region48
    $region47: #{mnist_forward.2} parent=5 // pred_region
      %s3043 = ssub.s32 %s11, 2
      // Predicated region
      $region49: #{mnist_forward.2} parent=47 // pred_check
        %p3044 = pneg %p150
      $region50: #{mnist_forward.2} parent=47 // pred_check_branch
        %3046 = sbr.rel (%p3044) target = $region52
      $region51: #{mnist_forward.2} parent=47 // pred_region
        %p3047 = scmp.lt.s32.totalorder %s17, 1
        %s3048 = scalar_select %p3047, %s17, 1
        %s3049 = smul.addr %s3048, 7
        %s3050 = smul.addr %s3049, 4
        %s3051 = scalar_lea.vmem %s5, %s3050
      $region52: #{mnist_forward.2} parent=47 // pred_fallthru
        _
    $region48: #{mnist_forward.2} parent=5 // pred_fallthru
      _
  $region6: #{mnist_forward.2} parent=0 // loop_footer
    %s15 = sadd.s32 1, %s11
  $region7: #{mnist_forward.2} parent=0 // loop_footer_branch
    %10 = sbr.rel target = $region3
  $region8: #{mnist_forward.2} parent=0 // loop_exit
    _

</llo_original>
